<compile_context>
chip_gen: v6e
topology: v6e:2x2x1
jax: 0.10.0
libtpu: 0.0.40
codegen_flags: <defaults>
</compile_context>

<pallas_src>
import functools

import jax
import jax.numpy as jnp
from jax.experimental import pallas as pl
from jax.experimental.pallas import tpu as pltpu

# ---------------- model config (small, synthetic) ----------------
VOCAB = 64
VOCAB_PAD = 128            # lane-dense logits; sliced back to VOCAB in wrapper
MAX_SEQ_LEN = 16
DIM = 64
N_HEADS = 4
HEAD_DIM = DIM // N_HEADS
FFN_DIM = 128
N_LAYERS = 2
EPS = 1e-5
NEG_INF = -1e9


# ---------------- fused Pallas kernel (whole decoder, one batch row / step) ----------------
def _fused_llama_kernel(x_ref, mask_ref, cos_ref, sin_ref,
                        attn_norm_ref, ffn_norm_ref,
                        wqkv_ref, wo_ref, w13_ref, w2_ref,
                        final_norm_ref, wout_ref,
                        o_ref):
    x = x_ref[0].astype(jnp.float32)          # (S, D) residual stream, stays in vregs/VMEM
    mask = mask_ref[...]                      # (S, S) additive attention mask
    cos = cos_ref[...]                        # (S, Dh/2)
    sin = sin_ref[...]                        # (S, Dh/2)
    scale = 1.0 / (HEAD_DIM ** 0.5)
    half = HEAD_DIM // 2

    def rmsnorm(v, w):                        # f32 statistics, rsqrt on EUP
        ms = jnp.mean(v * v, axis=-1, keepdims=True)
        return v * jax.lax.rsqrt(ms + EPS) * w

    def rope(t):                              # (S, Dh) half-split rotation
        t1 = t[:, :half]
        t2 = t[:, half:]
        return jnp.concatenate([t1 * cos - t2 * sin, t1 * sin + t2 * cos], axis=-1)

    for l in range(N_LAYERS):                 # static unroll (2 layers)
        # ---- attention block: rmsnorm -> fused QKV matmul -> per-head RoPE/softmax -> wo ----
        xn = rmsnorm(x, attn_norm_ref[l])                                     # (S, D)
        qkv = jnp.dot(xn, wqkv_ref[l], preferred_element_type=jnp.float32)    # (S, 3D)
        wo_l = wo_ref[l]                                                      # (D, D)
        attn_delta = jnp.zeros((MAX_SEQ_LEN, DIM), jnp.float32)
        for h in range(N_HEADS):              # static unroll (4 heads)
            q = rope(qkv[:, h * HEAD_DIM:(h + 1) * HEAD_DIM])
            k = rope(qkv[:, DIM + h * HEAD_DIM:DIM + (h + 1) * HEAD_DIM])
            v = qkv[:, 2 * DIM + h * HEAD_DIM:2 * DIM + (h + 1) * HEAD_DIM]
            s = jnp.dot(q, k.T, preferred_element_type=jnp.float32) * scale + mask
            m = jnp.max(s, axis=-1, keepdims=True)
            p = jnp.exp(s - m)
            p = p * pl.reciprocal(jnp.sum(p, axis=-1, keepdims=True), approx=True)
            o_h = jnp.dot(p, v, preferred_element_type=jnp.float32)           # (S, Dh)
            # fold the per-head concat into the wo projection (accumulate)
            attn_delta = attn_delta + jnp.dot(
                o_h, wo_l[h * HEAD_DIM:(h + 1) * HEAD_DIM, :],
                preferred_element_type=jnp.float32)
        x = x + attn_delta                                                    # residual epilogue

        # ---- MLP block: rmsnorm -> fused w1/w3 matmul -> SwiGLU -> w2 ----
        xn = rmsnorm(x, ffn_norm_ref[l])
        gu = jnp.dot(xn, w13_ref[l], preferred_element_type=jnp.float32)      # (S, 2F)
        g = gu[:, :FFN_DIM]
        u = gu[:, FFN_DIM:]
        act = g * pl.reciprocal(1.0 + jnp.exp(-g), approx=True) * u           # silu(g) * u
        x = x + jnp.dot(act, w2_ref[l], preferred_element_type=jnp.float32)

    # ---- final norm + output projection (lane-dense, VOCAB padded to 128) ----
    xn = rmsnorm(x, final_norm_ref[...])
    o_ref[0] = jnp.dot(xn, wout_ref[...], preferred_element_type=jnp.float32)


# ---------------- plain-JAX glue ----------------
def rope_tables(seq_len, head_dim):
    half = head_dim // 2
    inv_freq = 1.0 / (10000.0 ** (jnp.arange(half, dtype=jnp.float32) / half))
    t = jnp.arange(seq_len, dtype=jnp.float32)
    freqs = jnp.outer(t, inv_freq)            # (S, Dh/2)
    return jnp.cos(freqs), jnp.sin(freqs)


def init_params(key):
    def nrm(k, shape):
        return 0.02 * jax.random.normal(k, shape, dtype=jnp.float32)

    keys = jax.random.split(key, 3 + N_LAYERS)
    params = {
        "tok_emb": nrm(keys[0], (VOCAB, DIM)),
        "final_norm": jnp.ones((1, DIM), jnp.float32),
        "output": nrm(keys[1], (DIM, VOCAB)),
        "layers": [],
    }
    for li in range(N_LAYERS):
        lk = jax.random.split(keys[3 + li], 7)
        params["layers"].append({
            "attn_norm": jnp.ones((1, DIM), jnp.float32),
            "ffn_norm": jnp.ones((1, DIM), jnp.float32),
            "wq": nrm(lk[0], (DIM, DIM)),
            "wk": nrm(lk[1], (DIM, DIM)),
            "wv": nrm(lk[2], (DIM, DIM)),
            "wo": nrm(lk[3], (DIM, DIM)),
            "w1": nrm(lk[4], (DIM, FFN_DIM)),
            "w3": nrm(lk[5], (DIM, FFN_DIM)),
            "w2": nrm(lk[6], (FFN_DIM, DIM)),
        })
    return params


def fuse_params(params):
    """Stack / fuse raw per-layer weights for the fused kernel (done once)."""
    layers = params["layers"]
    cos, sin = rope_tables(MAX_SEQ_LEN, HEAD_DIM)
    return {
        "tok_emb": params["tok_emb"],
        "cos": cos,
        "sin": sin,
        "attn_norm": jnp.stack([L["attn_norm"] for L in layers]),                  # (L, 1, D)
        "ffn_norm": jnp.stack([L["ffn_norm"] for L in layers]),                    # (L, 1, D)
        "wqkv": jnp.stack([jnp.concatenate([L["wq"], L["wk"], L["wv"]], axis=1)
                           for L in layers]),                                      # (L, D, 3D)
        "wo": jnp.stack([L["wo"] for L in layers]),                                # (L, D, D)
        "w13": jnp.stack([jnp.concatenate([L["w1"], L["w3"]], axis=1)
                          for L in layers]),                                       # (L, D, 2F)
        "w2": jnp.stack([L["w2"] for L in layers]),                                # (L, F, D)
        "final_norm": params["final_norm"],                                        # (1, D)
        "wout": jnp.pad(params["output"], ((0, 0), (0, VOCAB_PAD - VOCAB))),       # (D, 128)
    }


def wrapped_llama_forward(fused, tokens, atten_mask):
    """Equivalent of WrappedLlamaModel.forward: pad tokens to max_seq_len,
    then run model.forward(tokens, atten_mask) -> logits."""
    B, T = tokens.shape
    if T != MAX_SEQ_LEN:
        tokens = jnp.pad(tokens, ((0, 0), (0, MAX_SEQ_LEN - T)))
    S = MAX_SEQ_LEN

    x = fused["tok_emb"][tokens]              # (B, S, D) embedding lookup (glue)

    def whole(a):                             # full-array block, fetched once (constant index)
        return pl.BlockSpec(a.shape, lambda b: (0,) * a.ndim)

    logits_pad = pl.pallas_call(
        _fused_llama_kernel,
        out_shape=jax.ShapeDtypeStruct((B, S, VOCAB_PAD), jnp.float32),
        grid=(B,),
        in_specs=[
            pl.BlockSpec((1, S, DIM), lambda b: (b, 0, 0)),      # residual stream, per-batch
            whole(atten_mask),
            whole(fused["cos"]), whole(fused["sin"]),
            whole(fused["attn_norm"]), whole(fused["ffn_norm"]),
            whole(fused["wqkv"]), whole(fused["wo"]),
            whole(fused["w13"]), whole(fused["w2"]),
            whole(fused["final_norm"]), whole(fused["wout"]),
        ],
        out_specs=pl.BlockSpec((1, S, VOCAB_PAD), lambda b: (b, 0, 0)),
        compiler_params=pltpu.CompilerParams(dimension_semantics=("parallel",)),
    )(x, atten_mask, fused["cos"], fused["sin"],
      fused["attn_norm"], fused["ffn_norm"],
      fused["wqkv"], fused["wo"], fused["w13"], fused["w2"],
      fused["final_norm"], fused["wout"])

    return logits_pad[:, :, :VOCAB]           # (B, S, VOCAB)
    # TODO(synk): use_kv_cache=True path (returning k/v cache lists) not implemented;
    # this mirrors the prefill (use_kv_cache=False) forward, which returns logits.


# ---------------- pure-JAX reference (for a loose correctness check) ----------------
def reference_forward(params, tokens, atten_mask):
    B, T = tokens.shape
    if T != MAX_SEQ_LEN:
        tokens = jnp.pad(tokens, ((0, 0), (0, MAX_SEQ_LEN - T)))
    S = MAX_SEQ_LEN
    cos, sin = rope_tables(S, HEAD_DIM)

    def rms(v, w):
        return v * jax.lax.rsqrt(jnp.mean(v * v, -1, keepdims=True) + EPS) * w

    def rope(t):                              # (B, S, H, Dh)
        t1, t2 = jnp.split(t, 2, -1)
        c = cos[None, :, None, :]
        s = sin[None, :, None, :]
        return jnp.concatenate([t1 * c - t2 * s, t1 * s + t2 * c], -1)

    x = params["tok_emb"][tokens]             # (B, S, D)
    for L in params["layers"]:
        xn = rms(x, L["attn_norm"])
        q = (xn @ L["wq"]).reshape(B, S, N_HEADS, HEAD_DIM)
        k = (xn @ L["wk"]).reshape(B, S, N_HEADS, HEAD_DIM)
        v = (xn @ L["wv"]).reshape(B, S, N_HEADS, HEAD_DIM)
        q = rope(q)
        k = rope(k)
        s_ = jnp.einsum("bqhd,bkhd->bhqk", q, k) / (HEAD_DIM ** 0.5) + atten_mask
        p = jax.nn.softmax(s_, axis=-1)
        o = jnp.einsum("bhqk,bkhd->bqhd", p, v).reshape(B, S, DIM)
        x = x + o @ L["wo"]
        xn = rms(x, L["ffn_norm"])
        g = xn @ L["w1"]
        u = xn @ L["w3"]
        x = x + (jax.nn.silu(g) * u) @ L["w2"]
    x = rms(x, params["final_norm"])
    return x @ params["output"]


if __name__ == "__main__":
    key = jax.random.PRNGKey(0)
    pkey, tkey = jax.random.split(key)
    params = init_params(pkey)
    fused = fuse_params(params)

    # tokens shorter than max_seq_len to exercise the padding branch
    B, T = 2, 8
    tokens = jax.random.randint(tkey, (B, T), 0, VOCAB, dtype=jnp.int32)

    # causal additive attention mask, (max_seq_len, max_seq_len)
    idx = jnp.arange(MAX_SEQ_LEN)
    atten_mask = jnp.where(idx[None, :] <= idx[:, None], 0.0, NEG_INF).astype(jnp.float32)

    fwd = jax.jit(functools.partial(wrapped_llama_forward, fused))
    logits = fwd(tokens, atten_mask)
    jax.block_until_ready(logits)

    assert logits.shape == (B, MAX_SEQ_LEN, VOCAB)
    assert bool(jnp.all(jnp.isfinite(logits)))

    ref = reference_forward(params, tokens, atten_mask)
    max_err = float(jnp.max(jnp.abs(logits - ref)))
    assert max_err < 2e-2, f"mismatch vs reference: max abs err {max_err}"

    print("KERNEL_OK")
</pallas_src>

<mosaic_0001>
module attributes {stable_mosaic.version = 11 : i64} {
  func.func @_fused_llama_kernel(%arg0: i32, %arg1: memref<1x16x64xf32, #tpu.memory_space<vmem>>, %arg2: memref<16x16xf32, #tpu.memory_space<vmem>>, %arg3: memref<16x8xf32, #tpu.memory_space<vmem>>, %arg4: memref<16x8xf32, #tpu.memory_space<vmem>>, %arg5: memref<2x1x64xf32, #tpu.memory_space<vmem>>, %arg6: memref<2x1x64xf32, #tpu.memory_space<vmem>>, %arg7: memref<2x64x192xf32, #tpu.memory_space<vmem>>, %arg8: memref<2x64x64xf32, #tpu.memory_space<vmem>>, %arg9: memref<2x64x256xf32, #tpu.memory_space<vmem>>, %arg10: memref<2x128x64xf32, #tpu.memory_space<vmem>>, %arg11: memref<1x64xf32, #tpu.memory_space<vmem>>, %arg12: memref<64x128xf32, #tpu.memory_space<vmem>>, %arg13: memref<1x16x128xf32, #tpu.memory_space<vmem>>) attributes {dimension_semantics = [#tpu.dimension_semantics<parallel>], iteration_bounds = array<i64: 2>, scalar_prefetch = 0 : i64, scratch_operands = 0 : i64, tpu.core_type = #tpu.core_type<tc>, window_params = [{transform_indices = @transform_0, window_bounds = array<i64: 1, 16, 64>}, {pipeline_mode = #tpu.pipeline_mode<synchronous>, transform_indices = @transform_1, window_bounds = array<i64: 16, 16>}, {pipeline_mode = #tpu.pipeline_mode<synchronous>, transform_indices = @transform_2, window_bounds = array<i64: 16, 8>}, {pipeline_mode = #tpu.pipeline_mode<synchronous>, transform_indices = @transform_3, window_bounds = array<i64: 16, 8>}, {pipeline_mode = #tpu.pipeline_mode<synchronous>, transform_indices = @transform_4, window_bounds = array<i64: 2, 1, 64>}, {pipeline_mode = #tpu.pipeline_mode<synchronous>, transform_indices = @transform_5, window_bounds = array<i64: 2, 1, 64>}, {pipeline_mode = #tpu.pipeline_mode<synchronous>, transform_indices = @transform_6, window_bounds = array<i64: 2, 64, 192>}, {pipeline_mode = #tpu.pipeline_mode<synchronous>, transform_indices = @transform_7, window_bounds = array<i64: 2, 64, 64>}, {pipeline_mode = #tpu.pipeline_mode<synchronous>, transform_indices = @transform_8, window_bounds = array<i64: 2, 64, 256>}, {pipeline_mode = #tpu.pipeline_mode<synchronous>, transform_indices = @transform_9, window_bounds = array<i64: 2, 128, 64>}, {pipeline_mode = #tpu.pipeline_mode<synchronous>, transform_indices = @transform_10, window_bounds = array<i64: 1, 64>}, {pipeline_mode = #tpu.pipeline_mode<synchronous>, transform_indices = @transform_11, window_bounds = array<i64: 64, 128>}, {transform_indices = @transform_12, window_bounds = array<i64: 1, 16, 128>}]} {
    %c0 = arith.constant 0 : index
    %c0_0 = arith.constant 0 : index
    %c0_1 = arith.constant 0 : index
    %0 = vector.load %arg1[%c0, %c0_0, %c0_1] : memref<1x16x64xf32, #tpu.memory_space<vmem>>, vector<1x16x64xf32>
    %1 = vector.shape_cast %0 : vector<1x16x64xf32> to vector<16x64xf32>
    %c0_2 = arith.constant 0 : index
    %c0_3 = arith.constant 0 : index
    %2 = vector.load %arg2[%c0_2, %c0_3] : memref<16x16xf32, #tpu.memory_space<vmem>>, vector<16x16xf32>
    %c0_4 = arith.constant 0 : index
    %c0_5 = arith.constant 0 : index
    %3 = vector.load %arg3[%c0_4, %c0_5] : memref<16x8xf32, #tpu.memory_space<vmem>>, vector<16x8xf32>
    %c0_6 = arith.constant 0 : index
    %c0_7 = arith.constant 0 : index
    %4 = vector.load %arg4[%c0_6, %c0_7] : memref<16x8xf32, #tpu.memory_space<vmem>>, vector<16x8xf32>
    %c0_8 = arith.constant 0 : index
    %c0_9 = arith.constant 0 : index
    %c0_10 = arith.constant 0 : index
    %5 = vector.load %arg5[%c0_8, %c0_9, %c0_10] : memref<2x1x64xf32, #tpu.memory_space<vmem>>, vector<1x1x64xf32>
    %6 = vector.shape_cast %5 : vector<1x1x64xf32> to vector<1x64xf32>
    %7 = arith.mulf %1, %1 : vector<16x64xf32>
    %cst = arith.constant dense<0.000000e+00> : vector<16xf32>
    %8 = vector.multi_reduction <add>, %7, %cst [1] : vector<16x64xf32> to vector<16xf32>
    %9 = vector.shape_cast %8 : vector<16xf32> to vector<16x1xf32>
    %cst_11 = arith.constant 6.400000e+01 : f32
    %10 = vector.broadcast %cst_11 : f32 to vector<16x1xf32>
    %11 = arith.divf %9, %10 : vector<16x1xf32>
    %cst_12 = arith.constant 9.99999974E-6 : f32
    %12 = vector.broadcast %cst_12 : f32 to vector<16x1xf32>
    %13 = arith.addf %11, %12 : vector<16x1xf32>
    %14 = math.rsqrt %13 : vector<16x1xf32>
    %15 = vector.broadcast %14 : vector<16x1xf32> to vector<16x64xf32>
    %16 = arith.mulf %1, %15 : vector<16x64xf32>
    %17 = vector.broadcast %6 : vector<1x64xf32> to vector<16x64xf32>
    %18 = arith.mulf %16, %17 : vector<16x64xf32>
    %c0_13 = arith.constant 0 : index
    %c0_14 = arith.constant 0 : index
    %c0_15 = arith.constant 0 : index
    %19 = vector.load %arg7[%c0_13, %c0_14, %c0_15] : memref<2x64x192xf32, #tpu.memory_space<vmem>>, vector<1x64x192xf32>
    %20 = vector.shape_cast %19 : vector<1x64x192xf32> to vector<64x192xf32>
    %cst_16 = arith.constant dense<0.000000e+00> : vector<16x192xf32>
    %21 = tpu.matmul %18, %20, %cst_16 {dimension_numbers = #tpu.dot_dimension_numbers<[1], [0], [0], [1], [0, 0, 1, 1], [], []>} : vector<16x64xf32>, vector<64x192xf32>, vector<16x192xf32> -> vector<16x192xf32>
    %c0_17 = arith.constant 0 : index
    %c0_18 = arith.constant 0 : index
    %c0_19 = arith.constant 0 : index
    %22 = vector.load %arg8[%c0_17, %c0_18, %c0_19] : memref<2x64x64xf32, #tpu.memory_space<vmem>>, vector<1x64x64xf32>
    %23 = vector.shape_cast %22 : vector<1x64x64xf32> to vector<64x64xf32>
    %cst_20 = arith.constant 0.000000e+00 : f32
    %24 = vector.broadcast %cst_20 : f32 to vector<16x64xf32>
    %25 = vector.extract_strided_slice %21 {offsets = [0, 0], sizes = [16, 16], strides = [1, 1]} : vector<16x192xf32> to vector<16x16xf32>
    %26 = vector.extract_strided_slice %25 {offsets = [0, 0], sizes = [16, 8], strides = [1, 1]} : vector<16x16xf32> to vector<16x8xf32>
    %27 = vector.extract_strided_slice %25 {offsets = [0, 8], sizes = [16, 8], strides = [1, 1]} : vector<16x16xf32> to vector<16x8xf32>
    %28 = arith.mulf %26, %3 : vector<16x8xf32>
    %29 = arith.mulf %27, %4 : vector<16x8xf32>
    %30 = arith.subf %28, %29 : vector<16x8xf32>
    %31 = arith.mulf %26, %4 : vector<16x8xf32>
    %32 = arith.mulf %27, %3 : vector<16x8xf32>
    %33 = arith.addf %31, %32 : vector<16x8xf32>
    %34 = tpu.concatenate %30, %33 in 1 : vector<16x8xf32>, vector<16x8xf32> -> vector<16x16xf32>
    %35 = vector.extract_strided_slice %21 {offsets = [0, 64], sizes = [16, 16], strides = [1, 1]} : vector<16x192xf32> to vector<16x16xf32>
    %36 = vector.extract_strided_slice %35 {offsets = [0, 0], sizes = [16, 8], strides = [1, 1]} : vector<16x16xf32> to vector<16x8xf32>
    %37 = vector.extract_strided_slice %35 {offsets = [0, 8], sizes = [16, 8], strides = [1, 1]} : vector<16x16xf32> to vector<16x8xf32>
    %38 = arith.mulf %36, %3 : vector<16x8xf32>
    %39 = arith.mulf %37, %4 : vector<16x8xf32>
    %40 = arith.subf %38, %39 : vector<16x8xf32>
    %41 = arith.mulf %36, %4 : vector<16x8xf32>
    %42 = arith.mulf %37, %3 : vector<16x8xf32>
    %43 = arith.addf %41, %42 : vector<16x8xf32>
    %44 = tpu.concatenate %40, %43 in 1 : vector<16x8xf32>, vector<16x8xf32> -> vector<16x16xf32>
    %45 = vector.extract_strided_slice %21 {offsets = [0, 128], sizes = [16, 16], strides = [1, 1]} : vector<16x192xf32> to vector<16x16xf32>
    %46 = tpu.transpose %44, [1, 0] : vector<16x16xf32> -> vector<16x16xf32>
    %cst_21 = arith.constant dense<0.000000e+00> : vector<16x16xf32>
    %47 = tpu.matmul %34, %46, %cst_21 {dimension_numbers = #tpu.dot_dimension_numbers<[1], [0], [0], [1], [0, 0, 1, 1], [], []>} : vector<16x16xf32>, vector<16x16xf32>, vector<16x16xf32> -> vector<16x16xf32>
    %cst_22 = arith.constant 2.500000e-01 : f32
    %48 = vector.broadcast %cst_22 : f32 to vector<16x16xf32>
    %49 = arith.mulf %47, %48 : vector<16x16xf32>
    %50 = arith.addf %49, %2 : vector<16x16xf32>
    %cst_23 = arith.constant dense<0xFF800000> : vector<16xf32>
    %51 = vector.multi_reduction <maximumf>, %50, %cst_23 [1] : vector<16x16xf32> to vector<16xf32>
    %52 = vector.shape_cast %51 : vector<16xf32> to vector<16x1xf32>
    %53 = vector.broadcast %52 : vector<16x1xf32> to vector<16x16xf32>
    %54 = arith.subf %50, %53 : vector<16x16xf32>
    %55 = math.exp %54 : vector<16x16xf32>
    %cst_24 = arith.constant dense<0.000000e+00> : vector<16xf32>
    %56 = vector.multi_reduction <add>, %55, %cst_24 [1] : vector<16x16xf32> to vector<16xf32>
    %57 = vector.shape_cast %56 : vector<16xf32> to vector<16x1xf32>
    %58 = tpu.reciprocal %57 {approx = true} : vector<16x1xf32> -> vector<16x1xf32>
    %59 = vector.broadcast %58 : vector<16x1xf32> to vector<16x16xf32>
    %60 = arith.mulf %55, %59 : vector<16x16xf32>
    %cst_25 = arith.constant dense<0.000000e+00> : vector<16x16xf32>
    %61 = tpu.matmul %60, %45, %cst_25 {dimension_numbers = #tpu.dot_dimension_numbers<[1], [0], [0], [1], [0, 0, 1, 1], [], []>} : vector<16x16xf32>, vector<16x16xf32>, vector<16x16xf32> -> vector<16x16xf32>
    %62 = vector.extract_strided_slice %23 {offsets = [0, 0], sizes = [16, 64], strides = [1, 1]} : vector<64x64xf32> to vector<16x64xf32>
    %cst_26 = arith.constant dense<0.000000e+00> : vector<16x64xf32>
    %63 = tpu.matmul %61, %62, %cst_26 {dimension_numbers = #tpu.dot_dimension_numbers<[1], [0], [0], [1], [0, 0, 1, 1], [], []>} : vector<16x16xf32>, vector<16x64xf32>, vector<16x64xf32> -> vector<16x64xf32>
    %64 = arith.addf %24, %63 : vector<16x64xf32>
    %65 = vector.extract_strided_slice %21 {offsets = [0, 16], sizes = [16, 16], strides = [1, 1]} : vector<16x192xf32> to vector<16x16xf32>
    %66 = vector.extract_strided_slice %65 {offsets = [0, 0], sizes = [16, 8], strides = [1, 1]} : vector<16x16xf32> to vector<16x8xf32>
    %67 = vector.extract_strided_slice %65 {offsets = [0, 8], sizes = [16, 8], strides = [1, 1]} : vector<16x16xf32> to vector<16x8xf32>
    %68 = arith.mulf %66, %3 : vector<16x8xf32>
    %69 = arith.mulf %67, %4 : vector<16x8xf32>
    %70 = arith.subf %68, %69 : vector<16x8xf32>
    %71 = arith.mulf %66, %4 : vector<16x8xf32>
    %72 = arith.mulf %67, %3 : vector<16x8xf32>
    %73 = arith.addf %71, %72 : vector<16x8xf32>
    %74 = tpu.concatenate %70, %73 in 1 : vector<16x8xf32>, vector<16x8xf32> -> vector<16x16xf32>
    %75 = vector.extract_strided_slice %21 {offsets = [0, 80], sizes = [16, 16], strides = [1, 1]} : vector<16x192xf32> to vector<16x16xf32>
    %76 = vector.extract_strided_slice %75 {offsets = [0, 0], sizes = [16, 8], strides = [1, 1]} : vector<16x16xf32> to vector<16x8xf32>
    %77 = vector.extract_strided_slice %75 {offsets = [0, 8], sizes = [16, 8], strides = [1, 1]} : vector<16x16xf32> to vector<16x8xf32>
    %78 = arith.mulf %76, %3 : vector<16x8xf32>
    %79 = arith.mulf %77, %4 : vector<16x8xf32>
    %80 = arith.subf %78, %79 : vector<16x8xf32>
    %81 = arith.mulf %76, %4 : vector<16x8xf32>
    %82 = arith.mulf %77, %3 : vector<16x8xf32>
    %83 = arith.addf %81, %82 : vector<16x8xf32>
    %84 = tpu.concatenate %80, %83 in 1 : vector<16x8xf32>, vector<16x8xf32> -> vector<16x16xf32>
    %85 = vector.extract_strided_slice %21 {offsets = [0, 144], sizes = [16, 16], strides = [1, 1]} : vector<16x192xf32> to vector<16x16xf32>
    %86 = tpu.transpose %84, [1, 0] : vector<16x16xf32> -> vector<16x16xf32>
    %cst_27 = arith.constant dense<0.000000e+00> : vector<16x16xf32>
    %87 = tpu.matmul %74, %86, %cst_27 {dimension_numbers = #tpu.dot_dimension_numbers<[1], [0], [0], [1], [0, 0, 1, 1], [], []>} : vector<16x16xf32>, vector<16x16xf32>, vector<16x16xf32> -> vector<16x16xf32>
    %cst_28 = arith.constant 2.500000e-01 : f32
    %88 = vector.broadcast %cst_28 : f32 to vector<16x16xf32>
    %89 = arith.mulf %87, %88 : vector<16x16xf32>
    %90 = arith.addf %89, %2 : vector<16x16xf32>
    %cst_29 = arith.constant dense<0xFF800000> : vector<16xf32>
    %91 = vector.multi_reduction <maximumf>, %90, %cst_29 [1] : vector<16x16xf32> to vector<16xf32>
    %92 = vector.shape_cast %91 : vector<16xf32> to vector<16x1xf32>
    %93 = vector.broadcast %92 : vector<16x1xf32> to vector<16x16xf32>
    %94 = arith.subf %90, %93 : vector<16x16xf32>
    %95 = math.exp %94 : vector<16x16xf32>
    %cst_30 = arith.constant dense<0.000000e+00> : vector<16xf32>
    %96 = vector.multi_reduction <add>, %95, %cst_30 [1] : vector<16x16xf32> to vector<16xf32>
    %97 = vector.shape_cast %96 : vector<16xf32> to vector<16x1xf32>
    %98 = tpu.reciprocal %97 {approx = true} : vector<16x1xf32> -> vector<16x1xf32>
    %99 = vector.broadcast %98 : vector<16x1xf32> to vector<16x16xf32>
    %100 = arith.mulf %95, %99 : vector<16x16xf32>
    %cst_31 = arith.constant dense<0.000000e+00> : vector<16x16xf32>
    %101 = tpu.matmul %100, %85, %cst_31 {dimension_numbers = #tpu.dot_dimension_numbers<[1], [0], [0], [1], [0, 0, 1, 1], [], []>} : vector<16x16xf32>, vector<16x16xf32>, vector<16x16xf32> -> vector<16x16xf32>
    %102 = vector.extract_strided_slice %23 {offsets = [16, 0], sizes = [16, 64], strides = [1, 1]} : vector<64x64xf32> to vector<16x64xf32>
    %cst_32 = arith.constant dense<0.000000e+00> : vector<16x64xf32>
    %103 = tpu.matmul %101, %102, %cst_32 {dimension_numbers = #tpu.dot_dimension_numbers<[1], [0], [0], [1], [0, 0, 1, 1], [], []>} : vector<16x16xf32>, vector<16x64xf32>, vector<16x64xf32> -> vector<16x64xf32>
    %104 = arith.addf %64, %103 : vector<16x64xf32>
    %105 = vector.extract_strided_slice %21 {offsets = [0, 32], sizes = [16, 16], strides = [1, 1]} : vector<16x192xf32> to vector<16x16xf32>
    %106 = vector.extract_strided_slice %105 {offsets = [0, 0], sizes = [16, 8], strides = [1, 1]} : vector<16x16xf32> to vector<16x8xf32>
    %107 = vector.extract_strided_slice %105 {offsets = [0, 8], sizes = [16, 8], strides = [1, 1]} : vector<16x16xf32> to vector<16x8xf32>
    %108 = arith.mulf %106, %3 : vector<16x8xf32>
    %109 = arith.mulf %107, %4 : vector<16x8xf32>
    %110 = arith.subf %108, %109 : vector<16x8xf32>
    %111 = arith.mulf %106, %4 : vector<16x8xf32>
    %112 = arith.mulf %107, %3 : vector<16x8xf32>
    %113 = arith.addf %111, %112 : vector<16x8xf32>
    %114 = tpu.concatenate %110, %113 in 1 : vector<16x8xf32>, vector<16x8xf32> -> vector<16x16xf32>
    %115 = vector.extract_strided_slice %21 {offsets = [0, 96], sizes = [16, 16], strides = [1, 1]} : vector<16x192xf32> to vector<16x16xf32>
    %116 = vector.extract_strided_slice %115 {offsets = [0, 0], sizes = [16, 8], strides = [1, 1]} : vector<16x16xf32> to vector<16x8xf32>
    %117 = vector.extract_strided_slice %115 {offsets = [0, 8], sizes = [16, 8], strides = [1, 1]} : vector<16x16xf32> to vector<16x8xf32>
    %118 = arith.mulf %116, %3 : vector<16x8xf32>
    %119 = arith.mulf %117, %4 : vector<16x8xf32>
    %120 = arith.subf %118, %119 : vector<16x8xf32>
    %121 = arith.mulf %116, %4 : vector<16x8xf32>
    %122 = arith.mulf %117, %3 : vector<16x8xf32>
    %123 = arith.addf %121, %122 : vector<16x8xf32>
    %124 = tpu.concatenate %120, %123 in 1 : vector<16x8xf32>, vector<16x8xf32> -> vector<16x16xf32>
    %125 = vector.extract_strided_slice %21 {offsets = [0, 160], sizes = [16, 16], strides = [1, 1]} : vector<16x192xf32> to vector<16x16xf32>
    %126 = tpu.transpose %124, [1, 0] : vector<16x16xf32> -> vector<16x16xf32>
    %cst_33 = arith.constant dense<0.000000e+00> : vector<16x16xf32>
    %127 = tpu.matmul %114, %126, %cst_33 {dimension_numbers = #tpu.dot_dimension_numbers<[1], [0], [0], [1], [0, 0, 1, 1], [], []>} : vector<16x16xf32>, vector<16x16xf32>, vector<16x16xf32> -> vector<16x16xf32>
    %cst_34 = arith.constant 2.500000e-01 : f32
    %128 = vector.broadcast %cst_34 : f32 to vector<16x16xf32>
    %129 = arith.mulf %127, %128 : vector<16x16xf32>
    %130 = arith.addf %129, %2 : vector<16x16xf32>
    %cst_35 = arith.constant dense<0xFF800000> : vector<16xf32>
    %131 = vector.multi_reduction <maximumf>, %130, %cst_35 [1] : vector<16x16xf32> to vector<16xf32>
    %132 = vector.shape_cast %131 : vector<16xf32> to vector<16x1xf32>
    %133 = vector.broadcast %132 : vector<16x1xf32> to vector<16x16xf32>
    %134 = arith.subf %130, %133 : vector<16x16xf32>
    %135 = math.exp %134 : vector<16x16xf32>
    %cst_36 = arith.constant dense<0.000000e+00> : vector<16xf32>
    %136 = vector.multi_reduction <add>, %135, %cst_36 [1] : vector<16x16xf32> to vector<16xf32>
    %137 = vector.shape_cast %136 : vector<16xf32> to vector<16x1xf32>
    %138 = tpu.reciprocal %137 {approx = true} : vector<16x1xf32> -> vector<16x1xf32>
    %139 = vector.broadcast %138 : vector<16x1xf32> to vector<16x16xf32>
    %140 = arith.mulf %135, %139 : vector<16x16xf32>
    %cst_37 = arith.constant dense<0.000000e+00> : vector<16x16xf32>
    %141 = tpu.matmul %140, %125, %cst_37 {dimension_numbers = #tpu.dot_dimension_numbers<[1], [0], [0], [1], [0, 0, 1, 1], [], []>} : vector<16x16xf32>, vector<16x16xf32>, vector<16x16xf32> -> vector<16x16xf32>
    %142 = vector.extract_strided_slice %23 {offsets = [32, 0], sizes = [16, 64], strides = [1, 1]} : vector<64x64xf32> to vector<16x64xf32>
    %cst_38 = arith.constant dense<0.000000e+00> : vector<16x64xf32>
    %143 = tpu.matmul %141, %142, %cst_38 {dimension_numbers = #tpu.dot_dimension_numbers<[1], [0], [0], [1], [0, 0, 1, 1], [], []>} : vector<16x16xf32>, vector<16x64xf32>, vector<16x64xf32> -> vector<16x64xf32>
    %144 = arith.addf %104, %143 : vector<16x64xf32>
    %145 = vector.extract_strided_slice %21 {offsets = [0, 48], sizes = [16, 16], strides = [1, 1]} : vector<16x192xf32> to vector<16x16xf32>
    %146 = vector.extract_strided_slice %145 {offsets = [0, 0], sizes = [16, 8], strides = [1, 1]} : vector<16x16xf32> to vector<16x8xf32>
    %147 = vector.extract_strided_slice %145 {offsets = [0, 8], sizes = [16, 8], strides = [1, 1]} : vector<16x16xf32> to vector<16x8xf32>
    %148 = arith.mulf %146, %3 : vector<16x8xf32>
    %149 = arith.mulf %147, %4 : vector<16x8xf32>
    %150 = arith.subf %148, %149 : vector<16x8xf32>
    %151 = arith.mulf %146, %4 : vector<16x8xf32>
    %152 = arith.mulf %147, %3 : vector<16x8xf32>
    %153 = arith.addf %151, %152 : vector<16x8xf32>
    %154 = tpu.concatenate %150, %153 in 1 : vector<16x8xf32>, vector<16x8xf32> -> vector<16x16xf32>
    %155 = vector.extract_strided_slice %21 {offsets = [0, 112], sizes = [16, 16], strides = [1, 1]} : vector<16x192xf32> to vector<16x16xf32>
    %156 = vector.extract_strided_slice %155 {offsets = [0, 0], sizes = [16, 8], strides = [1, 1]} : vector<16x16xf32> to vector<16x8xf32>
    %157 = vector.extract_strided_slice %155 {offsets = [0, 8], sizes = [16, 8], strides = [1, 1]} : vector<16x16xf32> to vector<16x8xf32>
    %158 = arith.mulf %156, %3 : vector<16x8xf32>
    %159 = arith.mulf %157, %4 : vector<16x8xf32>
    %160 = arith.subf %158, %159 : vector<16x8xf32>
    %161 = arith.mulf %156, %4 : vector<16x8xf32>
    %162 = arith.mulf %157, %3 : vector<16x8xf32>
    %163 = arith.addf %161, %162 : vector<16x8xf32>
    %164 = tpu.concatenate %160, %163 in 1 : vector<16x8xf32>, vector<16x8xf32> -> vector<16x16xf32>
    %165 = vector.extract_strided_slice %21 {offsets = [0, 176], sizes = [16, 16], strides = [1, 1]} : vector<16x192xf32> to vector<16x16xf32>
    %166 = tpu.transpose %164, [1, 0] : vector<16x16xf32> -> vector<16x16xf32>
    %cst_39 = arith.constant dense<0.000000e+00> : vector<16x16xf32>
    %167 = tpu.matmul %154, %166, %cst_39 {dimension_numbers = #tpu.dot_dimension_numbers<[1], [0], [0], [1], [0, 0, 1, 1], [], []>} : vector<16x16xf32>, vector<16x16xf32>, vector<16x16xf32> -> vector<16x16xf32>
    %cst_40 = arith.constant 2.500000e-01 : f32
    %168 = vector.broadcast %cst_40 : f32 to vector<16x16xf32>
    %169 = arith.mulf %167, %168 : vector<16x16xf32>
    %170 = arith.addf %169, %2 : vector<16x16xf32>
    %cst_41 = arith.constant dense<0xFF800000> : vector<16xf32>
    %171 = vector.multi_reduction <maximumf>, %170, %cst_41 [1] : vector<16x16xf32> to vector<16xf32>
    %172 = vector.shape_cast %171 : vector<16xf32> to vector<16x1xf32>
    %173 = vector.broadcast %172 : vector<16x1xf32> to vector<16x16xf32>
    %174 = arith.subf %170, %173 : vector<16x16xf32>
    %175 = math.exp %174 : vector<16x16xf32>
    %cst_42 = arith.constant dense<0.000000e+00> : vector<16xf32>
    %176 = vector.multi_reduction <add>, %175, %cst_42 [1] : vector<16x16xf32> to vector<16xf32>
    %177 = vector.shape_cast %176 : vector<16xf32> to vector<16x1xf32>
    %178 = tpu.reciprocal %177 {approx = true} : vector<16x1xf32> -> vector<16x1xf32>
    %179 = vector.broadcast %178 : vector<16x1xf32> to vector<16x16xf32>
    %180 = arith.mulf %175, %179 : vector<16x16xf32>
    %cst_43 = arith.constant dense<0.000000e+00> : vector<16x16xf32>
    %181 = tpu.matmul %180, %165, %cst_43 {dimension_numbers = #tpu.dot_dimension_numbers<[1], [0], [0], [1], [0, 0, 1, 1], [], []>} : vector<16x16xf32>, vector<16x16xf32>, vector<16x16xf32> -> vector<16x16xf32>
    %182 = vector.extract_strided_slice %23 {offsets = [48, 0], sizes = [16, 64], strides = [1, 1]} : vector<64x64xf32> to vector<16x64xf32>
    %cst_44 = arith.constant dense<0.000000e+00> : vector<16x64xf32>
    %183 = tpu.matmul %181, %182, %cst_44 {dimension_numbers = #tpu.dot_dimension_numbers<[1], [0], [0], [1], [0, 0, 1, 1], [], []>} : vector<16x16xf32>, vector<16x64xf32>, vector<16x64xf32> -> vector<16x64xf32>
    %184 = arith.addf %144, %183 : vector<16x64xf32>
    %185 = arith.addf %1, %184 : vector<16x64xf32>
    %c0_45 = arith.constant 0 : index
    %c0_46 = arith.constant 0 : index
    %c0_47 = arith.constant 0 : index
    %186 = vector.load %arg6[%c0_45, %c0_46, %c0_47] : memref<2x1x64xf32, #tpu.memory_space<vmem>>, vector<1x1x64xf32>
    %187 = vector.shape_cast %186 : vector<1x1x64xf32> to vector<1x64xf32>
    %188 = arith.mulf %185, %185 : vector<16x64xf32>
    %cst_48 = arith.constant dense<0.000000e+00> : vector<16xf32>
    %189 = vector.multi_reduction <add>, %188, %cst_48 [1] : vector<16x64xf32> to vector<16xf32>
    %190 = vector.shape_cast %189 : vector<16xf32> to vector<16x1xf32>
    %cst_49 = arith.constant 6.400000e+01 : f32
    %191 = vector.broadcast %cst_49 : f32 to vector<16x1xf32>
    %192 = arith.divf %190, %191 : vector<16x1xf32>
    %cst_50 = arith.constant 9.99999974E-6 : f32
    %193 = vector.broadcast %cst_50 : f32 to vector<16x1xf32>
    %194 = arith.addf %192, %193 : vector<16x1xf32>
    %195 = math.rsqrt %194 : vector<16x1xf32>
    %196 = vector.broadcast %195 : vector<16x1xf32> to vector<16x64xf32>
    %197 = arith.mulf %185, %196 : vector<16x64xf32>
    %198 = vector.broadcast %187 : vector<1x64xf32> to vector<16x64xf32>
    %199 = arith.mulf %197, %198 : vector<16x64xf32>
    %c0_51 = arith.constant 0 : index
    %c0_52 = arith.constant 0 : index
    %c0_53 = arith.constant 0 : index
    %200 = vector.load %arg9[%c0_51, %c0_52, %c0_53] : memref<2x64x256xf32, #tpu.memory_space<vmem>>, vector<1x64x256xf32>
    %201 = vector.shape_cast %200 : vector<1x64x256xf32> to vector<64x256xf32>
    %cst_54 = arith.constant dense<0.000000e+00> : vector<16x256xf32>
    %202 = tpu.matmul %199, %201, %cst_54 {dimension_numbers = #tpu.dot_dimension_numbers<[1], [0], [0], [1], [0, 0, 1, 1], [], []>} : vector<16x64xf32>, vector<64x256xf32>, vector<16x256xf32> -> vector<16x256xf32>
    %203 = vector.extract_strided_slice %202 {offsets = [0, 0], sizes = [16, 128], strides = [1, 1]} : vector<16x256xf32> to vector<16x128xf32>
    %204 = vector.extract_strided_slice %202 {offsets = [0, 128], sizes = [16, 128], strides = [1, 1]} : vector<16x256xf32> to vector<16x128xf32>
    %cst_55 = arith.constant 0.000000e+00 : f32
    %205 = vector.broadcast %cst_55 : f32 to vector<16x128xf32>
    %206 = arith.subf %205, %203 : vector<16x128xf32>
    %207 = math.exp %206 : vector<16x128xf32>
    %cst_56 = arith.constant 1.000000e+00 : f32
    %208 = vector.broadcast %cst_56 : f32 to vector<16x128xf32>
    %209 = arith.addf %208, %207 : vector<16x128xf32>
    %210 = tpu.reciprocal %209 {approx = true} : vector<16x128xf32> -> vector<16x128xf32>
    %211 = arith.mulf %203, %210 : vector<16x128xf32>
    %212 = arith.mulf %211, %204 : vector<16x128xf32>
    %c0_57 = arith.constant 0 : index
    %c0_58 = arith.constant 0 : index
    %c0_59 = arith.constant 0 : index
    %213 = vector.load %arg10[%c0_57, %c0_58, %c0_59] : memref<2x128x64xf32, #tpu.memory_space<vmem>>, vector<1x128x64xf32>
    %214 = vector.shape_cast %213 : vector<1x128x64xf32> to vector<128x64xf32>
    %cst_60 = arith.constant dense<0.000000e+00> : vector<16x64xf32>
    %215 = tpu.matmul %212, %214, %cst_60 {dimension_numbers = #tpu.dot_dimension_numbers<[1], [0], [0], [1], [0, 0, 1, 1], [], []>} : vector<16x128xf32>, vector<128x64xf32>, vector<16x64xf32> -> vector<16x64xf32>
    %216 = arith.addf %185, %215 : vector<16x64xf32>
    %c1 = arith.constant 1 : index
    %c0_61 = arith.constant 0 : index
    %c0_62 = arith.constant 0 : index
    %217 = vector.load %arg5[%c1, %c0_61, %c0_62] : memref<2x1x64xf32, #tpu.memory_space<vmem>>, vector<1x1x64xf32>
    %218 = vector.shape_cast %217 : vector<1x1x64xf32> to vector<1x64xf32>
    %219 = arith.mulf %216, %216 : vector<16x64xf32>
    %cst_63 = arith.constant dense<0.000000e+00> : vector<16xf32>
    %220 = vector.multi_reduction <add>, %219, %cst_63 [1] : vector<16x64xf32> to vector<16xf32>
    %221 = vector.shape_cast %220 : vector<16xf32> to vector<16x1xf32>
    %cst_64 = arith.constant 6.400000e+01 : f32
    %222 = vector.broadcast %cst_64 : f32 to vector<16x1xf32>
    %223 = arith.divf %221, %222 : vector<16x1xf32>
    %cst_65 = arith.constant 9.99999974E-6 : f32
    %224 = vector.broadcast %cst_65 : f32 to vector<16x1xf32>
    %225 = arith.addf %223, %224 : vector<16x1xf32>
    %226 = math.rsqrt %225 : vector<16x1xf32>
    %227 = vector.broadcast %226 : vector<16x1xf32> to vector<16x64xf32>
    %228 = arith.mulf %216, %227 : vector<16x64xf32>
    %229 = vector.broadcast %218 : vector<1x64xf32> to vector<16x64xf32>
    %230 = arith.mulf %228, %229 : vector<16x64xf32>
    %c1_66 = arith.constant 1 : index
    %c0_67 = arith.constant 0 : index
    %c0_68 = arith.constant 0 : index
    %231 = vector.load %arg7[%c1_66, %c0_67, %c0_68] : memref<2x64x192xf32, #tpu.memory_space<vmem>>, vector<1x64x192xf32>
    %232 = vector.shape_cast %231 : vector<1x64x192xf32> to vector<64x192xf32>
    %cst_69 = arith.constant dense<0.000000e+00> : vector<16x192xf32>
    %233 = tpu.matmul %230, %232, %cst_69 {dimension_numbers = #tpu.dot_dimension_numbers<[1], [0], [0], [1], [0, 0, 1, 1], [], []>} : vector<16x64xf32>, vector<64x192xf32>, vector<16x192xf32> -> vector<16x192xf32>
    %c1_70 = arith.constant 1 : index
    %c0_71 = arith.constant 0 : index
    %c0_72 = arith.constant 0 : index
    %234 = vector.load %arg8[%c1_70, %c0_71, %c0_72] : memref<2x64x64xf32, #tpu.memory_space<vmem>>, vector<1x64x64xf32>
    %235 = vector.shape_cast %234 : vector<1x64x64xf32> to vector<64x64xf32>
    %cst_73 = arith.constant 0.000000e+00 : f32
    %236 = vector.broadcast %cst_73 : f32 to vector<16x64xf32>
    %237 = vector.extract_strided_slice %233 {offsets = [0, 0], sizes = [16, 16], strides = [1, 1]} : vector<16x192xf32> to vector<16x16xf32>
    %238 = vector.extract_strided_slice %237 {offsets = [0, 0], sizes = [16, 8], strides = [1, 1]} : vector<16x16xf32> to vector<16x8xf32>
    %239 = vector.extract_strided_slice %237 {offsets = [0, 8], sizes = [16, 8], strides = [1, 1]} : vector<16x16xf32> to vector<16x8xf32>
    %240 = arith.mulf %238, %3 : vector<16x8xf32>
    %241 = arith.mulf %239, %4 : vector<16x8xf32>
    %242 = arith.subf %240, %241 : vector<16x8xf32>
    %243 = arith.mulf %238, %4 : vector<16x8xf32>
    %244 = arith.mulf %239, %3 : vector<16x8xf32>
    %245 = arith.addf %243, %244 : vector<16x8xf32>
    %246 = tpu.concatenate %242, %245 in 1 : vector<16x8xf32>, vector<16x8xf32> -> vector<16x16xf32>
    %247 = vector.extract_strided_slice %233 {offsets = [0, 64], sizes = [16, 16], strides = [1, 1]} : vector<16x192xf32> to vector<16x16xf32>
    %248 = vector.extract_strided_slice %247 {offsets = [0, 0], sizes = [16, 8], strides = [1, 1]} : vector<16x16xf32> to vector<16x8xf32>
    %249 = vector.extract_strided_slice %247 {offsets = [0, 8], sizes = [16, 8], strides = [1, 1]} : vector<16x16xf32> to vector<16x8xf32>
    %250 = arith.mulf %248, %3 : vector<16x8xf32>
    %251 = arith.mulf %249, %4 : vector<16x8xf32>
    %252 = arith.subf %250, %251 : vector<16x8xf32>
    %253 = arith.mulf %248, %4 : vector<16x8xf32>
    %254 = arith.mulf %249, %3 : vector<16x8xf32>
    %255 = arith.addf %253, %254 : vector<16x8xf32>
    %256 = tpu.concatenate %252, %255 in 1 : vector<16x8xf32>, vector<16x8xf32> -> vector<16x16xf32>
    %257 = vector.extract_strided_slice %233 {offsets = [0, 128], sizes = [16, 16], strides = [1, 1]} : vector<16x192xf32> to vector<16x16xf32>
    %258 = tpu.transpose %256, [1, 0] : vector<16x16xf32> -> vector<16x16xf32>
    %cst_74 = arith.constant dense<0.000000e+00> : vector<16x16xf32>
    %259 = tpu.matmul %246, %258, %cst_74 {dimension_numbers = #tpu.dot_dimension_numbers<[1], [0], [0], [1], [0, 0, 1, 1], [], []>} : vector<16x16xf32>, vector<16x16xf32>, vector<16x16xf32> -> vector<16x16xf32>
    %cst_75 = arith.constant 2.500000e-01 : f32
    %260 = vector.broadcast %cst_75 : f32 to vector<16x16xf32>
    %261 = arith.mulf %259, %260 : vector<16x16xf32>
    %262 = arith.addf %261, %2 : vector<16x16xf32>
    %cst_76 = arith.constant dense<0xFF800000> : vector<16xf32>
    %263 = vector.multi_reduction <maximumf>, %262, %cst_76 [1] : vector<16x16xf32> to vector<16xf32>
    %264 = vector.shape_cast %263 : vector<16xf32> to vector<16x1xf32>
    %265 = vector.broadcast %264 : vector<16x1xf32> to vector<16x16xf32>
    %266 = arith.subf %262, %265 : vector<16x16xf32>
    %267 = math.exp %266 : vector<16x16xf32>
    %cst_77 = arith.constant dense<0.000000e+00> : vector<16xf32>
    %268 = vector.multi_reduction <add>, %267, %cst_77 [1] : vector<16x16xf32> to vector<16xf32>
    %269 = vector.shape_cast %268 : vector<16xf32> to vector<16x1xf32>
    %270 = tpu.reciprocal %269 {approx = true} : vector<16x1xf32> -> vector<16x1xf32>
    %271 = vector.broadcast %270 : vector<16x1xf32> to vector<16x16xf32>
    %272 = arith.mulf %267, %271 : vector<16x16xf32>
    %cst_78 = arith.constant dense<0.000000e+00> : vector<16x16xf32>
    %273 = tpu.matmul %272, %257, %cst_78 {dimension_numbers = #tpu.dot_dimension_numbers<[1], [0], [0], [1], [0, 0, 1, 1], [], []>} : vector<16x16xf32>, vector<16x16xf32>, vector<16x16xf32> -> vector<16x16xf32>
    %274 = vector.extract_strided_slice %235 {offsets = [0, 0], sizes = [16, 64], strides = [1, 1]} : vector<64x64xf32> to vector<16x64xf32>
    %cst_79 = arith.constant dense<0.000000e+00> : vector<16x64xf32>
    %275 = tpu.matmul %273, %274, %cst_79 {dimension_numbers = #tpu.dot_dimension_numbers<[1], [0], [0], [1], [0, 0, 1, 1], [], []>} : vector<16x16xf32>, vector<16x64xf32>, vector<16x64xf32> -> vector<16x64xf32>
    %276 = arith.addf %236, %275 : vector<16x64xf32>
    %277 = vector.extract_strided_slice %233 {offsets = [0, 16], sizes = [16, 16], strides = [1, 1]} : vector<16x192xf32> to vector<16x16xf32>
    %278 = vector.extract_strided_slice %277 {offsets = [0, 0], sizes = [16, 8], strides = [1, 1]} : vector<16x16xf32> to vector<16x8xf32>
    %279 = vector.extract_strided_slice %277 {offsets = [0, 8], sizes = [16, 8], strides = [1, 1]} : vector<16x16xf32> to vector<16x8xf32>
    %280 = arith.mulf %278, %3 : vector<16x8xf32>
    %281 = arith.mulf %279, %4 : vector<16x8xf32>
    %282 = arith.subf %280, %281 : vector<16x8xf32>
    %283 = arith.mulf %278, %4 : vector<16x8xf32>
    %284 = arith.mulf %279, %3 : vector<16x8xf32>
    %285 = arith.addf %283, %284 : vector<16x8xf32>
    %286 = tpu.concatenate %282, %285 in 1 : vector<16x8xf32>, vector<16x8xf32> -> vector<16x16xf32>
    %287 = vector.extract_strided_slice %233 {offsets = [0, 80], sizes = [16, 16], strides = [1, 1]} : vector<16x192xf32> to vector<16x16xf32>
    %288 = vector.extract_strided_slice %287 {offsets = [0, 0], sizes = [16, 8], strides = [1, 1]} : vector<16x16xf32> to vector<16x8xf32>
    %289 = vector.extract_strided_slice %287 {offsets = [0, 8], sizes = [16, 8], strides = [1, 1]} : vector<16x16xf32> to vector<16x8xf32>
    %290 = arith.mulf %288, %3 : vector<16x8xf32>
    %291 = arith.mulf %289, %4 : vector<16x8xf32>
    %292 = arith.subf %290, %291 : vector<16x8xf32>
    %293 = arith.mulf %288, %4 : vector<16x8xf32>
    %294 = arith.mulf %289, %3 : vector<16x8xf32>
    %295 = arith.addf %293, %294 : vector<16x8xf32>
    %296 = tpu.concatenate %292, %295 in 1 : vector<16x8xf32>, vector<16x8xf32> -> vector<16x16xf32>
    %297 = vector.extract_strided_slice %233 {offsets = [0, 144], sizes = [16, 16], strides = [1, 1]} : vector<16x192xf32> to vector<16x16xf32>
    %298 = tpu.transpose %296, [1, 0] : vector<16x16xf32> -> vector<16x16xf32>
    %cst_80 = arith.constant dense<0.000000e+00> : vector<16x16xf32>
    %299 = tpu.matmul %286, %298, %cst_80 {dimension_numbers = #tpu.dot_dimension_numbers<[1], [0], [0], [1], [0, 0, 1, 1], [], []>} : vector<16x16xf32>, vector<16x16xf32>, vector<16x16xf32> -> vector<16x16xf32>
    %cst_81 = arith.constant 2.500000e-01 : f32
    %300 = vector.broadcast %cst_81 : f32 to vector<16x16xf32>
    %301 = arith.mulf %299, %300 : vector<16x16xf32>
    %302 = arith.addf %301, %2 : vector<16x16xf32>
    %cst_82 = arith.constant dense<0xFF800000> : vector<16xf32>
    %303 = vector.multi_reduction <maximumf>, %302, %cst_82 [1] : vector<16x16xf32> to vector<16xf32>
    %304 = vector.shape_cast %303 : vector<16xf32> to vector<16x1xf32>
    %305 = vector.broadcast %304 : vector<16x1xf32> to vector<16x16xf32>
    %306 = arith.subf %302, %305 : vector<16x16xf32>
    %307 = math.exp %306 : vector<16x16xf32>
    %cst_83 = arith.constant dense<0.000000e+00> : vector<16xf32>
    %308 = vector.multi_reduction <add>, %307, %cst_83 [1] : vector<16x16xf32> to vector<16xf32>
    %309 = vector.shape_cast %308 : vector<16xf32> to vector<16x1xf32>
    %310 = tpu.reciprocal %309 {approx = true} : vector<16x1xf32> -> vector<16x1xf32>
    %311 = vector.broadcast %310 : vector<16x1xf32> to vector<16x16xf32>
    %312 = arith.mulf %307, %311 : vector<16x16xf32>
    %cst_84 = arith.constant dense<0.000000e+00> : vector<16x16xf32>
    %313 = tpu.matmul %312, %297, %cst_84 {dimension_numbers = #tpu.dot_dimension_numbers<[1], [0], [0], [1], [0, 0, 1, 1], [], []>} : vector<16x16xf32>, vector<16x16xf32>, vector<16x16xf32> -> vector<16x16xf32>
    %314 = vector.extract_strided_slice %235 {offsets = [16, 0], sizes = [16, 64], strides = [1, 1]} : vector<64x64xf32> to vector<16x64xf32>
    %cst_85 = arith.constant dense<0.000000e+00> : vector<16x64xf32>
    %315 = tpu.matmul %313, %314, %cst_85 {dimension_numbers = #tpu.dot_dimension_numbers<[1], [0], [0], [1], [0, 0, 1, 1], [], []>} : vector<16x16xf32>, vector<16x64xf32>, vector<16x64xf32> -> vector<16x64xf32>
    %316 = arith.addf %276, %315 : vector<16x64xf32>
    %317 = vector.extract_strided_slice %233 {offsets = [0, 32], sizes = [16, 16], strides = [1, 1]} : vector<16x192xf32> to vector<16x16xf32>
    %318 = vector.extract_strided_slice %317 {offsets = [0, 0], sizes = [16, 8], strides = [1, 1]} : vector<16x16xf32> to vector<16x8xf32>
    %319 = vector.extract_strided_slice %317 {offsets = [0, 8], sizes = [16, 8], strides = [1, 1]} : vector<16x16xf32> to vector<16x8xf32>
    %320 = arith.mulf %318, %3 : vector<16x8xf32>
    %321 = arith.mulf %319, %4 : vector<16x8xf32>
    %322 = arith.subf %320, %321 : vector<16x8xf32>
    %323 = arith.mulf %318, %4 : vector<16x8xf32>
    %324 = arith.mulf %319, %3 : vector<16x8xf32>
    %325 = arith.addf %323, %324 : vector<16x8xf32>
    %326 = tpu.concatenate %322, %325 in 1 : vector<16x8xf32>, vector<16x8xf32> -> vector<16x16xf32>
    %327 = vector.extract_strided_slice %233 {offsets = [0, 96], sizes = [16, 16], strides = [1, 1]} : vector<16x192xf32> to vector<16x16xf32>
    %328 = vector.extract_strided_slice %327 {offsets = [0, 0], sizes = [16, 8], strides = [1, 1]} : vector<16x16xf32> to vector<16x8xf32>
    %329 = vector.extract_strided_slice %327 {offsets = [0, 8], sizes = [16, 8], strides = [1, 1]} : vector<16x16xf32> to vector<16x8xf32>
    %330 = arith.mulf %328, %3 : vector<16x8xf32>
    %331 = arith.mulf %329, %4 : vector<16x8xf32>
    %332 = arith.subf %330, %331 : vector<16x8xf32>
    %333 = arith.mulf %328, %4 : vector<16x8xf32>
    %334 = arith.mulf %329, %3 : vector<16x8xf32>
    %335 = arith.addf %333, %334 : vector<16x8xf32>
    %336 = tpu.concatenate %332, %335 in 1 : vector<16x8xf32>, vector<16x8xf32> -> vector<16x16xf32>
    %337 = vector.extract_strided_slice %233 {offsets = [0, 160], sizes = [16, 16], strides = [1, 1]} : vector<16x192xf32> to vector<16x16xf32>
    %338 = tpu.transpose %336, [1, 0] : vector<16x16xf32> -> vector<16x16xf32>
    %cst_86 = arith.constant dense<0.000000e+00> : vector<16x16xf32>
    %339 = tpu.matmul %326, %338, %cst_86 {dimension_numbers = #tpu.dot_dimension_numbers<[1], [0], [0], [1], [0, 0, 1, 1], [], []>} : vector<16x16xf32>, vector<16x16xf32>, vector<16x16xf32> -> vector<16x16xf32>
    %cst_87 = arith.constant 2.500000e-01 : f32
    %340 = vector.broadcast %cst_87 : f32 to vector<16x16xf32>
    %341 = arith.mulf %339, %340 : vector<16x16xf32>
    %342 = arith.addf %341, %2 : vector<16x16xf32>
    %cst_88 = arith.constant dense<0xFF800000> : vector<16xf32>
    %343 = vector.multi_reduction <maximumf>, %342, %cst_88 [1] : vector<16x16xf32> to vector<16xf32>
    %344 = vector.shape_cast %343 : vector<16xf32> to vector<16x1xf32>
    %345 = vector.broadcast %344 : vector<16x1xf32> to vector<16x16xf32>
    %346 = arith.subf %342, %345 : vector<16x16xf32>
    %347 = math.exp %346 : vector<16x16xf32>
    %cst_89 = arith.constant dense<0.000000e+00> : vector<16xf32>
    %348 = vector.multi_reduction <add>, %347, %cst_89 [1] : vector<16x16xf32> to vector<16xf32>
    %349 = vector.shape_cast %348 : vector<16xf32> to vector<16x1xf32>
    %350 = tpu.reciprocal %349 {approx = true} : vector<16x1xf32> -> vector<16x1xf32>
    %351 = vector.broadcast %350 : vector<16x1xf32> to vector<16x16xf32>
    %352 = arith.mulf %347, %351 : vector<16x16xf32>
    %cst_90 = arith.constant dense<0.000000e+00> : vector<16x16xf32>
    %353 = tpu.matmul %352, %337, %cst_90 {dimension_numbers = #tpu.dot_dimension_numbers<[1], [0], [0], [1], [0, 0, 1, 1], [], []>} : vector<16x16xf32>, vector<16x16xf32>, vector<16x16xf32> -> vector<16x16xf32>
    %354 = vector.extract_strided_slice %235 {offsets = [32, 0], sizes = [16, 64], strides = [1, 1]} : vector<64x64xf32> to vector<16x64xf32>
    %cst_91 = arith.constant dense<0.000000e+00> : vector<16x64xf32>
    %355 = tpu.matmul %353, %354, %cst_91 {dimension_numbers = #tpu.dot_dimension_numbers<[1], [0], [0], [1], [0, 0, 1, 1], [], []>} : vector<16x16xf32>, vector<16x64xf32>, vector<16x64xf32> -> vector<16x64xf32>
    %356 = arith.addf %316, %355 : vector<16x64xf32>
    %357 = vector.extract_strided_slice %233 {offsets = [0, 48], sizes = [16, 16], strides = [1, 1]} : vector<16x192xf32> to vector<16x16xf32>
    %358 = vector.extract_strided_slice %357 {offsets = [0, 0], sizes = [16, 8], strides = [1, 1]} : vector<16x16xf32> to vector<16x8xf32>
    %359 = vector.extract_strided_slice %357 {offsets = [0, 8], sizes = [16, 8], strides = [1, 1]} : vector<16x16xf32> to vector<16x8xf32>
    %360 = arith.mulf %358, %3 : vector<16x8xf32>
    %361 = arith.mulf %359, %4 : vector<16x8xf32>
    %362 = arith.subf %360, %361 : vector<16x8xf32>
    %363 = arith.mulf %358, %4 : vector<16x8xf32>
    %364 = arith.mulf %359, %3 : vector<16x8xf32>
    %365 = arith.addf %363, %364 : vector<16x8xf32>
    %366 = tpu.concatenate %362, %365 in 1 : vector<16x8xf32>, vector<16x8xf32> -> vector<16x16xf32>
    %367 = vector.extract_strided_slice %233 {offsets = [0, 112], sizes = [16, 16], strides = [1, 1]} : vector<16x192xf32> to vector<16x16xf32>
    %368 = vector.extract_strided_slice %367 {offsets = [0, 0], sizes = [16, 8], strides = [1, 1]} : vector<16x16xf32> to vector<16x8xf32>
    %369 = vector.extract_strided_slice %367 {offsets = [0, 8], sizes = [16, 8], strides = [1, 1]} : vector<16x16xf32> to vector<16x8xf32>
    %370 = arith.mulf %368, %3 : vector<16x8xf32>
    %371 = arith.mulf %369, %4 : vector<16x8xf32>
    %372 = arith.subf %370, %371 : vector<16x8xf32>
    %373 = arith.mulf %368, %4 : vector<16x8xf32>
    %374 = arith.mulf %369, %3 : vector<16x8xf32>
    %375 = arith.addf %373, %374 : vector<16x8xf32>
    %376 = tpu.concatenate %372, %375 in 1 : vector<16x8xf32>, vector<16x8xf32> -> vector<16x16xf32>
    %377 = vector.extract_strided_slice %233 {offsets = [0, 176], sizes = [16, 16], strides = [1, 1]} : vector<16x192xf32> to vector<16x16xf32>
    %378 = tpu.transpose %376, [1, 0] : vector<16x16xf32> -> vector<16x16xf32>
    %cst_92 = arith.constant dense<0.000000e+00> : vector<16x16xf32>
    %379 = tpu.matmul %366, %378, %cst_92 {dimension_numbers = #tpu.dot_dimension_numbers<[1], [0], [0], [1], [0, 0, 1, 1], [], []>} : vector<16x16xf32>, vector<16x16xf32>, vector<16x16xf32> -> vector<16x16xf32>
    %cst_93 = arith.constant 2.500000e-01 : f32
    %380 = vector.broadcast %cst_93 : f32 to vector<16x16xf32>
    %381 = arith.mulf %379, %380 : vector<16x16xf32>
    %382 = arith.addf %381, %2 : vector<16x16xf32>
    %cst_94 = arith.constant dense<0xFF800000> : vector<16xf32>
    %383 = vector.multi_reduction <maximumf>, %382, %cst_94 [1] : vector<16x16xf32> to vector<16xf32>
    %384 = vector.shape_cast %383 : vector<16xf32> to vector<16x1xf32>
    %385 = vector.broadcast %384 : vector<16x1xf32> to vector<16x16xf32>
    %386 = arith.subf %382, %385 : vector<16x16xf32>
    %387 = math.exp %386 : vector<16x16xf32>
    %cst_95 = arith.constant dense<0.000000e+00> : vector<16xf32>
    %388 = vector.multi_reduction <add>, %387, %cst_95 [1] : vector<16x16xf32> to vector<16xf32>
    %389 = vector.shape_cast %388 : vector<16xf32> to vector<16x1xf32>
    %390 = tpu.reciprocal %389 {approx = true} : vector<16x1xf32> -> vector<16x1xf32>
    %391 = vector.broadcast %390 : vector<16x1xf32> to vector<16x16xf32>
    %392 = arith.mulf %387, %391 : vector<16x16xf32>
    %cst_96 = arith.constant dense<0.000000e+00> : vector<16x16xf32>
    %393 = tpu.matmul %392, %377, %cst_96 {dimension_numbers = #tpu.dot_dimension_numbers<[1], [0], [0], [1], [0, 0, 1, 1], [], []>} : vector<16x16xf32>, vector<16x16xf32>, vector<16x16xf32> -> vector<16x16xf32>
    %394 = vector.extract_strided_slice %235 {offsets = [48, 0], sizes = [16, 64], strides = [1, 1]} : vector<64x64xf32> to vector<16x64xf32>
    %cst_97 = arith.constant dense<0.000000e+00> : vector<16x64xf32>
    %395 = tpu.matmul %393, %394, %cst_97 {dimension_numbers = #tpu.dot_dimension_numbers<[1], [0], [0], [1], [0, 0, 1, 1], [], []>} : vector<16x16xf32>, vector<16x64xf32>, vector<16x64xf32> -> vector<16x64xf32>
    %396 = arith.addf %356, %395 : vector<16x64xf32>
    %397 = arith.addf %216, %396 : vector<16x64xf32>
    %c1_98 = arith.constant 1 : index
    %c0_99 = arith.constant 0 : index
    %c0_100 = arith.constant 0 : index
    %398 = vector.load %arg6[%c1_98, %c0_99, %c0_100] : memref<2x1x64xf32, #tpu.memory_space<vmem>>, vector<1x1x64xf32>
    %399 = vector.shape_cast %398 : vector<1x1x64xf32> to vector<1x64xf32>
    %400 = arith.mulf %397, %397 : vector<16x64xf32>
    %cst_101 = arith.constant dense<0.000000e+00> : vector<16xf32>
    %401 = vector.multi_reduction <add>, %400, %cst_101 [1] : vector<16x64xf32> to vector<16xf32>
    %402 = vector.shape_cast %401 : vector<16xf32> to vector<16x1xf32>
    %cst_102 = arith.constant 6.400000e+01 : f32
    %403 = vector.broadcast %cst_102 : f32 to vector<16x1xf32>
    %404 = arith.divf %402, %403 : vector<16x1xf32>
    %cst_103 = arith.constant 9.99999974E-6 : f32
    %405 = vector.broadcast %cst_103 : f32 to vector<16x1xf32>
    %406 = arith.addf %404, %405 : vector<16x1xf32>
    %407 = math.rsqrt %406 : vector<16x1xf32>
    %408 = vector.broadcast %407 : vector<16x1xf32> to vector<16x64xf32>
    %409 = arith.mulf %397, %408 : vector<16x64xf32>
    %410 = vector.broadcast %399 : vector<1x64xf32> to vector<16x64xf32>
    %411 = arith.mulf %409, %410 : vector<16x64xf32>
    %c1_104 = arith.constant 1 : index
    %c0_105 = arith.constant 0 : index
    %c0_106 = arith.constant 0 : index
    %412 = vector.load %arg9[%c1_104, %c0_105, %c0_106] : memref<2x64x256xf32, #tpu.memory_space<vmem>>, vector<1x64x256xf32>
    %413 = vector.shape_cast %412 : vector<1x64x256xf32> to vector<64x256xf32>
    %cst_107 = arith.constant dense<0.000000e+00> : vector<16x256xf32>
    %414 = tpu.matmul %411, %413, %cst_107 {dimension_numbers = #tpu.dot_dimension_numbers<[1], [0], [0], [1], [0, 0, 1, 1], [], []>} : vector<16x64xf32>, vector<64x256xf32>, vector<16x256xf32> -> vector<16x256xf32>
    %415 = vector.extract_strided_slice %414 {offsets = [0, 0], sizes = [16, 128], strides = [1, 1]} : vector<16x256xf32> to vector<16x128xf32>
    %416 = vector.extract_strided_slice %414 {offsets = [0, 128], sizes = [16, 128], strides = [1, 1]} : vector<16x256xf32> to vector<16x128xf32>
    %cst_108 = arith.constant 0.000000e+00 : f32
    %417 = vector.broadcast %cst_108 : f32 to vector<16x128xf32>
    %418 = arith.subf %417, %415 : vector<16x128xf32>
    %419 = math.exp %418 : vector<16x128xf32>
    %cst_109 = arith.constant 1.000000e+00 : f32
    %420 = vector.broadcast %cst_109 : f32 to vector<16x128xf32>
    %421 = arith.addf %420, %419 : vector<16x128xf32>
    %422 = tpu.reciprocal %421 {approx = true} : vector<16x128xf32> -> vector<16x128xf32>
    %423 = arith.mulf %415, %422 : vector<16x128xf32>
    %424 = arith.mulf %423, %416 : vector<16x128xf32>
    %c1_110 = arith.constant 1 : index
    %c0_111 = arith.constant 0 : index
    %c0_112 = arith.constant 0 : index
    %425 = vector.load %arg10[%c1_110, %c0_111, %c0_112] : memref<2x128x64xf32, #tpu.memory_space<vmem>>, vector<1x128x64xf32>
    %426 = vector.shape_cast %425 : vector<1x128x64xf32> to vector<128x64xf32>
    %cst_113 = arith.constant dense<0.000000e+00> : vector<16x64xf32>
    %427 = tpu.matmul %424, %426, %cst_113 {dimension_numbers = #tpu.dot_dimension_numbers<[1], [0], [0], [1], [0, 0, 1, 1], [], []>} : vector<16x128xf32>, vector<128x64xf32>, vector<16x64xf32> -> vector<16x64xf32>
    %428 = arith.addf %397, %427 : vector<16x64xf32>
    %c0_114 = arith.constant 0 : index
    %c0_115 = arith.constant 0 : index
    %429 = vector.load %arg11[%c0_114, %c0_115] : memref<1x64xf32, #tpu.memory_space<vmem>>, vector<1x64xf32>
    %430 = arith.mulf %428, %428 : vector<16x64xf32>
    %cst_116 = arith.constant dense<0.000000e+00> : vector<16xf32>
    %431 = vector.multi_reduction <add>, %430, %cst_116 [1] : vector<16x64xf32> to vector<16xf32>
    %432 = vector.shape_cast %431 : vector<16xf32> to vector<16x1xf32>
    %cst_117 = arith.constant 6.400000e+01 : f32
    %433 = vector.broadcast %cst_117 : f32 to vector<16x1xf32>
    %434 = arith.divf %432, %433 : vector<16x1xf32>
    %cst_118 = arith.constant 9.99999974E-6 : f32
    %435 = vector.broadcast %cst_118 : f32 to vector<16x1xf32>
    %436 = arith.addf %434, %435 : vector<16x1xf32>
    %437 = math.rsqrt %436 : vector<16x1xf32>
    %438 = vector.broadcast %437 : vector<16x1xf32> to vector<16x64xf32>
    %439 = arith.mulf %428, %438 : vector<16x64xf32>
    %440 = vector.broadcast %429 : vector<1x64xf32> to vector<16x64xf32>
    %441 = arith.mulf %439, %440 : vector<16x64xf32>
    %c0_119 = arith.constant 0 : index
    %c0_120 = arith.constant 0 : index
    %442 = vector.load %arg12[%c0_119, %c0_120] : memref<64x128xf32, #tpu.memory_space<vmem>>, vector<64x128xf32>
    %cst_121 = arith.constant dense<0.000000e+00> : vector<16x128xf32>
    %443 = tpu.matmul %441, %442, %cst_121 {dimension_numbers = #tpu.dot_dimension_numbers<[1], [0], [0], [1], [0, 0, 1, 1], [], []>} : vector<16x64xf32>, vector<64x128xf32>, vector<16x128xf32> -> vector<16x128xf32>
    %c0_122 = arith.constant 0 : index
    %c0_123 = arith.constant 0 : index
    %c0_124 = arith.constant 0 : index
    %444 = vector.load %arg13[%c0_122, %c0_123, %c0_124] : memref<1x16x128xf32, #tpu.memory_space<vmem>>, vector<1x16x128xf32>
    %445 = vector.shape_cast %444 : vector<1x16x128xf32> to vector<16x128xf32>
    %446 = vector.shape_cast %443 : vector<16x128xf32> to vector<1x16x128xf32>
    tpu.vector_store %arg13[%c0_122, %c0_123, %c0_124], %446 {strides = array<i32>} : memref<1x16x128xf32, #tpu.memory_space<vmem>>, vector<1x16x128xf32>,
    return
  }
  func.func @transform_0(%arg0: i32) -> (i32, i32, i32) {
    %c0_i32 = arith.constant 0 : i32
    %c0_i32_0 = arith.constant 0 : i32
    %c0_i32_1 = arith.constant 0 : i32
    return %arg0, %c0_i32, %c0_i32_0 : i32, i32, i32
  }
  func.func @transform_1(%arg0: i32) -> (i32, i32) {
    %c0_i32 = arith.constant 0 : i32
    %c0_i32_0 = arith.constant 0 : i32
    %c0_i32_1 = arith.constant 0 : i32
    return %c0_i32, %c0_i32_0 : i32, i32
  }
  func.func @transform_2(%arg0: i32) -> (i32, i32) {
    %c0_i32 = arith.constant 0 : i32
    %c0_i32_0 = arith.constant 0 : i32
    %c0_i32_1 = arith.constant 0 : i32
    return %c0_i32, %c0_i32_0 : i32, i32
  }
  func.func @transform_3(%arg0: i32) -> (i32, i32) {
    %c0_i32 = arith.constant 0 : i32
    %c0_i32_0 = arith.constant 0 : i32
    %c0_i32_1 = arith.constant 0 : i32
    return %c0_i32, %c0_i32_0 : i32, i32
  }
  func.func @transform_4(%arg0: i32) -> (i32, i32, i32) {
    %c0_i32 = arith.constant 0 : i32
    %c0_i32_0 = arith.constant 0 : i32
    %c0_i32_1 = arith.constant 0 : i32
    %c0_i32_2 = arith.constant 0 : i32
    return %c0_i32, %c0_i32_0, %c0_i32_1 : i32, i32, i32
  }
  func.func @transform_5(%arg0: i32) -> (i32, i32, i32) {
    %c0_i32 = arith.constant 0 : i32
    %c0_i32_0 = arith.constant 0 : i32
    %c0_i32_1 = arith.constant 0 : i32
    %c0_i32_2 = arith.constant 0 : i32
    return %c0_i32, %c0_i32_0, %c0_i32_1 : i32, i32, i32
  }
  func.func @transform_6(%arg0: i32) -> (i32, i32, i32) {
    %c0_i32 = arith.constant 0 : i32
    %c0_i32_0 = arith.constant 0 : i32
    %c0_i32_1 = arith.constant 0 : i32
    %c0_i32_2 = arith.constant 0 : i32
    return %c0_i32, %c0_i32_0, %c0_i32_1 : i32, i32, i32
  }
  func.func @transform_7(%arg0: i32) -> (i32, i32, i32) {
    %c0_i32 = arith.constant 0 : i32
    %c0_i32_0 = arith.constant 0 : i32
    %c0_i32_1 = arith.constant 0 : i32
    %c0_i32_2 = arith.constant 0 : i32
    return %c0_i32, %c0_i32_0, %c0_i32_1 : i32, i32, i32
  }
  func.func @transform_8(%arg0: i32) -> (i32, i32, i32) {
    %c0_i32 = arith.constant 0 : i32
    %c0_i32_0 = arith.constant 0 : i32
    %c0_i32_1 = arith.constant 0 : i32
    %c0_i32_2 = arith.constant 0 : i32
    return %c0_i32, %c0_i32_0, %c0_i32_1 : i32, i32, i32
  }
  func.func @transform_9(%arg0: i32) -> (i32, i32, i32) {
    %c0_i32 = arith.constant 0 : i32
    %c0_i32_0 = arith.constant 0 : i32
    %c0_i32_1 = arith.constant 0 : i32
    %c0_i32_2 = arith.constant 0 : i32
    return %c0_i32, %c0_i32_0, %c0_i32_1 : i32, i32, i32
  }
  func.func @transform_10(%arg0: i32) -> (i32, i32) {
    %c0_i32 = arith.constant 0 : i32
    %c0_i32_0 = arith.constant 0 : i32
    %c0_i32_1 = arith.constant 0 : i32
    return %c0_i32, %c0_i32_0 : i32, i32
  }
  func.func @transform_11(%arg0: i32) -> (i32, i32) {
    %c0_i32 = arith.constant 0 : i32
    %c0_i32_0 = arith.constant 0 : i32
    %c0_i32_1 = arith.constant 0 : i32
    return %c0_i32, %c0_i32_0 : i32, i32
  }
  func.func @transform_12(%arg0: i32) -> (i32, i32, i32) {
    %c0_i32 = arith.constant 0 : i32
    %c0_i32_0 = arith.constant 0 : i32
    %c0_i32_1 = arith.constant 0 : i32
    return %arg0, %c0_i32, %c0_i32_0 : i32, i32, i32
  }
}

</mosaic_0001>

<llo_original>
// kernel: wrapped_llama_forward.1
$region0: #{wrapped_llama_forward.1}
  #allocation0 [shape = 'u32[]', space=smem, size = 0x4, offset = 0x4, fixed_abs, tag = 'smem constant byte address 0x4 - core index']
  #allocation1 [shape = 'u32[144,128]{1,0:T(1,128)}', space=vmem, size = 0x12000, scoped, tag = 'internal scratch']
  %s0 = inlined_call_operand.vmem [shape: f32[2,16,64], index: 0, kind: input, shape index: {}]
  %s1 = inlined_call_operand.hbm [shape: f32[16,16], index: 1, kind: input, shape index: {}]
  %s2 = inlined_call_operand.hbm [shape: f32[16,8], index: 2, kind: input, shape index: {}]
  %s3 = inlined_call_operand.hbm [shape: f32[16,8], index: 3, kind: input, shape index: {}]
  %s4 = inlined_call_operand.vmem [shape: f32[2,1,64], index: 4, kind: input, shape index: {}, may-alias: {4,5}]
  %s5 = inlined_call_operand.vmem [shape: f32[2,1,64], index: 5, kind: input, shape index: {}, may-alias: {4,5}]
  %s6 = inlined_call_operand.hbm [shape: f32[2,64,192], index: 6, kind: input, shape index: {}]
  %s7 = inlined_call_operand.hbm [shape: f32[2,64,64], index: 7, kind: input, shape index: {}]
  %s8 = inlined_call_operand.hbm [shape: f32[2,64,256], index: 8, kind: input, shape index: {}]
  %s9 = inlined_call_operand.vmem [shape: f32[2,128,64], index: 9, kind: input, shape index: {}]
  %s10 = inlined_call_operand.vmem [shape: f32[1,64], index: 10, kind: input, shape index: {}]
  %s11 = inlined_call_operand.vmem [shape: f32[64,128], index: 11, kind: input, shape index: {}]
  %s12 = inlined_call_operand.hbm [shape: f32[2,16,128], index: 12, kind: output, shape index: {}]
  %s13 = sld [smem:[#allocation0]]
  $region105: #{wrapped_llama_forward.1} parent=0
    _
  %s15 = ssub.s32 1, %s13
  %s16 = scalar_select 0, %s15, %s13
  $region1: #{wrapped_llama_forward.1} parent=0
    #allocation2 [shape = 'u8[8192]{0}', space=vmem, size = 0x2000, scoped, tag = 'input window, operand 1, single buffered']
    #allocation3 [shape = 's32[2]{0}', space=sflag, size = 0x8, scoped, tag = 'scoped memory for wrapped_llama_forward.1']
    #allocation4 [shape = 's32[2]{0}', space=sflag, size = 0x8, scoped, tag = 'scoped memory for wrapped_llama_forward.1']
    #allocation5 [shape = 'u8[8192]{0}', space=vmem, size = 0x2000, scoped, tag = 'input window, operand 2, single buffered']
    #allocation6 [shape = 's32[1]{0}', space=sflag, size = 0x4, scoped, tag = 'scoped memory for wrapped_llama_forward.1']
    #allocation7 [shape = 'u8[8192]{0}', space=vmem, size = 0x2000, scoped, tag = 'input window, operand 3, single buffered']
    #allocation8 [shape = 'u8[131072]{0}', space=vmem, size = 0x20000, scoped, tag = 'input window, operand 6, single buffered']
    #allocation9 [shape = 's32[1]{0}', space=sflag, size = 0x4, scoped, tag = 'scoped memory for wrapped_llama_forward.1']
    #allocation10 [shape = 'u8[65536]{0}', space=vmem, size = 0x10000, scoped, tag = 'input window, operand 7, single buffered']
    #allocation11 [shape = 'u8[131072]{0}', space=vmem, size = 0x20000, scoped, tag = 'input window, operand 8, single buffered']
    #allocation12 [shape = 's32[1]{0}', space=sflag, size = 0x4, scoped, tag = 'scoped memory for wrapped_llama_forward.1']
    #allocation13 [shape = 'u8[16384]{0}', space=vmem, size = 0x4000, scoped, tag = 'output window, operand 0']
    %17 = vsyncpa [#allocation3], 0
    %18 = vsyncpa [#allocation6], 0
    %19 = vsyncpa [#allocation9], 0
    %20 = vsyncpa [#allocation12], 0
    %21 = vsyncpa [#allocation4], 0
    %s22 = scalar_lea.sflag [#allocation4], 1
    %23 = vsyncpa %s22, 0
    loop: start=0, step=1, limit=4
    $region2: #{wrapped_llama_forward.1} parent=1 // loop_pre_header
      _
    $region3: #{wrapped_llama_forward.1} parent=1 // loop_header
      %s25 = sphi 0, %s29
      %p26 = scmp.ge.s32.totalorder %s25, 4
      %s35 = sphi 0, %s37
      %s38 = sphi 0, %s35
      %s39 = sphi 0, %s38
      %s55 = sphi 0, %s39
      %s59 = sphi 0, %s59
      %s61 = sphi 0, %s59
      %s62 = sphi 0, %s61
      %s76 = sphi 0, %s62
      %s80 = sphi 0, %s80
      %s82 = sphi 0, %s80
      %s83 = sphi 0, %s82
      %s97 = sphi 0, %s83
      %s101 = sphi 0, %s101
      %s103 = sphi 0, %s101
      %s104 = sphi 0, %s103
      %s118 = sphi 0, %s104
      %s122 = sphi 0, %s122
      %s124 = sphi 0, %s122
      %s125 = sphi 0, %s124
      %s139 = sphi 0, %s125
      %s143 = sphi 0, %s143
      %s145 = sphi 0, %s143
      %s146 = sphi 0, %s145
      %s160 = sphi 0, %s146
      %s164 = sphi 0, %s164
      %s166 = sphi 0, %s164
      %s167 = sphi 0, %s166
      %s181 = sphi 0, %s167
      %s185 = sphi 0, %s185
      %s187 = sphi 0, %s185
      %s188 = sphi 0, %s187
      %s202 = sphi 0, %s188
      %s206 = sphi 0, %s206
      %s208 = sphi 0, %s206
      %s209 = sphi 0, %s208
      %s223 = sphi 0, %s209
      %s227 = sphi 0, %s227
      %s229 = sphi 0, %s227
      %s230 = sphi 0, %s229
      %s244 = sphi 0, %s230
      %s248 = sphi 0, %s248
      %s250 = sphi 0, %s248
      %s251 = sphi 0, %s250
      %s265 = sphi 0, %s251
      %s269 = sphi 0, %s269
      %s271 = sphi 0, %s269
      %s272 = sphi 0, %s271
      %s286 = sphi 0, %s272
      %s292 = sphi 0, %s294
      %s295 = sphi 0, %s292
      %s296 = sphi 0, %s295
      %s312 = sphi 0, %s296
    $region4: #{wrapped_llama_forward.1} parent=1 // loop_header_branch
      %28 = sbr.rel (%p26) target = $region8
    $region5: #{wrapped_llama_forward.1} parent=1 // loop_body
      %s30 = ssub.s32 %s25, 1
      %s31 = ssub.s32 %s25, 2
      %s32 = sadd.s32 %s25, 1
      %s33 = ssub.s32 %s25, %s32
      %p34 = scmp.eq.s32.totalorder %s33, 0
      %s36 = sadd.s32 %s35, 1
      %s37 = scalar_select %p34, %s35, %s36
      %p40 = pneg %p34
      %p41 = scmp.eq.s32.totalorder %s25, 1
      %p42 = por %p40, %p41
      %p43 = scmp.ne.s32.totalorder %s35, %s38
      %p44 = scmp.eq.s32.totalorder %s25, 0
      %p45 = por %p43, %p44
      %p46 = scmp.ne.s32.totalorder %s35, %s38
      %p47 = scmp.eq.s32.totalorder %s30, 1
      %p48 = por %p46, %p47
      %p49 = scmp.ne.s32.totalorder %s38, %s39
      %p50 = scmp.eq.s32.totalorder %s30, 0
      %p51 = por %p49, %p50
      %p52 = scmp.ne.s32.totalorder %s38, %s39
      %p53 = scmp.eq.s32.totalorder %s31, 1
      %p54 = por %p52, %p53
      %p56 = scmp.ne.s32.totalorder %s39, %s55
      %p57 = scmp.eq.s32.totalorder %s31, 0
      %p58 = por %p56, %p57
      %s60 = sadd.s32 %s59, 1
      %p63 = scmp.eq.s32.totalorder %s25, 1
      %p64 = scmp.ne.s32.totalorder %s59, %s61
      %p65 = scmp.eq.s32.totalorder %s25, 0
      %p66 = por %p64, %p65
      %p67 = scmp.ne.s32.totalorder %s59, %s61
      %p68 = scmp.eq.s32.totalorder %s30, 1
      %p69 = por %p67, %p68
      %p70 = scmp.ne.s32.totalorder %s61, %s62
      %p71 = scmp.eq.s32.totalorder %s30, 0
      %p72 = por %p70, %p71
      %p73 = scmp.ne.s32.totalorder %s61, %s62
      %p74 = scmp.eq.s32.totalorder %s31, 1
      %p75 = por %p73, %p74
      %p77 = scmp.ne.s32.totalorder %s62, %s76
      %p78 = scmp.eq.s32.totalorder %s31, 0
      %p79 = por %p77, %p78
      %s81 = sadd.s32 %s80, 1
      %p84 = scmp.eq.s32.totalorder %s25, 1
      %p85 = scmp.ne.s32.totalorder %s80, %s82
      %p86 = scmp.eq.s32.totalorder %s25, 0
      %p87 = por %p85, %p86
      %p88 = scmp.ne.s32.totalorder %s80, %s82
      %p89 = scmp.eq.s32.totalorder %s30, 1
      %p90 = por %p88, %p89
      %p91 = scmp.ne.s32.totalorder %s82, %s83
      %p92 = scmp.eq.s32.totalorder %s30, 0
      %p93 = por %p91, %p92
      %p94 = scmp.ne.s32.totalorder %s82, %s83
      %p95 = scmp.eq.s32.totalorder %s31, 1
      %p96 = por %p94, %p95
      %p98 = scmp.ne.s32.totalorder %s83, %s97
      %p99 = scmp.eq.s32.totalorder %s31, 0
      %p100 = por %p98, %p99
      %s102 = sadd.s32 %s101, 1
      %p105 = scmp.eq.s32.totalorder %s25, 1
      %p106 = scmp.ne.s32.totalorder %s101, %s103
      %p107 = scmp.eq.s32.totalorder %s25, 0
      %p108 = por %p106, %p107
      %p109 = scmp.ne.s32.totalorder %s101, %s103
      %p110 = scmp.eq.s32.totalorder %s30, 1
      %p111 = por %p109, %p110
      %p112 = scmp.ne.s32.totalorder %s103, %s104
      %p113 = scmp.eq.s32.totalorder %s30, 0
      %p114 = por %p112, %p113
      %p115 = scmp.ne.s32.totalorder %s103, %s104
      %p116 = scmp.eq.s32.totalorder %s31, 1
      %p117 = por %p115, %p116
      %p119 = scmp.ne.s32.totalorder %s104, %s118
      %p120 = scmp.eq.s32.totalorder %s31, 0
      %p121 = por %p119, %p120
      %s123 = sadd.s32 %s122, 1
      %p126 = scmp.eq.s32.totalorder %s25, 1
      %p127 = scmp.ne.s32.totalorder %s122, %s124
      %p128 = scmp.eq.s32.totalorder %s25, 0
      %p129 = por %p127, %p128
      %p130 = scmp.ne.s32.totalorder %s122, %s124
      %p131 = scmp.eq.s32.totalorder %s30, 1
      %p132 = por %p130, %p131
      %p133 = scmp.ne.s32.totalorder %s124, %s125
      %p134 = scmp.eq.s32.totalorder %s30, 0
      %p135 = por %p133, %p134
      %p136 = scmp.ne.s32.totalorder %s124, %s125
      %p137 = scmp.eq.s32.totalorder %s31, 1
      %p138 = por %p136, %p137
      %p140 = scmp.ne.s32.totalorder %s125, %s139
      %p141 = scmp.eq.s32.totalorder %s31, 0
      %p142 = por %p140, %p141
      %s144 = sadd.s32 %s143, 1
      %p147 = scmp.eq.s32.totalorder %s25, 1
      %p148 = scmp.ne.s32.totalorder %s143, %s145
      %p149 = scmp.eq.s32.totalorder %s25, 0
      %p150 = por %p148, %p149
      %p151 = scmp.ne.s32.totalorder %s143, %s145
      %p152 = scmp.eq.s32.totalorder %s30, 1
      %p153 = por %p151, %p152
      %p154 = scmp.ne.s32.totalorder %s145, %s146
      %p155 = scmp.eq.s32.totalorder %s30, 0
      %p156 = por %p154, %p155
      %p157 = scmp.ne.s32.totalorder %s145, %s146
      %p158 = scmp.eq.s32.totalorder %s31, 1
      %p159 = por %p157, %p158
      %p161 = scmp.ne.s32.totalorder %s146, %s160
      %p162 = scmp.eq.s32.totalorder %s31, 0
      %p163 = por %p161, %p162
      %s165 = sadd.s32 %s164, 1
      %p168 = scmp.eq.s32.totalorder %s25, 1
      %p169 = scmp.ne.s32.totalorder %s164, %s166
      %p170 = scmp.eq.s32.totalorder %s25, 0
      %p171 = por %p169, %p170
      %p172 = scmp.ne.s32.totalorder %s164, %s166
      %p173 = scmp.eq.s32.totalorder %s30, 1
      %p174 = por %p172, %p173
      %p175 = scmp.ne.s32.totalorder %s166, %s167
      %p176 = scmp.eq.s32.totalorder %s30, 0
      %p177 = por %p175, %p176
      %p178 = scmp.ne.s32.totalorder %s166, %s167
      %p179 = scmp.eq.s32.totalorder %s31, 1
      %p180 = por %p178, %p179
      %p182 = scmp.ne.s32.totalorder %s167, %s181
      %p183 = scmp.eq.s32.totalorder %s31, 0
      %p184 = por %p182, %p183
      %s186 = sadd.s32 %s185, 1
      %p189 = scmp.eq.s32.totalorder %s25, 1
      %p190 = scmp.ne.s32.totalorder %s185, %s187
      %p191 = scmp.eq.s32.totalorder %s25, 0
      %p192 = por %p190, %p191
      %p193 = scmp.ne.s32.totalorder %s185, %s187
      %p194 = scmp.eq.s32.totalorder %s30, 1
      %p195 = por %p193, %p194
      %p196 = scmp.ne.s32.totalorder %s187, %s188
      %p197 = scmp.eq.s32.totalorder %s30, 0
      %p198 = por %p196, %p197
      %p199 = scmp.ne.s32.totalorder %s187, %s188
      %p200 = scmp.eq.s32.totalorder %s31, 1
      %p201 = por %p199, %p200
      %p203 = scmp.ne.s32.totalorder %s188, %s202
      %p204 = scmp.eq.s32.totalorder %s31, 0
      %p205 = por %p203, %p204
      %s207 = sadd.s32 %s206, 1
      %p210 = scmp.eq.s32.totalorder %s25, 1
      %p211 = scmp.ne.s32.totalorder %s206, %s208
      %p212 = scmp.eq.s32.totalorder %s25, 0
      %p213 = por %p211, %p212
      %p214 = scmp.ne.s32.totalorder %s206, %s208
      %p215 = scmp.eq.s32.totalorder %s30, 1
      %p216 = por %p214, %p215
      %p217 = scmp.ne.s32.totalorder %s208, %s209
      %p218 = scmp.eq.s32.totalorder %s30, 0
      %p219 = por %p217, %p218
      %p220 = scmp.ne.s32.totalorder %s208, %s209
      %p221 = scmp.eq.s32.totalorder %s31, 1
      %p222 = por %p220, %p221
      %p224 = scmp.ne.s32.totalorder %s209, %s223
      %p225 = scmp.eq.s32.totalorder %s31, 0
      %p226 = por %p224, %p225
      %s228 = sadd.s32 %s227, 1
      %p231 = scmp.eq.s32.totalorder %s25, 1
      %p232 = scmp.ne.s32.totalorder %s227, %s229
      %p233 = scmp.eq.s32.totalorder %s25, 0
      %p234 = por %p232, %p233
      %p235 = scmp.ne.s32.totalorder %s227, %s229
      %p236 = scmp.eq.s32.totalorder %s30, 1
      %p237 = por %p235, %p236
      %p238 = scmp.ne.s32.totalorder %s229, %s230
      %p239 = scmp.eq.s32.totalorder %s30, 0
      %p240 = por %p238, %p239
      %p241 = scmp.ne.s32.totalorder %s229, %s230
      %p242 = scmp.eq.s32.totalorder %s31, 1
      %p243 = por %p241, %p242
      %p245 = scmp.ne.s32.totalorder %s230, %s244
      %p246 = scmp.eq.s32.totalorder %s31, 0
      %p247 = por %p245, %p246
      %s249 = sadd.s32 %s248, 1
      %p252 = scmp.eq.s32.totalorder %s25, 1
      %p253 = scmp.ne.s32.totalorder %s248, %s250
      %p254 = scmp.eq.s32.totalorder %s25, 0
      %p255 = por %p253, %p254
      %p256 = scmp.ne.s32.totalorder %s248, %s250
      %p257 = scmp.eq.s32.totalorder %s30, 1
      %p258 = por %p256, %p257
      %p259 = scmp.ne.s32.totalorder %s250, %s251
      %p260 = scmp.eq.s32.totalorder %s30, 0
      %p261 = por %p259, %p260
      %p262 = scmp.ne.s32.totalorder %s250, %s251
      %p263 = scmp.eq.s32.totalorder %s31, 1
      %p264 = por %p262, %p263
      %p266 = scmp.ne.s32.totalorder %s251, %s265
      %p267 = scmp.eq.s32.totalorder %s31, 0
      %p268 = por %p266, %p267
      %s270 = sadd.s32 %s269, 1
      %p273 = scmp.eq.s32.totalorder %s25, 1
      %p274 = scmp.ne.s32.totalorder %s269, %s271
      %p275 = scmp.eq.s32.totalorder %s25, 0
      %p276 = por %p274, %p275
      %p277 = scmp.ne.s32.totalorder %s269, %s271
      %p278 = scmp.eq.s32.totalorder %s30, 1
      %p279 = por %p277, %p278
      %p280 = scmp.ne.s32.totalorder %s271, %s272
      %p281 = scmp.eq.s32.totalorder %s30, 0
      %p282 = por %p280, %p281
      %p283 = scmp.ne.s32.totalorder %s271, %s272
      %p284 = scmp.eq.s32.totalorder %s31, 1
      %p285 = por %p283, %p284
      %p287 = scmp.ne.s32.totalorder %s272, %s286
      %p288 = scmp.eq.s32.totalorder %s31, 0
      %p289 = por %p287, %p288
      %s290 = ssub.s32 %s25, %s32
      %p291 = scmp.eq.s32.totalorder %s290, 0
      %s293 = sadd.s32 %s292, 1
      %s294 = scalar_select %p291, %s292, %s293
      %p297 = pneg %p291
      %p298 = scmp.eq.s32.totalorder %s25, 1
      %p299 = por %p297, %p298
      %p300 = scmp.ne.s32.totalorder %s292, %s295
      %p301 = scmp.eq.s32.totalorder %s25, 0
      %p302 = por %p300, %p301
      %p303 = scmp.ne.s32.totalorder %s292, %s295
      %p304 = scmp.eq.s32.totalorder %s30, 1
      %p305 = por %p303, %p304
      %p306 = scmp.ne.s32.totalorder %s295, %s296
      %p307 = scmp.eq.s32.totalorder %s30, 0
      %p308 = por %p306, %p307
      %p309 = scmp.ne.s32.totalorder %s295, %s296
      %p310 = scmp.eq.s32.totalorder %s31, 1
      %p311 = por %p309, %p310
      %p313 = scmp.ne.s32.totalorder %s296, %s312
      %p314 = scmp.eq.s32.totalorder %s31, 0
      %p315 = por %p313, %p314
      %p316 = scmp.le.s32.totalorder 1, %s25
      %p317 = scmp.lt.s32.totalorder %s25, 3
      %p318 = pnand %p316, %p317
      %p319 = pneg %p318
      // Predicated region
      $region9: #{wrapped_llama_forward.1} parent=5 // pred_check
        _
      $region10: #{wrapped_llama_forward.1} parent=5 // pred_check_branch
        %321 = sbr.rel (%p318) target = $region12
      $region11: #{wrapped_llama_forward.1} parent=5 // pred_region
        %s322 = ssub.s32 %s25, 1
        // Predicated region
        $region13: #{wrapped_llama_forward.1} parent=11 // pred_check
          %p323 = pneg %p72
        $region14: #{wrapped_llama_forward.1} parent=11 // pred_check_branch
          %325 = sbr.rel (%p323) target = $region16
        $region15: #{wrapped_llama_forward.1} parent=11 // pred_region
          %s327 = ssub.s32 256, 256
          %328 = vsyncadd [#allocation3], %s327
          %s329 = sshll.u32 [#allocation2], 4
          %s330 = int_to_ptr.vmem [resolvable:$true] %s329
          %335 = dma.hbm_to_vmem [thread:$0]  %s1, 256, %s330, [#allocation3], 128, 128, 8
        $region16: #{wrapped_llama_forward.1} parent=11 // pred_fallthru
          _
        // Predicated region
        $region17: #{wrapped_llama_forward.1} parent=11 // pred_check
          %p336 = pneg %p93
        $region18: #{wrapped_llama_forward.1} parent=11 // pred_check_branch
          %338 = sbr.rel (%p336) target = $region20
        $region19: #{wrapped_llama_forward.1} parent=11 // pred_region
          %s340 = ssub.s32 256, 256
          %341 = vsyncadd [#allocation6], %s340
          %s342 = sshll.u32 [#allocation5], 4
          %s343 = int_to_ptr.vmem [resolvable:$true] %s342
          %348 = dma.hbm_to_vmem [thread:$0]  %s2, 256, %s343, [#allocation6], 128, 128, 8
        $region20: #{wrapped_llama_forward.1} parent=11 // pred_fallthru
          _
        // Predicated region
        $region21: #{wrapped_llama_forward.1} parent=11 // pred_check
          %p349 = pneg %p114
        $region22: #{wrapped_llama_forward.1} parent=11 // pred_check_branch
          %351 = sbr.rel (%p349) target = $region24
        $region23: #{wrapped_llama_forward.1} parent=11 // pred_region
          %s353 = ssub.s32 256, 256
          %354 = vsyncadd [#allocation6], %s353
          %s355 = sshll.u32 [#allocation7], 4
          %s356 = int_to_ptr.vmem [resolvable:$true] %s355
          %361 = dma.hbm_to_vmem [thread:$0]  %s3, 256, %s356, [#allocation6], 128, 128, 8
        $region24: #{wrapped_llama_forward.1} parent=11 // pred_fallthru
          _
        // Predicated region
        $region25: #{wrapped_llama_forward.1} parent=11 // pred_check
          %p362 = pneg %p135
        $region26: #{wrapped_llama_forward.1} parent=11 // pred_check_branch
          %364 = sbr.rel (%p362) target = $region28
        $region27: #{wrapped_llama_forward.1} parent=11 // pred_region
          _
        $region28: #{wrapped_llama_forward.1} parent=11 // pred_fallthru
          _
        // Predicated region
        $region29: #{wrapped_llama_forward.1} parent=11 // pred_check
          %p365 = pneg %p156
        $region30: #{wrapped_llama_forward.1} parent=11 // pred_check_branch
          %367 = sbr.rel (%p365) target = $region32
        $region31: #{wrapped_llama_forward.1} parent=11 // pred_region
          _
        $region32: #{wrapped_llama_forward.1} parent=11 // pred_fallthru
          _
        // Predicated region
        $region33: #{wrapped_llama_forward.1} parent=11 // pred_check
          %p368 = pneg %p177
        $region34: #{wrapped_llama_forward.1} parent=11 // pred_check_branch
          %370 = sbr.rel (%p368) target = $region36
        $region35: #{wrapped_llama_forward.1} parent=11 // pred_region
          %s372 = ssub.s32 4096, 4096
          %373 = vsyncadd [#allocation9], %s372
          %s374 = sshll.u32 [#allocation8], 4
          %s375 = int_to_ptr.vmem [resolvable:$true] %s374
          %380 = dma.hbm_to_vmem [thread:$0]  %s6, 4096, %s375, [#allocation9], 256, 256, 16
        $region36: #{wrapped_llama_forward.1} parent=11 // pred_fallthru
          _
        // Predicated region
        $region37: #{wrapped_llama_forward.1} parent=11 // pred_check
          %p381 = pneg %p198
        $region38: #{wrapped_llama_forward.1} parent=11 // pred_check_branch
          %383 = sbr.rel (%p381) target = $region40
        $region39: #{wrapped_llama_forward.1} parent=11 // pred_region
          %s385 = ssub.s32 2048, 2048
          %386 = vsyncadd [#allocation9], %s385
          %s387 = sshll.u32 [#allocation10], 4
          %s388 = int_to_ptr.vmem [resolvable:$true] %s387
          %393 = dma.hbm_to_vmem [thread:$0]  %s7, 2048, %s388, [#allocation9], 128, 128, 8
        $region40: #{wrapped_llama_forward.1} parent=11 // pred_fallthru
          _
        // Predicated region
        $region41: #{wrapped_llama_forward.1} parent=11 // pred_check
          %p394 = pneg %p219
        $region42: #{wrapped_llama_forward.1} parent=11 // pred_check_branch
          %396 = sbr.rel (%p394) target = $region44
        $region43: #{wrapped_llama_forward.1} parent=11 // pred_region
          %s398 = ssub.s32 4096, 4096
          %399 = vsyncadd [#allocation12], %s398
          %s400 = sshll.u32 [#allocation11], 4
          %s401 = int_to_ptr.vmem [resolvable:$true] %s400
          %406 = dma.hbm_to_vmem [thread:$0]  %s8, 4096, %s401, [#allocation12], 256, 256, 16
        $region44: #{wrapped_llama_forward.1} parent=11 // pred_fallthru
          _
        // Predicated region
        $region45: #{wrapped_llama_forward.1} parent=11 // pred_check
          %p407 = pneg %p240
        $region46: #{wrapped_llama_forward.1} parent=11 // pred_check_branch
          %409 = sbr.rel (%p407) target = $region48
        $region47: #{wrapped_llama_forward.1} parent=11 // pred_region
          _
        $region48: #{wrapped_llama_forward.1} parent=11 // pred_fallthru
          _
        // Predicated region
        $region49: #{wrapped_llama_forward.1} parent=11 // pred_check
          %p410 = pneg %p261
        $region50: #{wrapped_llama_forward.1} parent=11 // pred_check_branch
          %412 = sbr.rel (%p410) target = $region52
        $region51: #{wrapped_llama_forward.1} parent=11 // pred_region
          _
        $region52: #{wrapped_llama_forward.1} parent=11 // pred_fallthru
          _
        // Predicated region
        $region53: #{wrapped_llama_forward.1} parent=11 // pred_check
          %p413 = pneg %p282
        $region54: #{wrapped_llama_forward.1} parent=11 // pred_check_branch
          %415 = sbr.rel (%p413) target = $region56
        $region55: #{wrapped_llama_forward.1} parent=11 // pred_region
          _
        $region56: #{wrapped_llama_forward.1} parent=11 // pred_fallthru
          _
      $region12: #{wrapped_llama_forward.1} parent=5 // pred_fallthru
        _
      %p416 = scmp.lt.s32.totalorder %s25, 2
      // Predicated region
      $region57: #{wrapped_llama_forward.1} parent=5 // pred_check
        %p417 = pneg %p416
      $region58: #{wrapped_llama_forward.1} parent=5 // pred_check_branch
        %419 = sbr.rel (%p417) target = $region60
      $region59: #{wrapped_llama_forward.1} parent=5 // pred_region
        // Predicated region
        $region61: #{wrapped_llama_forward.1} parent=59 // pred_check
          %p420 = pneg %p45
        $region62: #{wrapped_llama_forward.1} parent=59 // pred_check_branch
          %422 = sbr.rel (%p420) target = $region64
        $region63: #{wrapped_llama_forward.1} parent=59 // pred_region
          %p423 = scmp.lt.s32.totalorder %s25, 1
          %s424 = scalar_select %p423, %s25, 1
          %s425 = smul.addr %s424, 2
          %s426 = smul.addr %s425, 8
          %s427 = scalar_lea.vmem %s0, %s426
        $region64: #{wrapped_llama_forward.1} parent=59 // pred_fallthru
          _
      $region60: #{wrapped_llama_forward.1} parent=5 // pred_fallthru
        _
      %p428 = scmp.le.s32.totalorder 1, %s25
      %p429 = scmp.lt.s32.totalorder %s25, 3
      %p430 = pnand %p428, %p429
      %p431 = pneg %p430
      // Predicated region
      $region65: #{wrapped_llama_forward.1} parent=5 // pred_check
        _
      $region66: #{wrapped_llama_forward.1} parent=5 // pred_check_branch
        %433 = sbr.rel (%p430) target = $region68
      $region67: #{wrapped_llama_forward.1} parent=5 // pred_region
        %s434 = ssub.s32 %s25, 1
        // Predicated region
        $region69: #{wrapped_llama_forward.1} parent=67 // pred_check
          %p435 = pneg %p72
        $region70: #{wrapped_llama_forward.1} parent=67 // pred_check_branch
          %437 = sbr.rel (%p435) target = $region72
        $region71: #{wrapped_llama_forward.1} parent=67 // pred_region
          %438 = dma.done [#allocation3], 256
        $region72: #{wrapped_llama_forward.1} parent=67 // pred_fallthru
          _
        // Predicated region
        $region73: #{wrapped_llama_forward.1} parent=67 // pred_check
          %p439 = pneg %p93
        $region74: #{wrapped_llama_forward.1} parent=67 // pred_check_branch
          %441 = sbr.rel (%p439) target = $region76
        $region75: #{wrapped_llama_forward.1} parent=67 // pred_region
          %442 = dma.done [#allocation6], 256
        $region76: #{wrapped_llama_forward.1} parent=67 // pred_fallthru
          _
        // Predicated region
        $region77: #{wrapped_llama_forward.1} parent=67 // pred_check
          %p443 = pneg %p114
        $region78: #{wrapped_llama_forward.1} parent=67 // pred_check_branch
          %445 = sbr.rel (%p443) target = $region80
        $region79: #{wrapped_llama_forward.1} parent=67 // pred_region
          %446 = dma.done [#allocation6], 256
        $region80: #{wrapped_llama_forward.1} parent=67 // pred_fallthru
          _
        // Predicated region
        $region81: #{wrapped_llama_forward.1} parent=67 // pred_check
          %p447 = pneg %p177
        $region82: #{wrapped_llama_forward.1} parent=67 // pred_check_branch
          %449 = sbr.rel (%p447) target = $region84
        $region83: #{wrapped_llama_forward.1} parent=67 // pred_region
          %450 = dma.done [#allocation9], 4096
        $region84: #{wrapped_llama_forward.1} parent=67 // pred_fallthru
          _
        // Predicated region
        $region85: #{wrapped_llama_forward.1} parent=67 // pred_check
          %p451 = pneg %p198
        $region86: #{wrapped_llama_forward.1} parent=67 // pred_check_branch
          %453 = sbr.rel (%p451) target = $region88
        $region87: #{wrapped_llama_forward.1} parent=67 // pred_region
          %454 = dma.done [#allocation9], 2048
        $region88: #{wrapped_llama_forward.1} parent=67 // pred_fallthru
          _
        // Predicated region
        $region89: #{wrapped_llama_forward.1} parent=67 // pred_check
          %p455 = pneg %p219
        $region90: #{wrapped_llama_forward.1} parent=67 // pred_check_branch
          %457 = sbr.rel (%p455) target = $region92
        $region91: #{wrapped_llama_forward.1} parent=67 // pred_region
          %458 = dma.done [#allocation12], 4096
        $region92: #{wrapped_llama_forward.1} parent=67 // pred_fallthru
          _
        %p459 = scmp.lt.s32.totalorder %s30, 1
        %s460 = scalar_select %p459, %s30, 1
        %s461 = smul.addr %s460, 2
        %s462 = smul.addr %s461, 8
        %s463 = scalar_lea.vmem %s0, %s462
        %p464 = pneg %p51
        %p465 = pneg %p48
        %p466 = pneg %p72
        %p467 = pneg %p69
        %p468 = pneg %p93
        %p469 = pneg %p90
        %p470 = pneg %p114
        %p471 = pneg %p111
        %p472 = pneg %p135
        %p473 = pneg %p132
        %p474 = pneg %p156
        %p475 = pneg %p153
        %p476 = pneg %p177
        %p477 = pneg %p174
        %p478 = pneg %p198
        %p479 = pneg %p195
        %p480 = pneg %p219
        %p481 = pneg %p216
        %p482 = pneg %p240
        %p483 = pneg %p237
        %p484 = pneg %p261
        %p485 = pneg %p258
        %p486 = pneg %p282
        %p487 = pneg %p279
        %p488 = pneg %p308
        %p489 = pneg %p305
        %s490 = sand.u32 %s295, 1
        %s491 = scalar_lea.sflag [#allocation4], %s490
        %s492 = sand.u32 %s295, 1
        %s493 = smul.addr %s492, 16
        %s494 = scalar_lea.vmem [#allocation13], %s493
        %p495 = scmp.lt.s32.totalorder %s30, 1
        %s496 = scalar_select %p495, %s30, 1
        %s497 = smul.addr %s496, 2
        %s498 = smul.addr %s497, 8
        %s499 = scalar_lea.vmem %s0, %s498
        %v500 = vld [vmem:[%s499] sm:$0xff]
        %v501 = vld [vmem:[%s499 + $0x8] sm:$0xff]
        %v502 = vld [vmem:[#allocation2] sm:$0xff]
        %v503 = vld [vmem:[#allocation2 + $0x8] sm:$0xff]
        %v504 = vld [vmem:[#allocation5] sm:$0xff]
        %v505 = vld [vmem:[#allocation5 + $0x8] sm:$0xff]
        %v506 = vld [vmem:[#allocation7] sm:$0xff]
        %v507 = vld [vmem:[#allocation7 + $0x8] sm:$0xff]
        %v508 = vld [vmem:[%s4] sm:$0x1]
        %v509 = vmul.f32 %v500, %v500
        %v510 = vmul.f32 %v501, %v501
        %vm511 = vcmask 523264
        %v512 = vsel %vm511, %v509, 0.0
        %513 = vadd.xlane.f32.xlu0 %v512
        %v514 = vpop.xlane.xlu0 %513
        %v515 = vsel %vm511, %v510, 0.0
        %516 = vadd.xlane.f32.xlu0 %v515
        %v517 = vpop.xlane.xlu0 %516
        %v518 = vrcp.pop 64.0
        %v519 = vmul.f32 %v514, %v518
        %v520 = vmul.f32 %v517, %v518
        %v521 = vadd.f32 %v519, 1e-05
        %v522 = vadd.f32 %v520, 1e-05
        %v523 = vrsqrt.pop %v521
        %v524 = vrsqrt.pop %v522
        %v525 = vmul.f32 %v500, %v523
        %v526 = vmul.f32 %v501, %v524
        %v528 = vlaneseq
        %v529 = vshrl.u32 %v528, 7
        %v530 = vsub.s32 0, %v529
        %v531 = vrot.slane %v508, %v530
        %v533 = vmul.f32 %v525, %v531
        %v534 = vmul.f32 %v526, %v531
        %v535 = vld [vmem:[#allocation8] sm:$0xff]
        %v536 = vld [vmem:[#allocation8 + $0x8] sm:$0xff]
        %v537 = vld [vmem:[#allocation8 + $0x10] sm:$0xff]
        %v538 = vld [vmem:[#allocation8 + $0x18] sm:$0xff]
        %v539 = vld [vmem:[#allocation8 + $0x20] sm:$0xff]
        %v540 = vld [vmem:[#allocation8 + $0x28] sm:$0xff]
        %v541 = vld [vmem:[#allocation8 + $0x30] sm:$0xff]
        %v542 = vld [vmem:[#allocation8 + $0x38] sm:$0xff]
        %v543 = vld [vmem:[#allocation8 + $0x40] sm:$0xff]
        %v544 = vld [vmem:[#allocation8 + $0x48] sm:$0xff]
        %v545 = vld [vmem:[#allocation8 + $0x50] sm:$0xff]
        %v546 = vld [vmem:[#allocation8 + $0x58] sm:$0xff]
        %v547 = vld [vmem:[#allocation8 + $0x60] sm:$0xff]
        %v548 = vld [vmem:[#allocation8 + $0x68] sm:$0xff]
        %v549 = vld [vmem:[#allocation8 + $0x70] sm:$0xff]
        %v550 = vld [vmem:[#allocation8 + $0x78] sm:$0xff]
        %v552 = vsel %vm511, %v533, 0
        %v555 = vsel %vm511, %v534, 0
        %557 = vmatprep.subr.mxu0 0.0
        %558 = vmatpush1.msra.mxu0 0.0
        %559 = vmatprep.subr.mxu0 0.0
        %560 = vmatpush1.msra.mxu0 0.0
        %561 = vmatprep.subr.mxu0 0.0
        %562 = vmatpush1.msra.mxu0 0.0
        %563 = vmatprep.subr.mxu0 0.0
        %564 = vmatpush1.msra.mxu0 0.0
        %565 = vmatprep.subr.mxu0 0.0
        %566 = vmatpush1.msra.mxu0 0.0
        %567 = vmatprep.subr.mxu0 0.0
        %568 = vmatpush1.msra.mxu0 0.0
        %569 = vmatprep.subr.mxu0 0.0
        %570 = vmatpush1.msra.mxu0 0.0
        %571 = vmatprep.subr.mxu0 0.0
        %572 = vmatpush1.msra.mxu0 0.0
        %573 = vmatprep.subr.mxu0 %v550
        %574 = vmatpush1.msra.mxu0 %v549
        %575 = vmatprep.subr.mxu0 %v548
        %576 = vmatpush1.msra.mxu0 %v547
        %577 = vmatprep.subr.mxu0 %v546
        %578 = vmatpush1.msra.mxu0 %v545
        %579 = vmatprep.subr.mxu0 %v544
        %580 = vmatpush1.msra.mxu0 %v543
        %581 = vmatprep.subr.mxu0 %v542
        %582 = vmatpush1.msra.mxu0 %v541
        %583 = vmatprep.subr.mxu0 %v540
        %584 = vmatpush1.msra.mxu0 %v539
        %585 = vmatprep.subr.mxu0 %v538
        %586 = vmatpush1.msra.mxu0 %v537
        %587 = vmatprep.subr.mxu0 %v536
        %588 = vmatpush1.msra.mxu0 %v535
        %589 = vmatprep.subr.mxu0 0.0
        %590 = vmatpush2.msra.mxu0 0.0
        %591 = vmatprep.subr.mxu0 0.0
        %592 = vmatpush2.msra.mxu0 0.0
        %593 = vmatprep.subr.mxu0 0.0
        %594 = vmatpush2.msra.mxu0 0.0
        %595 = vmatprep.subr.mxu0 0.0
        %596 = vmatpush2.msra.mxu0 0.0
        %597 = vmatprep.subr.mxu0 0.0
        %598 = vmatpush2.msra.mxu0 0.0
        %599 = vmatprep.subr.mxu0 0.0
        %600 = vmatpush2.msra.mxu0 0.0
        %601 = vmatprep.subr.mxu0 0.0
        %602 = vmatpush2.msra.mxu0 0.0
        %603 = vmatprep.subr.mxu0 0.0
        %604 = vmatpush2.msra.mxu0 0.0
        %605 = vmatprep.subr.mxu0 0.0
        %606 = vmatpush2.msra.mxu0 0.0
        %607 = vmatprep.subr.mxu0 0.0
        %608 = vmatpush2.msra.mxu0 0.0
        %609 = vmatprep.subr.mxu0 0.0
        %610 = vmatpush2.msra.mxu0 0.0
        %611 = vmatprep.subr.mxu0 0.0
        %612 = vmatpush2.msra.mxu0 0.0
        %613 = vmatprep.subr.mxu0 0.0
        %614 = vmatpush2.msra.mxu0 0.0
        %615 = vmatprep.subr.mxu0 0.0
        %616 = vmatpush2.msra.mxu0 0.0
        %617 = vmatprep.subr.mxu0 0.0
        %618 = vmatpush2.msra.mxu0 0.0
        %619 = vmatprep.subr.mxu0 0.0
        %620 = vmatpush2.msra.mxu0 0.0
        %621 = vmatprep.mubr.f32.mxu0 0.0
        %622 = vmatmul.mubr.f32.gmra.mxu0 %v552
        %v623 = vpop.f32.mrf.mxu0
        %v624 = vadd.f32 0.0, %v623
        %v625 = vpop.f32.mrf.mxu0
        %v626 = vadd.f32 0.0, %v625
        %627 = vmatprep.mubr.f32.mxu0 0.0
        %628 = vmatmul.mubr.f32.gmra.mxu0 %v555
        %v629 = vpop.f32.mrf.mxu0
        %v630 = vadd.f32 0.0, %v629
        %v631 = vpop.f32.mrf.mxu0
        %v632 = vadd.f32 0.0, %v631
        %633 = vdwg.mxu0
        %v634 = vld [vmem:[#allocation10] sm:$0xff]
        %v635 = vld [vmem:[#allocation10 + $0x8] sm:$0xff]
        %v636 = vld [vmem:[#allocation10 + $0x10] sm:$0xff]
        %v637 = vld [vmem:[#allocation10 + $0x18] sm:$0xff]
        %v638 = vld [vmem:[#allocation10 + $0x20] sm:$0xff]
        %v639 = vld [vmem:[#allocation10 + $0x28] sm:$0xff]
        %v640 = vld [vmem:[#allocation10 + $0x30] sm:$0xff]
        %v641 = vld [vmem:[#allocation10 + $0x38] sm:$0xff]
        %v642 = vmul.f32 %v624, %v504
        %v643 = vmul.f32 %v630, %v505
        %646 = vrot.lane.b32.xlu0 %v506, 8
        %v647 = vpop.permute.xlu0 %646
        %648 = vrot.lane.b32.xlu0 %v507, 8
        %v649 = vpop.permute.xlu0 %648
        %v652 = vmul.f32 %v624, %v647
        %v653 = vmul.f32 %v630, %v649
        %656 = vrot.lane.b32.xlu0 %v652, 120
        %v657 = vpop.permute.xlu0 %656
        %658 = vrot.lane.b32.xlu0 %v653, 120
        %v659 = vpop.permute.xlu0 %658
        %v662 = vsub.f32 %v642, %v657
        %v663 = vsub.f32 %v643, %v659
        %v664 = vmul.f32 %v624, %v506
        %v665 = vmul.f32 %v630, %v507
        %668 = vrot.lane.b32.xlu0 %v504, 8
        %v669 = vpop.permute.xlu0 %668
        %670 = vrot.lane.b32.xlu0 %v505, 8
        %v671 = vpop.permute.xlu0 %670
        %v674 = vmul.f32 %v624, %v669
        %v675 = vmul.f32 %v630, %v671
        %678 = vrot.lane.b32.xlu0 %v674, 120
        %v679 = vpop.permute.xlu0 %678
        %680 = vrot.lane.b32.xlu0 %v675, 120
        %v681 = vpop.permute.xlu0 %680
        %v684 = vadd.f32 %v664, %v679
        %v685 = vadd.f32 %v665, %v681
        %688 = vrot.lane.b32.xlu0 %v684, 8
        %v689 = vpop.permute.xlu0 %688
        %690 = vrot.lane.b32.xlu0 %v685, 8
        %v691 = vpop.permute.xlu0 %690
        %vm694 = vcmask 64512
        %v695 = vsel %vm694, %v662, %v689
        %v696 = vsel %vm694, %v663, %v691
        %697 = vrot.lane.b32.xlu0 %v504, 64
        %v698 = vpop.permute.xlu0 %697
        %699 = vrot.lane.b32.xlu0 %v505, 64
        %v700 = vpop.permute.xlu0 %699
        %v703 = vmul.f32 %v624, %v698
        %v704 = vmul.f32 %v630, %v700
        %705 = vrot.lane.b32.xlu0 %v506, 72
        %v706 = vpop.permute.xlu0 %705
        %707 = vrot.lane.b32.xlu0 %v507, 72
        %v708 = vpop.permute.xlu0 %707
        %v711 = vmul.f32 %v624, %v706
        %v712 = vmul.f32 %v630, %v708
        %715 = vrot.lane.b32.xlu0 %v711, 120
        %v716 = vpop.permute.xlu0 %715
        %717 = vrot.lane.b32.xlu0 %v712, 120
        %v718 = vpop.permute.xlu0 %717
        %v721 = vsub.f32 %v703, %v716
        %v722 = vsub.f32 %v704, %v718
        %723 = vrot.lane.b32.xlu0 %v506, 64
        %v724 = vpop.permute.xlu0 %723
        %725 = vrot.lane.b32.xlu0 %v507, 64
        %v726 = vpop.permute.xlu0 %725
        %v729 = vmul.f32 %v624, %v724
        %v730 = vmul.f32 %v630, %v726
        %731 = vrot.lane.b32.xlu0 %v504, 72
        %v732 = vpop.permute.xlu0 %731
        %733 = vrot.lane.b32.xlu0 %v505, 72
        %v734 = vpop.permute.xlu0 %733
        %v737 = vmul.f32 %v624, %v732
        %v738 = vmul.f32 %v630, %v734
        %741 = vrot.lane.b32.xlu0 %v737, 120
        %v742 = vpop.permute.xlu0 %741
        %743 = vrot.lane.b32.xlu0 %v738, 120
        %v744 = vpop.permute.xlu0 %743
        %v747 = vadd.f32 %v729, %v742
        %v748 = vadd.f32 %v730, %v744
        %751 = vrot.lane.b32.xlu0 %v721, 64
        %v752 = vpop.permute.xlu0 %751
        %753 = vrot.lane.b32.xlu0 %v722, 64
        %v754 = vpop.permute.xlu0 %753
        %759 = vrot.lane.b32.xlu0 %v747, 72
        %v760 = vpop.permute.xlu0 %759
        %761 = vrot.lane.b32.xlu0 %v748, 72
        %v762 = vpop.permute.xlu0 %761
        %v765 = vsel %vm694, %v752, %v760
        %v766 = vsel %vm694, %v754, %v762
        %vm767 = vcmask 130048
        %v769 = vsel %vm767, %v695, 0
        %v772 = vsel %vm767, %v696, 0
        %v775 = vsel %vm767, %v765, 0
        %v778 = vsel %vm767, %v766, 0
        %780 = vmatprep.subr.mxu0 0.0
        %781 = vmatpush1.xpose.msra.mxu0 0.0
        %782 = vmatprep.subr.mxu0 0.0
        %783 = vmatpush1.xpose.msra.mxu0 0.0
        %784 = vmatprep.subr.mxu0 0.0
        %785 = vmatpush1.xpose.msra.mxu0 0.0
        %786 = vmatprep.subr.mxu0 0.0
        %787 = vmatpush1.xpose.msra.mxu0 0.0
        %788 = vmatprep.subr.mxu0 0.0
        %789 = vmatpush1.xpose.msra.mxu0 0.0
        %790 = vmatprep.subr.mxu0 0.0
        %791 = vmatpush1.xpose.msra.mxu0 0.0
        %792 = vmatprep.subr.mxu0 0.0
        %793 = vmatpush1.xpose.msra.mxu0 0.0
        %794 = vmatprep.subr.mxu0 0.0
        %795 = vmatpush1.xpose.msra.mxu0 0.0
        %796 = vmatprep.subr.mxu0 0.0
        %797 = vmatpush1.xpose.msra.mxu0 0.0
        %798 = vmatprep.subr.mxu0 0.0
        %799 = vmatpush1.xpose.msra.mxu0 0.0
        %800 = vmatprep.subr.mxu0 0.0
        %801 = vmatpush1.xpose.msra.mxu0 0.0
        %802 = vmatprep.subr.mxu0 0.0
        %803 = vmatpush1.xpose.msra.mxu0 0.0
        %804 = vmatprep.subr.mxu0 0.0
        %805 = vmatpush1.xpose.msra.mxu0 0.0
        %806 = vmatprep.subr.mxu0 0.0
        %807 = vmatpush1.xpose.msra.mxu0 0.0
        %808 = vmatprep.subr.mxu0 0.0
        %809 = vmatpush1.xpose.msra.mxu0 %v778
        %810 = vmatprep.subr.mxu0 0.0
        %811 = vmatpush1.xpose.msra.mxu0 %v775
        %812 = vmatprep.subr.mxu0 0.0
        %813 = vmatpush2.xpose.msra.mxu0 0.0
        %814 = vmatprep.subr.mxu0 0.0
        %815 = vmatpush2.xpose.msra.mxu0 0.0
        %816 = vmatprep.subr.mxu0 0.0
        %817 = vmatpush2.xpose.msra.mxu0 0.0
        %818 = vmatprep.subr.mxu0 0.0
        %819 = vmatpush2.xpose.msra.mxu0 0.0
        %820 = vmatprep.subr.mxu0 0.0
        %821 = vmatpush2.xpose.msra.mxu0 0.0
        %822 = vmatprep.subr.mxu0 0.0
        %823 = vmatpush2.xpose.msra.mxu0 0.0
        %824 = vmatprep.subr.mxu0 0.0
        %825 = vmatpush2.xpose.msra.mxu0 0.0
        %826 = vmatprep.subr.mxu0 0.0
        %827 = vmatpush2.xpose.msra.mxu0 0.0
        %828 = vmatprep.subr.mxu0 0.0
        %829 = vmatpush2.xpose.msra.mxu0 0.0
        %830 = vmatprep.subr.mxu0 0.0
        %831 = vmatpush2.xpose.msra.mxu0 0.0
        %832 = vmatprep.subr.mxu0 0.0
        %833 = vmatpush2.xpose.msra.mxu0 0.0
        %834 = vmatprep.subr.mxu0 0.0
        %835 = vmatpush2.xpose.msra.mxu0 0.0
        %836 = vmatprep.subr.mxu0 0.0
        %837 = vmatpush2.xpose.msra.mxu0 0.0
        %838 = vmatprep.subr.mxu0 0.0
        %839 = vmatpush2.xpose.msra.mxu0 0.0
        %840 = vmatprep.subr.mxu0 0.0
        %841 = vmatpush2.xpose.msra.mxu0 0.0
        %842 = vmatprep.subr.mxu0 0.0
        %843 = vmatpush2.xpose.msra.mxu0 0.0
        %844 = vmatprep.mubr.f32.mxu0 0.0
        %845 = vmatmul.mubr.f32.gmra.mxu0 %v769
        %v846 = vpop.f32.mrf.mxu0
        %v847 = vadd.f32 0.0, %v846
        %v848 = vpop.f32.mrf.mxu0
        %849 = vmatprep.mubr.f32.mxu0 0.0
        %850 = vmatmul.mubr.f32.gmra.mxu0 %v772
        %v851 = vpop.f32.mrf.mxu0
        %v852 = vadd.f32 0.0, %v851
        %v853 = vpop.f32.mrf.mxu0
        %854 = vdwg.mxu0
        %v855 = vmul.f32 %v847, 0.25
        %v856 = vmul.f32 %v852, 0.25
        %v857 = vadd.f32 %v855, %v502
        %v858 = vadd.f32 %v856, %v503
        %v859 = vsel %vm767, %v857, -inf
        %860 = vmax.xlane.f32.xlu0 %v859
        %v861 = vpop.xlane.xlu0 %860
        %v862 = vsel %vm767, %v858, -inf
        %863 = vmax.xlane.f32.xlu0 %v862
        %v864 = vpop.xlane.xlu0 %863
        %v865 = vsub.f32 %v857, %v861
        %v866 = vsub.f32 %v858, %v864
        %v867 = vmul.f32 %v865, 1.442695
        %v868 = vpow.pop %v867
        %v869 = vmul.f32 %v866, 1.442695
        %v870 = vpow.pop %v869
        %v871 = vsel %vm767, %v868, 0.0
        %872 = vadd.xlane.f32.xlu0 %v871
        %v873 = vpop.xlane.xlu0 %872
        %v874 = vsel %vm767, %v870, 0.0
        %875 = vadd.xlane.f32.xlu0 %v874
        %v876 = vpop.xlane.xlu0 %875
        %v877 = vrcp.pop %v873
        %v878 = vrcp.pop %v876
        %v879 = vmul.f32 %v868, %v877
        %v880 = vmul.f32 %v870, %v878
        %v882 = vsel %vm767, %v879, 0
        %v885 = vsel %vm767, %v880, 0
        %887 = vmatprep.subr.mxu0 0.0
        %888 = vmatpush1.msra.mxu0 0.0
        %889 = vmatprep.subr.mxu0 0.0
        %890 = vmatpush1.msra.mxu0 0.0
        %891 = vmatprep.subr.mxu0 0.0
        %892 = vmatpush1.msra.mxu0 0.0
        %893 = vmatprep.subr.mxu0 0.0
        %894 = vmatpush1.msra.mxu0 0.0
        %895 = vmatprep.subr.mxu0 0.0
        %896 = vmatpush1.msra.mxu0 0.0
        %897 = vmatprep.subr.mxu0 0.0
        %898 = vmatpush1.msra.mxu0 0.0
        %899 = vmatprep.subr.mxu0 0.0
        %900 = vmatpush1.msra.mxu0 0.0
        %901 = vmatprep.subr.mxu0 0.0
        %902 = vmatpush1.msra.mxu0 0.0
        %903 = vmatprep.subr.mxu0 0.0
        %904 = vmatpush1.msra.mxu0 0.0
        %905 = vmatprep.subr.mxu0 0.0
        %906 = vmatpush1.msra.mxu0 0.0
        %907 = vmatprep.subr.mxu0 0.0
        %908 = vmatpush1.msra.mxu0 0.0
        %909 = vmatprep.subr.mxu0 0.0
        %910 = vmatpush1.msra.mxu0 0.0
        %911 = vmatprep.subr.mxu0 0.0
        %912 = vmatpush1.msra.mxu0 0.0
        %913 = vmatprep.subr.mxu0 0.0
        %914 = vmatpush1.msra.mxu0 0.0
        %915 = vmatprep.subr.mxu0 0.0
        %916 = vmatpush1.msra.mxu0 %v632
        %917 = vmatprep.subr.mxu0 0.0
        %918 = vmatpush1.msra.mxu0 %v626
        %919 = vmatprep.subr.mxu0 0.0
        %920 = vmatpush2.msra.mxu0 0.0
        %921 = vmatprep.subr.mxu0 0.0
        %922 = vmatpush2.msra.mxu0 0.0
        %923 = vmatprep.subr.mxu0 0.0
        %924 = vmatpush2.msra.mxu0 0.0
        %925 = vmatprep.subr.mxu0 0.0
        %926 = vmatpush2.msra.mxu0 0.0
        %927 = vmatprep.subr.mxu0 0.0
        %928 = vmatpush2.msra.mxu0 0.0
        %929 = vmatprep.subr.mxu0 0.0
        %930 = vmatpush2.msra.mxu0 0.0
        %931 = vmatprep.subr.mxu0 0.0
        %932 = vmatpush2.msra.mxu0 0.0
        %933 = vmatprep.subr.mxu0 0.0
        %934 = vmatpush2.msra.mxu0 0.0
        %935 = vmatprep.subr.mxu0 0.0
        %936 = vmatpush2.msra.mxu0 0.0
        %937 = vmatprep.subr.mxu0 0.0
        %938 = vmatpush2.msra.mxu0 0.0
        %939 = vmatprep.subr.mxu0 0.0
        %940 = vmatpush2.msra.mxu0 0.0
        %941 = vmatprep.subr.mxu0 0.0
        %942 = vmatpush2.msra.mxu0 0.0
        %943 = vmatprep.subr.mxu0 0.0
        %944 = vmatpush2.msra.mxu0 0.0
        %945 = vmatprep.subr.mxu0 0.0
        %946 = vmatpush2.msra.mxu0 0.0
        %947 = vmatprep.subr.mxu0 0.0
        %948 = vmatpush2.msra.mxu0 0.0
        %949 = vmatprep.subr.mxu0 0.0
        %950 = vmatpush2.msra.mxu0 0.0
        %951 = vmatprep.mubr.f32.mxu0 0.0
        %952 = vmatmul.mubr.f32.gmra.mxu0 %v882
        %v953 = vpop.f32.mrf.mxu0
        %v954 = vadd.f32 0.0, %v953
        %v955 = vpop.f32.mrf.mxu0
        %956 = vmatprep.mubr.f32.mxu0 0.0
        %957 = vmatmul.mubr.f32.gmra.mxu0 %v885
        %v958 = vpop.f32.mrf.mxu0
        %v959 = vadd.f32 0.0, %v958
        %v960 = vpop.f32.mrf.mxu0
        %961 = vdwg.mxu0
        %962 = vrot.lane.b32.xlu0 %v504, 16
        %v963 = vpop.permute.xlu0 %962
        %964 = vrot.lane.b32.xlu0 %v505, 16
        %v965 = vpop.permute.xlu0 %964
        %v968 = vmul.f32 %v624, %v963
        %v969 = vmul.f32 %v630, %v965
        %970 = vrot.lane.b32.xlu0 %v506, 24
        %v971 = vpop.permute.xlu0 %970
        %972 = vrot.lane.b32.xlu0 %v507, 24
        %v973 = vpop.permute.xlu0 %972
        %v976 = vmul.f32 %v624, %v971
        %v977 = vmul.f32 %v630, %v973
        %980 = vrot.lane.b32.xlu0 %v976, 120
        %v981 = vpop.permute.xlu0 %980
        %982 = vrot.lane.b32.xlu0 %v977, 120
        %v983 = vpop.permute.xlu0 %982
        %v986 = vsub.f32 %v968, %v981
        %v987 = vsub.f32 %v969, %v983
        %988 = vrot.lane.b32.xlu0 %v506, 16
        %v989 = vpop.permute.xlu0 %988
        %990 = vrot.lane.b32.xlu0 %v507, 16
        %v991 = vpop.permute.xlu0 %990
        %v994 = vmul.f32 %v624, %v989
        %v995 = vmul.f32 %v630, %v991
        %996 = vrot.lane.b32.xlu0 %v504, 24
        %v997 = vpop.permute.xlu0 %996
        %998 = vrot.lane.b32.xlu0 %v505, 24
        %v999 = vpop.permute.xlu0 %998
        %v1002 = vmul.f32 %v624, %v997
        %v1003 = vmul.f32 %v630, %v999
        %1006 = vrot.lane.b32.xlu0 %v1002, 120
        %v1007 = vpop.permute.xlu0 %1006
        %1008 = vrot.lane.b32.xlu0 %v1003, 120
        %v1009 = vpop.permute.xlu0 %1008
        %v1012 = vadd.f32 %v994, %v1007
        %v1013 = vadd.f32 %v995, %v1009
        %1016 = vrot.lane.b32.xlu0 %v986, 112
        %v1017 = vpop.permute.xlu0 %1016
        %1018 = vrot.lane.b32.xlu0 %v987, 112
        %v1019 = vpop.permute.xlu0 %1018
        %1024 = vrot.lane.b32.xlu0 %v1012, 120
        %v1025 = vpop.permute.xlu0 %1024
        %1026 = vrot.lane.b32.xlu0 %v1013, 120
        %v1027 = vpop.permute.xlu0 %1026
        %v1030 = vsel %vm694, %v1017, %v1025
        %v1031 = vsel %vm694, %v1019, %v1027
        %1032 = vrot.lane.b32.xlu0 %v504, 80
        %v1033 = vpop.permute.xlu0 %1032
        %1034 = vrot.lane.b32.xlu0 %v505, 80
        %v1035 = vpop.permute.xlu0 %1034
        %v1038 = vmul.f32 %v624, %v1033
        %v1039 = vmul.f32 %v630, %v1035
        %1040 = vrot.lane.b32.xlu0 %v506, 88
        %v1041 = vpop.permute.xlu0 %1040
        %1042 = vrot.lane.b32.xlu0 %v507, 88
        %v1043 = vpop.permute.xlu0 %1042
        %v1046 = vmul.f32 %v624, %v1041
        %v1047 = vmul.f32 %v630, %v1043
        %1050 = vrot.lane.b32.xlu0 %v1046, 120
        %v1051 = vpop.permute.xlu0 %1050
        %1052 = vrot.lane.b32.xlu0 %v1047, 120
        %v1053 = vpop.permute.xlu0 %1052
        %v1056 = vsub.f32 %v1038, %v1051
        %v1057 = vsub.f32 %v1039, %v1053
        %1058 = vrot.lane.b32.xlu0 %v506, 80
        %v1059 = vpop.permute.xlu0 %1058
        %1060 = vrot.lane.b32.xlu0 %v507, 80
        %v1061 = vpop.permute.xlu0 %1060
        %v1064 = vmul.f32 %v624, %v1059
        %v1065 = vmul.f32 %v630, %v1061
        %1066 = vrot.lane.b32.xlu0 %v504, 88
        %v1067 = vpop.permute.xlu0 %1066
        %1068 = vrot.lane.b32.xlu0 %v505, 88
        %v1069 = vpop.permute.xlu0 %1068
        %v1072 = vmul.f32 %v624, %v1067
        %v1073 = vmul.f32 %v630, %v1069
        %1076 = vrot.lane.b32.xlu0 %v1072, 120
        %v1077 = vpop.permute.xlu0 %1076
        %1078 = vrot.lane.b32.xlu0 %v1073, 120
        %v1079 = vpop.permute.xlu0 %1078
        %v1082 = vadd.f32 %v1064, %v1077
        %v1083 = vadd.f32 %v1065, %v1079
        %1086 = vrot.lane.b32.xlu0 %v1056, 48
        %v1087 = vpop.permute.xlu0 %1086
        %1088 = vrot.lane.b32.xlu0 %v1057, 48
        %v1089 = vpop.permute.xlu0 %1088
        %1094 = vrot.lane.b32.xlu0 %v1082, 56
        %v1095 = vpop.permute.xlu0 %1094
        %1096 = vrot.lane.b32.xlu0 %v1083, 56
        %v1097 = vpop.permute.xlu0 %1096
        %v1100 = vsel %vm694, %v1087, %v1095
        %v1101 = vsel %vm694, %v1089, %v1097
        %v1103 = vsel %vm767, %v1030, 0
        %v1106 = vsel %vm767, %v1031, 0
        %v1109 = vsel %vm767, %v1100, 0
        %v1112 = vsel %vm767, %v1101, 0
        %1114 = vmatprep.subr.mxu0 0.0
        %1115 = vmatpush1.xpose.msra.mxu0 0.0
        %1116 = vmatprep.subr.mxu0 0.0
        %1117 = vmatpush1.xpose.msra.mxu0 0.0
        %1118 = vmatprep.subr.mxu0 0.0
        %1119 = vmatpush1.xpose.msra.mxu0 0.0
        %1120 = vmatprep.subr.mxu0 0.0
        %1121 = vmatpush1.xpose.msra.mxu0 0.0
        %1122 = vmatprep.subr.mxu0 0.0
        %1123 = vmatpush1.xpose.msra.mxu0 0.0
        %1124 = vmatprep.subr.mxu0 0.0
        %1125 = vmatpush1.xpose.msra.mxu0 0.0
        %1126 = vmatprep.subr.mxu0 0.0
        %1127 = vmatpush1.xpose.msra.mxu0 0.0
        %1128 = vmatprep.subr.mxu0 0.0
        %1129 = vmatpush1.xpose.msra.mxu0 0.0
        %1130 = vmatprep.subr.mxu0 0.0
        %1131 = vmatpush1.xpose.msra.mxu0 0.0
        %1132 = vmatprep.subr.mxu0 0.0
        %1133 = vmatpush1.xpose.msra.mxu0 0.0
        %1134 = vmatprep.subr.mxu0 0.0
        %1135 = vmatpush1.xpose.msra.mxu0 0.0
        %1136 = vmatprep.subr.mxu0 0.0
        %1137 = vmatpush1.xpose.msra.mxu0 0.0
        %1138 = vmatprep.subr.mxu0 0.0
        %1139 = vmatpush1.xpose.msra.mxu0 0.0
        %1140 = vmatprep.subr.mxu0 0.0
        %1141 = vmatpush1.xpose.msra.mxu0 0.0
        %1142 = vmatprep.subr.mxu0 0.0
        %1143 = vmatpush1.xpose.msra.mxu0 %v1112
        %1144 = vmatprep.subr.mxu0 0.0
        %1145 = vmatpush1.xpose.msra.mxu0 %v1109
        %1146 = vmatprep.subr.mxu0 0.0
        %1147 = vmatpush2.xpose.msra.mxu0 0.0
        %1148 = vmatprep.subr.mxu0 0.0
        %1149 = vmatpush2.xpose.msra.mxu0 0.0
        %1150 = vmatprep.subr.mxu0 0.0
        %1151 = vmatpush2.xpose.msra.mxu0 0.0
        %1152 = vmatprep.subr.mxu0 0.0
        %1153 = vmatpush2.xpose.msra.mxu0 0.0
        %1154 = vmatprep.subr.mxu0 0.0
        %1155 = vmatpush2.xpose.msra.mxu0 0.0
        %1156 = vmatprep.subr.mxu0 0.0
        %1157 = vmatpush2.xpose.msra.mxu0 0.0
        %1158 = vmatprep.subr.mxu0 0.0
        %1159 = vmatpush2.xpose.msra.mxu0 0.0
        %1160 = vmatprep.subr.mxu0 0.0
        %1161 = vmatpush2.xpose.msra.mxu0 0.0
        %1162 = vmatprep.subr.mxu0 0.0
        %1163 = vmatpush2.xpose.msra.mxu0 0.0
        %1164 = vmatprep.subr.mxu0 0.0
        %1165 = vmatpush2.xpose.msra.mxu0 0.0
        %1166 = vmatprep.subr.mxu0 0.0
        %1167 = vmatpush2.xpose.msra.mxu0 0.0
        %1168 = vmatprep.subr.mxu0 0.0
        %1169 = vmatpush2.xpose.msra.mxu0 0.0
        %1170 = vmatprep.subr.mxu0 0.0
        %1171 = vmatpush2.xpose.msra.mxu0 0.0
        %1172 = vmatprep.subr.mxu0 0.0
        %1173 = vmatpush2.xpose.msra.mxu0 0.0
        %1174 = vmatprep.subr.mxu0 0.0
        %1175 = vmatpush2.xpose.msra.mxu0 0.0
        %1176 = vmatprep.subr.mxu0 0.0
        %1177 = vmatpush2.xpose.msra.mxu0 0.0
        %1178 = vmatprep.mubr.f32.mxu0 0.0
        %1179 = vmatmul.mubr.f32.gmra.mxu0 %v1103
        %v1180 = vpop.f32.mrf.mxu0
        %v1181 = vadd.f32 0.0, %v1180
        %v1182 = vpop.f32.mrf.mxu0
        %1183 = vmatprep.mubr.f32.mxu0 0.0
        %1184 = vmatmul.mubr.f32.gmra.mxu0 %v1106
        %v1185 = vpop.f32.mrf.mxu0
        %v1186 = vadd.f32 0.0, %v1185
        %v1187 = vpop.f32.mrf.mxu0
        %1188 = vdwg.mxu0
        %v1189 = vmul.f32 %v1181, 0.25
        %v1190 = vmul.f32 %v1186, 0.25
        %v1191 = vadd.f32 %v1189, %v502
        %v1192 = vadd.f32 %v1190, %v503
        %v1193 = vsel %vm767, %v1191, -inf
        %1194 = vmax.xlane.f32.xlu0 %v1193
        %v1195 = vpop.xlane.xlu0 %1194
        %v1196 = vsel %vm767, %v1192, -inf
        %1197 = vmax.xlane.f32.xlu0 %v1196
        %v1198 = vpop.xlane.xlu0 %1197
        %v1199 = vsub.f32 %v1191, %v1195
        %v1200 = vsub.f32 %v1192, %v1198
        %v1201 = vmul.f32 %v1199, 1.442695
        %v1202 = vpow.pop %v1201
        %v1203 = vmul.f32 %v1200, 1.442695
        %v1204 = vpow.pop %v1203
        %v1205 = vsel %vm767, %v1202, 0.0
        %1206 = vadd.xlane.f32.xlu0 %v1205
        %v1207 = vpop.xlane.xlu0 %1206
        %v1208 = vsel %vm767, %v1204, 0.0
        %1209 = vadd.xlane.f32.xlu0 %v1208
        %v1210 = vpop.xlane.xlu0 %1209
        %v1211 = vrcp.pop %v1207
        %v1212 = vrcp.pop %v1210
        %v1213 = vmul.f32 %v1202, %v1211
        %v1214 = vmul.f32 %v1204, %v1212
        %1217 = vrot.lane.b32.xlu0 %v626, 112
        %v1218 = vpop.permute.xlu0 %1217
        %1219 = vrot.lane.b32.xlu0 %v632, 112
        %v1220 = vpop.permute.xlu0 %1219
        %v1224 = vsel %vm767, %v1213, 0
        %v1227 = vsel %vm767, %v1214, 0
        %1229 = vmatprep.subr.mxu0 0.0
        %1230 = vmatpush1.msra.mxu0 0.0
        %1231 = vmatprep.subr.mxu0 0.0
        %1232 = vmatpush1.msra.mxu0 0.0
        %1233 = vmatprep.subr.mxu0 0.0
        %1234 = vmatpush1.msra.mxu0 0.0
        %1235 = vmatprep.subr.mxu0 0.0
        %1236 = vmatpush1.msra.mxu0 0.0
        %1237 = vmatprep.subr.mxu0 0.0
        %1238 = vmatpush1.msra.mxu0 0.0
        %1239 = vmatprep.subr.mxu0 0.0
        %1240 = vmatpush1.msra.mxu0 0.0
        %1241 = vmatprep.subr.mxu0 0.0
        %1242 = vmatpush1.msra.mxu0 0.0
        %1243 = vmatprep.subr.mxu0 0.0
        %1244 = vmatpush1.msra.mxu0 0.0
        %1245 = vmatprep.subr.mxu0 0.0
        %1246 = vmatpush1.msra.mxu0 0.0
        %1247 = vmatprep.subr.mxu0 0.0
        %1248 = vmatpush1.msra.mxu0 0.0
        %1249 = vmatprep.subr.mxu0 0.0
        %1250 = vmatpush1.msra.mxu0 0.0
        %1251 = vmatprep.subr.mxu0 0.0
        %1252 = vmatpush1.msra.mxu0 0.0
        %1253 = vmatprep.subr.mxu0 0.0
        %1254 = vmatpush1.msra.mxu0 0.0
        %1255 = vmatprep.subr.mxu0 0.0
        %1256 = vmatpush1.msra.mxu0 0.0
        %1257 = vmatprep.subr.mxu0 0.0
        %1258 = vmatpush1.msra.mxu0 %v1220
        %1259 = vmatprep.subr.mxu0 0.0
        %1260 = vmatpush1.msra.mxu0 %v1218
        %1261 = vmatprep.subr.mxu0 0.0
        %1262 = vmatpush2.msra.mxu0 0.0
        %1263 = vmatprep.subr.mxu0 0.0
        %1264 = vmatpush2.msra.mxu0 0.0
        %1265 = vmatprep.subr.mxu0 0.0
        %1266 = vmatpush2.msra.mxu0 0.0
        %1267 = vmatprep.subr.mxu0 0.0
        %1268 = vmatpush2.msra.mxu0 0.0
        %1269 = vmatprep.subr.mxu0 0.0
        %1270 = vmatpush2.msra.mxu0 0.0
        %1271 = vmatprep.subr.mxu0 0.0
        %1272 = vmatpush2.msra.mxu0 0.0
        %1273 = vmatprep.subr.mxu0 0.0
        %1274 = vmatpush2.msra.mxu0 0.0
        %1275 = vmatprep.subr.mxu0 0.0
        %1276 = vmatpush2.msra.mxu0 0.0
        %1277 = vmatprep.subr.mxu0 0.0
        %1278 = vmatpush2.msra.mxu0 0.0
        %1279 = vmatprep.subr.mxu0 0.0
        %1280 = vmatpush2.msra.mxu0 0.0
        %1281 = vmatprep.subr.mxu0 0.0
        %1282 = vmatpush2.msra.mxu0 0.0
        %1283 = vmatprep.subr.mxu0 0.0
        %1284 = vmatpush2.msra.mxu0 0.0
        %1285 = vmatprep.subr.mxu0 0.0
        %1286 = vmatpush2.msra.mxu0 0.0
        %1287 = vmatprep.subr.mxu0 0.0
        %1288 = vmatpush2.msra.mxu0 0.0
        %1289 = vmatprep.subr.mxu0 0.0
        %1290 = vmatpush2.msra.mxu0 0.0
        %1291 = vmatprep.subr.mxu0 0.0
        %1292 = vmatpush2.msra.mxu0 0.0
        %1293 = vmatprep.mubr.f32.mxu0 0.0
        %1294 = vmatmul.mubr.f32.gmra.mxu0 %v1224
        %v1295 = vpop.f32.mrf.mxu0
        %v1296 = vadd.f32 0.0, %v1295
        %v1297 = vpop.f32.mrf.mxu0
        %1298 = vmatprep.mubr.f32.mxu0 0.0
        %1299 = vmatmul.mubr.f32.gmra.mxu0 %v1227
        %v1300 = vpop.f32.mrf.mxu0
        %v1301 = vadd.f32 0.0, %v1300
        %v1302 = vpop.f32.mrf.mxu0
        %1303 = vdwg.mxu0
        %v1305 = vsel %vm767, %v1296, 0
        %v1308 = vsel %vm767, %v1301, 0
        %1310 = vmatprep.subr.mxu0 0.0
        %1311 = vmatpush1.msra.mxu0 0.0
        %1312 = vmatprep.subr.mxu0 0.0
        %1313 = vmatpush1.msra.mxu0 0.0
        %1314 = vmatprep.subr.mxu0 0.0
        %1315 = vmatpush1.msra.mxu0 0.0
        %1316 = vmatprep.subr.mxu0 0.0
        %1317 = vmatpush1.msra.mxu0 0.0
        %1318 = vmatprep.subr.mxu0 0.0
        %1319 = vmatpush1.msra.mxu0 0.0
        %1320 = vmatprep.subr.mxu0 0.0
        %1321 = vmatpush1.msra.mxu0 0.0
        %1322 = vmatprep.subr.mxu0 0.0
        %1323 = vmatpush1.msra.mxu0 0.0
        %1324 = vmatprep.subr.mxu0 0.0
        %1325 = vmatpush1.msra.mxu0 0.0
        %1326 = vmatprep.subr.mxu0 0.0
        %1327 = vmatpush1.msra.mxu0 0.0
        %1328 = vmatprep.subr.mxu0 0.0
        %1329 = vmatpush1.msra.mxu0 0.0
        %1330 = vmatprep.subr.mxu0 0.0
        %1331 = vmatpush1.msra.mxu0 0.0
        %1332 = vmatprep.subr.mxu0 0.0
        %1333 = vmatpush1.msra.mxu0 0.0
        %1334 = vmatprep.subr.mxu0 0.0
        %1335 = vmatpush1.msra.mxu0 0.0
        %1336 = vmatprep.subr.mxu0 0.0
        %1337 = vmatpush1.msra.mxu0 0.0
        %1338 = vmatprep.subr.mxu0 0.0
        %1339 = vmatpush1.msra.mxu0 %v637
        %1340 = vmatprep.subr.mxu0 0.0
        %1341 = vmatpush1.msra.mxu0 %v636
        %1342 = vmatprep.subr.mxu0 0.0
        %1343 = vmatpush2.msra.mxu0 0.0
        %1344 = vmatprep.subr.mxu0 0.0
        %1345 = vmatpush2.msra.mxu0 0.0
        %1346 = vmatprep.subr.mxu0 0.0
        %1347 = vmatpush2.msra.mxu0 0.0
        %1348 = vmatprep.subr.mxu0 0.0
        %1349 = vmatpush2.msra.mxu0 0.0
        %1350 = vmatprep.subr.mxu0 0.0
        %1351 = vmatpush2.msra.mxu0 0.0
        %1352 = vmatprep.subr.mxu0 0.0
        %1353 = vmatpush2.msra.mxu0 0.0
        %1354 = vmatprep.subr.mxu0 0.0
        %1355 = vmatpush2.msra.mxu0 0.0
        %1356 = vmatprep.subr.mxu0 0.0
        %1357 = vmatpush2.msra.mxu0 0.0
        %1358 = vmatprep.subr.mxu0 0.0
        %1359 = vmatpush2.msra.mxu0 0.0
        %1360 = vmatprep.subr.mxu0 0.0
        %1361 = vmatpush2.msra.mxu0 0.0
        %1362 = vmatprep.subr.mxu0 0.0
        %1363 = vmatpush2.msra.mxu0 0.0
        %1364 = vmatprep.subr.mxu0 0.0
        %1365 = vmatpush2.msra.mxu0 0.0
        %1366 = vmatprep.subr.mxu0 0.0
        %1367 = vmatpush2.msra.mxu0 0.0
        %1368 = vmatprep.subr.mxu0 0.0
        %1369 = vmatpush2.msra.mxu0 0.0
        %1370 = vmatprep.subr.mxu0 0.0
        %1371 = vmatpush2.msra.mxu0 0.0
        %1372 = vmatprep.subr.mxu0 0.0
        %1373 = vmatpush2.msra.mxu0 0.0
        %1374 = vmatprep.mubr.f32.mxu0 0.0
        %1375 = vmatmul.mubr.f32.gmra.mxu0 %v1305
        %v1376 = vpop.f32.mrf.mxu0
        %v1377 = vadd.f32 0.0, %v1376
        %v1378 = vpop.f32.mrf.mxu0
        %1379 = vmatprep.mubr.f32.mxu0 0.0
        %1380 = vmatmul.mubr.f32.gmra.mxu0 %v1308
        %v1381 = vpop.f32.mrf.mxu0
        %v1382 = vadd.f32 0.0, %v1381
        %v1383 = vpop.f32.mrf.mxu0
        %1384 = vdwg.mxu0
        %v1386 = vsel %vm767, %v954, 0
        %v1389 = vsel %vm767, %v959, 0
        %1391 = vmatprep.subr.mxu0 0.0
        %1392 = vmatpush1.msra.mxu0 0.0
        %1393 = vmatprep.subr.mxu0 0.0
        %1394 = vmatpush1.msra.mxu0 0.0
        %1395 = vmatprep.subr.mxu0 0.0
        %1396 = vmatpush1.msra.mxu0 0.0
        %1397 = vmatprep.subr.mxu0 0.0
        %1398 = vmatpush1.msra.mxu0 0.0
        %1399 = vmatprep.subr.mxu0 0.0
        %1400 = vmatpush1.msra.mxu0 0.0
        %1401 = vmatprep.subr.mxu0 0.0
        %1402 = vmatpush1.msra.mxu0 0.0
        %1403 = vmatprep.subr.mxu0 0.0
        %1404 = vmatpush1.msra.mxu0 0.0
        %1405 = vmatprep.subr.mxu0 0.0
        %1406 = vmatpush1.msra.mxu0 0.0
        %1407 = vmatprep.subr.mxu0 0.0
        %1408 = vmatpush1.msra.mxu0 0.0
        %1409 = vmatprep.subr.mxu0 0.0
        %1410 = vmatpush1.msra.mxu0 0.0
        %1411 = vmatprep.subr.mxu0 0.0
        %1412 = vmatpush1.msra.mxu0 0.0
        %1413 = vmatprep.subr.mxu0 0.0
        %1414 = vmatpush1.msra.mxu0 0.0
        %1415 = vmatprep.subr.mxu0 0.0
        %1416 = vmatpush1.msra.mxu0 0.0
        %1417 = vmatprep.subr.mxu0 0.0
        %1418 = vmatpush1.msra.mxu0 0.0
        %1419 = vmatprep.subr.mxu0 0.0
        %1420 = vmatpush1.msra.mxu0 %v635
        %1421 = vmatprep.subr.mxu0 0.0
        %1422 = vmatpush1.msra.mxu0 %v634
        %1423 = vmatprep.subr.mxu0 0.0
        %1424 = vmatpush2.msra.mxu0 0.0
        %1425 = vmatprep.subr.mxu0 0.0
        %1426 = vmatpush2.msra.mxu0 0.0
        %1427 = vmatprep.subr.mxu0 0.0
        %1428 = vmatpush2.msra.mxu0 0.0
        %1429 = vmatprep.subr.mxu0 0.0
        %1430 = vmatpush2.msra.mxu0 0.0
        %1431 = vmatprep.subr.mxu0 0.0
        %1432 = vmatpush2.msra.mxu0 0.0
        %1433 = vmatprep.subr.mxu0 0.0
        %1434 = vmatpush2.msra.mxu0 0.0
        %1435 = vmatprep.subr.mxu0 0.0
        %1436 = vmatpush2.msra.mxu0 0.0
        %1437 = vmatprep.subr.mxu0 0.0
        %1438 = vmatpush2.msra.mxu0 0.0
        %1439 = vmatprep.subr.mxu0 0.0
        %1440 = vmatpush2.msra.mxu0 0.0
        %1441 = vmatprep.subr.mxu0 0.0
        %1442 = vmatpush2.msra.mxu0 0.0
        %1443 = vmatprep.subr.mxu0 0.0
        %1444 = vmatpush2.msra.mxu0 0.0
        %1445 = vmatprep.subr.mxu0 0.0
        %1446 = vmatpush2.msra.mxu0 0.0
        %1447 = vmatprep.subr.mxu0 0.0
        %1448 = vmatpush2.msra.mxu0 0.0
        %1449 = vmatprep.subr.mxu0 0.0
        %1450 = vmatpush2.msra.mxu0 0.0
        %1451 = vmatprep.subr.mxu0 0.0
        %1452 = vmatpush2.msra.mxu0 0.0
        %1453 = vmatprep.subr.mxu0 0.0
        %1454 = vmatpush2.msra.mxu0 0.0
        %1455 = vmatprep.mubr.f32.mxu0 0.0
        %1456 = vmatmul.mubr.f32.gmra.mxu0 %v1386
        %v1457 = vpop.f32.mrf.mxu0
        %v1458 = vadd.f32 %v1377, %v1457
        %v1459 = vpop.f32.mrf.mxu0
        %1460 = vmatprep.mubr.f32.mxu0 0.0
        %1461 = vmatmul.mubr.f32.gmra.mxu0 %v1389
        %v1462 = vpop.f32.mrf.mxu0
        %v1463 = vadd.f32 %v1382, %v1462
        %v1464 = vpop.f32.mrf.mxu0
        %1465 = vdwg.mxu0
        %1466 = vrot.lane.b32.xlu0 %v504, 32
        %v1467 = vpop.permute.xlu0 %1466
        %1468 = vrot.lane.b32.xlu0 %v505, 32
        %v1469 = vpop.permute.xlu0 %1468
        %v1472 = vmul.f32 %v624, %v1467
        %v1473 = vmul.f32 %v630, %v1469
        %1474 = vrot.lane.b32.xlu0 %v506, 40
        %v1475 = vpop.permute.xlu0 %1474
        %1476 = vrot.lane.b32.xlu0 %v507, 40
        %v1477 = vpop.permute.xlu0 %1476
        %v1480 = vmul.f32 %v624, %v1475
        %v1481 = vmul.f32 %v630, %v1477
        %1484 = vrot.lane.b32.xlu0 %v1480, 120
        %v1485 = vpop.permute.xlu0 %1484
        %1486 = vrot.lane.b32.xlu0 %v1481, 120
        %v1487 = vpop.permute.xlu0 %1486
        %v1490 = vsub.f32 %v1472, %v1485
        %v1491 = vsub.f32 %v1473, %v1487
        %1492 = vrot.lane.b32.xlu0 %v506, 32
        %v1493 = vpop.permute.xlu0 %1492
        %1494 = vrot.lane.b32.xlu0 %v507, 32
        %v1495 = vpop.permute.xlu0 %1494
        %v1498 = vmul.f32 %v624, %v1493
        %v1499 = vmul.f32 %v630, %v1495
        %1500 = vrot.lane.b32.xlu0 %v504, 40
        %v1501 = vpop.permute.xlu0 %1500
        %1502 = vrot.lane.b32.xlu0 %v505, 40
        %v1503 = vpop.permute.xlu0 %1502
        %v1506 = vmul.f32 %v624, %v1501
        %v1507 = vmul.f32 %v630, %v1503
        %1510 = vrot.lane.b32.xlu0 %v1506, 120
        %v1511 = vpop.permute.xlu0 %1510
        %1512 = vrot.lane.b32.xlu0 %v1507, 120
        %v1513 = vpop.permute.xlu0 %1512
        %v1516 = vadd.f32 %v1498, %v1511
        %v1517 = vadd.f32 %v1499, %v1513
        %1520 = vrot.lane.b32.xlu0 %v1490, 96
        %v1521 = vpop.permute.xlu0 %1520
        %1522 = vrot.lane.b32.xlu0 %v1491, 96
        %v1523 = vpop.permute.xlu0 %1522
        %1528 = vrot.lane.b32.xlu0 %v1516, 104
        %v1529 = vpop.permute.xlu0 %1528
        %1530 = vrot.lane.b32.xlu0 %v1517, 104
        %v1531 = vpop.permute.xlu0 %1530
        %v1534 = vsel %vm694, %v1521, %v1529
        %v1535 = vsel %vm694, %v1523, %v1531
        %1536 = vrot.lane.b32.xlu0 %v504, 96
        %v1537 = vpop.permute.xlu0 %1536
        %1538 = vrot.lane.b32.xlu0 %v505, 96
        %v1539 = vpop.permute.xlu0 %1538
        %v1542 = vmul.f32 %v624, %v1537
        %v1543 = vmul.f32 %v630, %v1539
        %1544 = vrot.lane.b32.xlu0 %v506, 104
        %v1545 = vpop.permute.xlu0 %1544
        %1546 = vrot.lane.b32.xlu0 %v507, 104
        %v1547 = vpop.permute.xlu0 %1546
        %v1550 = vmul.f32 %v624, %v1545
        %v1551 = vmul.f32 %v630, %v1547
        %1554 = vrot.lane.b32.xlu0 %v1550, 120
        %v1555 = vpop.permute.xlu0 %1554
        %1556 = vrot.lane.b32.xlu0 %v1551, 120
        %v1557 = vpop.permute.xlu0 %1556
        %v1560 = vsub.f32 %v1542, %v1555
        %v1561 = vsub.f32 %v1543, %v1557
        %1562 = vrot.lane.b32.xlu0 %v506, 96
        %v1563 = vpop.permute.xlu0 %1562
        %1564 = vrot.lane.b32.xlu0 %v507, 96
        %v1565 = vpop.permute.xlu0 %1564
        %v1568 = vmul.f32 %v624, %v1563
        %v1569 = vmul.f32 %v630, %v1565
        %1570 = vrot.lane.b32.xlu0 %v504, 104
        %v1571 = vpop.permute.xlu0 %1570
        %1572 = vrot.lane.b32.xlu0 %v505, 104
        %v1573 = vpop.permute.xlu0 %1572
        %v1576 = vmul.f32 %v624, %v1571
        %v1577 = vmul.f32 %v630, %v1573
        %1580 = vrot.lane.b32.xlu0 %v1576, 120
        %v1581 = vpop.permute.xlu0 %1580
        %1582 = vrot.lane.b32.xlu0 %v1577, 120
        %v1583 = vpop.permute.xlu0 %1582
        %v1586 = vadd.f32 %v1568, %v1581
        %v1587 = vadd.f32 %v1569, %v1583
        %1590 = vrot.lane.b32.xlu0 %v1560, 32
        %v1591 = vpop.permute.xlu0 %1590
        %1592 = vrot.lane.b32.xlu0 %v1561, 32
        %v1593 = vpop.permute.xlu0 %1592
        %1598 = vrot.lane.b32.xlu0 %v1586, 40
        %v1599 = vpop.permute.xlu0 %1598
        %1600 = vrot.lane.b32.xlu0 %v1587, 40
        %v1601 = vpop.permute.xlu0 %1600
        %v1604 = vsel %vm694, %v1591, %v1599
        %v1605 = vsel %vm694, %v1593, %v1601
        %v1607 = vsel %vm767, %v1534, 0
        %v1610 = vsel %vm767, %v1535, 0
        %v1613 = vsel %vm767, %v1604, 0
        %v1616 = vsel %vm767, %v1605, 0
        %1618 = vmatprep.subr.mxu0 0.0
        %1619 = vmatpush1.xpose.msra.mxu0 0.0
        %1620 = vmatprep.subr.mxu0 0.0
        %1621 = vmatpush1.xpose.msra.mxu0 0.0
        %1622 = vmatprep.subr.mxu0 0.0
        %1623 = vmatpush1.xpose.msra.mxu0 0.0
        %1624 = vmatprep.subr.mxu0 0.0
        %1625 = vmatpush1.xpose.msra.mxu0 0.0
        %1626 = vmatprep.subr.mxu0 0.0
        %1627 = vmatpush1.xpose.msra.mxu0 0.0
        %1628 = vmatprep.subr.mxu0 0.0
        %1629 = vmatpush1.xpose.msra.mxu0 0.0
        %1630 = vmatprep.subr.mxu0 0.0
        %1631 = vmatpush1.xpose.msra.mxu0 0.0
        %1632 = vmatprep.subr.mxu0 0.0
        %1633 = vmatpush1.xpose.msra.mxu0 0.0
        %1634 = vmatprep.subr.mxu0 0.0
        %1635 = vmatpush1.xpose.msra.mxu0 0.0
        %1636 = vmatprep.subr.mxu0 0.0
        %1637 = vmatpush1.xpose.msra.mxu0 0.0
        %1638 = vmatprep.subr.mxu0 0.0
        %1639 = vmatpush1.xpose.msra.mxu0 0.0
        %1640 = vmatprep.subr.mxu0 0.0
        %1641 = vmatpush1.xpose.msra.mxu0 0.0
        %1642 = vmatprep.subr.mxu0 0.0
        %1643 = vmatpush1.xpose.msra.mxu0 0.0
        %1644 = vmatprep.subr.mxu0 0.0
        %1645 = vmatpush1.xpose.msra.mxu0 0.0
        %1646 = vmatprep.subr.mxu0 0.0
        %1647 = vmatpush1.xpose.msra.mxu0 %v1616
        %1648 = vmatprep.subr.mxu0 0.0
        %1649 = vmatpush1.xpose.msra.mxu0 %v1613
        %1650 = vmatprep.subr.mxu0 0.0
        %1651 = vmatpush2.xpose.msra.mxu0 0.0
        %1652 = vmatprep.subr.mxu0 0.0
        %1653 = vmatpush2.xpose.msra.mxu0 0.0
        %1654 = vmatprep.subr.mxu0 0.0
        %1655 = vmatpush2.xpose.msra.mxu0 0.0
        %1656 = vmatprep.subr.mxu0 0.0
        %1657 = vmatpush2.xpose.msra.mxu0 0.0
        %1658 = vmatprep.subr.mxu0 0.0
        %1659 = vmatpush2.xpose.msra.mxu0 0.0
        %1660 = vmatprep.subr.mxu0 0.0
        %1661 = vmatpush2.xpose.msra.mxu0 0.0
        %1662 = vmatprep.subr.mxu0 0.0
        %1663 = vmatpush2.xpose.msra.mxu0 0.0
        %1664 = vmatprep.subr.mxu0 0.0
        %1665 = vmatpush2.xpose.msra.mxu0 0.0
        %1666 = vmatprep.subr.mxu0 0.0
        %1667 = vmatpush2.xpose.msra.mxu0 0.0
        %1668 = vmatprep.subr.mxu0 0.0
        %1669 = vmatpush2.xpose.msra.mxu0 0.0
        %1670 = vmatprep.subr.mxu0 0.0
        %1671 = vmatpush2.xpose.msra.mxu0 0.0
        %1672 = vmatprep.subr.mxu0 0.0
        %1673 = vmatpush2.xpose.msra.mxu0 0.0
        %1674 = vmatprep.subr.mxu0 0.0
        %1675 = vmatpush2.xpose.msra.mxu0 0.0
        %1676 = vmatprep.subr.mxu0 0.0
        %1677 = vmatpush2.xpose.msra.mxu0 0.0
        %1678 = vmatprep.subr.mxu0 0.0
        %1679 = vmatpush2.xpose.msra.mxu0 0.0
        %1680 = vmatprep.subr.mxu0 0.0
        %1681 = vmatpush2.xpose.msra.mxu0 0.0
        %1682 = vmatprep.mubr.f32.mxu0 0.0
        %1683 = vmatmul.mubr.f32.gmra.mxu0 %v1607
        %v1684 = vpop.f32.mrf.mxu0
        %v1685 = vadd.f32 0.0, %v1684
        %v1686 = vpop.f32.mrf.mxu0
        %1687 = vmatprep.mubr.f32.mxu0 0.0
        %1688 = vmatmul.mubr.f32.gmra.mxu0 %v1610
        %v1689 = vpop.f32.mrf.mxu0
        %v1690 = vadd.f32 0.0, %v1689
        %v1691 = vpop.f32.mrf.mxu0
        %1692 = vdwg.mxu0
        %v1693 = vmul.f32 %v1685, 0.25
        %v1694 = vmul.f32 %v1690, 0.25
        %v1695 = vadd.f32 %v1693, %v502
        %v1696 = vadd.f32 %v1694, %v503
        %v1697 = vsel %vm767, %v1695, -inf
        %1698 = vmax.xlane.f32.xlu0 %v1697
        %v1699 = vpop.xlane.xlu0 %1698
        %v1700 = vsel %vm767, %v1696, -inf
        %1701 = vmax.xlane.f32.xlu0 %v1700
        %v1702 = vpop.xlane.xlu0 %1701
        %v1703 = vsub.f32 %v1695, %v1699
        %v1704 = vsub.f32 %v1696, %v1702
        %v1705 = vmul.f32 %v1703, 1.442695
        %v1706 = vpow.pop %v1705
        %v1707 = vmul.f32 %v1704, 1.442695
        %v1708 = vpow.pop %v1707
        %v1709 = vsel %vm767, %v1706, 0.0
        %1710 = vadd.xlane.f32.xlu0 %v1709
        %v1711 = vpop.xlane.xlu0 %1710
        %v1712 = vsel %vm767, %v1708, 0.0
        %1713 = vadd.xlane.f32.xlu0 %v1712
        %v1714 = vpop.xlane.xlu0 %1713
        %v1715 = vrcp.pop %v1711
        %v1716 = vrcp.pop %v1714
        %v1717 = vmul.f32 %v1706, %v1715
        %v1718 = vmul.f32 %v1708, %v1716
        %1719 = vrot.lane.b32.xlu0 %v626, 96
        %v1720 = vpop.permute.xlu0 %1719
        %1721 = vrot.lane.b32.xlu0 %v632, 96
        %v1722 = vpop.permute.xlu0 %1721
        %v1726 = vsel %vm767, %v1717, 0
        %v1729 = vsel %vm767, %v1718, 0
        %1731 = vmatprep.subr.mxu0 0.0
        %1732 = vmatpush1.msra.mxu0 0.0
        %1733 = vmatprep.subr.mxu0 0.0
        %1734 = vmatpush1.msra.mxu0 0.0
        %1735 = vmatprep.subr.mxu0 0.0
        %1736 = vmatpush1.msra.mxu0 0.0
        %1737 = vmatprep.subr.mxu0 0.0
        %1738 = vmatpush1.msra.mxu0 0.0
        %1739 = vmatprep.subr.mxu0 0.0
        %1740 = vmatpush1.msra.mxu0 0.0
        %1741 = vmatprep.subr.mxu0 0.0
        %1742 = vmatpush1.msra.mxu0 0.0
        %1743 = vmatprep.subr.mxu0 0.0
        %1744 = vmatpush1.msra.mxu0 0.0
        %1745 = vmatprep.subr.mxu0 0.0
        %1746 = vmatpush1.msra.mxu0 0.0
        %1747 = vmatprep.subr.mxu0 0.0
        %1748 = vmatpush1.msra.mxu0 0.0
        %1749 = vmatprep.subr.mxu0 0.0
        %1750 = vmatpush1.msra.mxu0 0.0
        %1751 = vmatprep.subr.mxu0 0.0
        %1752 = vmatpush1.msra.mxu0 0.0
        %1753 = vmatprep.subr.mxu0 0.0
        %1754 = vmatpush1.msra.mxu0 0.0
        %1755 = vmatprep.subr.mxu0 0.0
        %1756 = vmatpush1.msra.mxu0 0.0
        %1757 = vmatprep.subr.mxu0 0.0
        %1758 = vmatpush1.msra.mxu0 0.0
        %1759 = vmatprep.subr.mxu0 0.0
        %1760 = vmatpush1.msra.mxu0 %v1722
        %1761 = vmatprep.subr.mxu0 0.0
        %1762 = vmatpush1.msra.mxu0 %v1720
        %1763 = vmatprep.subr.mxu0 0.0
        %1764 = vmatpush2.msra.mxu0 0.0
        %1765 = vmatprep.subr.mxu0 0.0
        %1766 = vmatpush2.msra.mxu0 0.0
        %1767 = vmatprep.subr.mxu0 0.0
        %1768 = vmatpush2.msra.mxu0 0.0
        %1769 = vmatprep.subr.mxu0 0.0
        %1770 = vmatpush2.msra.mxu0 0.0
        %1771 = vmatprep.subr.mxu0 0.0
        %1772 = vmatpush2.msra.mxu0 0.0
        %1773 = vmatprep.subr.mxu0 0.0
        %1774 = vmatpush2.msra.mxu0 0.0
        %1775 = vmatprep.subr.mxu0 0.0
        %1776 = vmatpush2.msra.mxu0 0.0
        %1777 = vmatprep.subr.mxu0 0.0
        %1778 = vmatpush2.msra.mxu0 0.0
        %1779 = vmatprep.subr.mxu0 0.0
        %1780 = vmatpush2.msra.mxu0 0.0
        %1781 = vmatprep.subr.mxu0 0.0
        %1782 = vmatpush2.msra.mxu0 0.0
        %1783 = vmatprep.subr.mxu0 0.0
        %1784 = vmatpush2.msra.mxu0 0.0
        %1785 = vmatprep.subr.mxu0 0.0
        %1786 = vmatpush2.msra.mxu0 0.0
        %1787 = vmatprep.subr.mxu0 0.0
        %1788 = vmatpush2.msra.mxu0 0.0
        %1789 = vmatprep.subr.mxu0 0.0
        %1790 = vmatpush2.msra.mxu0 0.0
        %1791 = vmatprep.subr.mxu0 0.0
        %1792 = vmatpush2.msra.mxu0 0.0
        %1793 = vmatprep.subr.mxu0 0.0
        %1794 = vmatpush2.msra.mxu0 0.0
        %1795 = vmatprep.mubr.f32.mxu0 0.0
        %1796 = vmatmul.mubr.f32.gmra.mxu0 %v1726
        %v1797 = vpop.f32.mrf.mxu0
        %v1798 = vadd.f32 0.0, %v1797
        %v1799 = vpop.f32.mrf.mxu0
        %1800 = vmatprep.mubr.f32.mxu0 0.0
        %1801 = vmatmul.mubr.f32.gmra.mxu0 %v1729
        %v1802 = vpop.f32.mrf.mxu0
        %v1803 = vadd.f32 0.0, %v1802
        %v1804 = vpop.f32.mrf.mxu0
        %1805 = vdwg.mxu0
        %v1807 = vsel %vm767, %v1798, 0
        %v1810 = vsel %vm767, %v1803, 0
        %1812 = vmatprep.subr.mxu0 0.0
        %1813 = vmatpush1.msra.mxu0 0.0
        %1814 = vmatprep.subr.mxu0 0.0
        %1815 = vmatpush1.msra.mxu0 0.0
        %1816 = vmatprep.subr.mxu0 0.0
        %1817 = vmatpush1.msra.mxu0 0.0
        %1818 = vmatprep.subr.mxu0 0.0
        %1819 = vmatpush1.msra.mxu0 0.0
        %1820 = vmatprep.subr.mxu0 0.0
        %1821 = vmatpush1.msra.mxu0 0.0
        %1822 = vmatprep.subr.mxu0 0.0
        %1823 = vmatpush1.msra.mxu0 0.0
        %1824 = vmatprep.subr.mxu0 0.0
        %1825 = vmatpush1.msra.mxu0 0.0
        %1826 = vmatprep.subr.mxu0 0.0
        %1827 = vmatpush1.msra.mxu0 0.0
        %1828 = vmatprep.subr.mxu0 0.0
        %1829 = vmatpush1.msra.mxu0 0.0
        %1830 = vmatprep.subr.mxu0 0.0
        %1831 = vmatpush1.msra.mxu0 0.0
        %1832 = vmatprep.subr.mxu0 0.0
        %1833 = vmatpush1.msra.mxu0 0.0
        %1834 = vmatprep.subr.mxu0 0.0
        %1835 = vmatpush1.msra.mxu0 0.0
        %1836 = vmatprep.subr.mxu0 0.0
        %1837 = vmatpush1.msra.mxu0 0.0
        %1838 = vmatprep.subr.mxu0 0.0
        %1839 = vmatpush1.msra.mxu0 0.0
        %1840 = vmatprep.subr.mxu0 0.0
        %1841 = vmatpush1.msra.mxu0 %v639
        %1842 = vmatprep.subr.mxu0 0.0
        %1843 = vmatpush1.msra.mxu0 %v638
        %1844 = vmatprep.subr.mxu0 0.0
        %1845 = vmatpush2.msra.mxu0 0.0
        %1846 = vmatprep.subr.mxu0 0.0
        %1847 = vmatpush2.msra.mxu0 0.0
        %1848 = vmatprep.subr.mxu0 0.0
        %1849 = vmatpush2.msra.mxu0 0.0
        %1850 = vmatprep.subr.mxu0 0.0
        %1851 = vmatpush2.msra.mxu0 0.0
        %1852 = vmatprep.subr.mxu0 0.0
        %1853 = vmatpush2.msra.mxu0 0.0
        %1854 = vmatprep.subr.mxu0 0.0
        %1855 = vmatpush2.msra.mxu0 0.0
        %1856 = vmatprep.subr.mxu0 0.0
        %1857 = vmatpush2.msra.mxu0 0.0
        %1858 = vmatprep.subr.mxu0 0.0
        %1859 = vmatpush2.msra.mxu0 0.0
        %1860 = vmatprep.subr.mxu0 0.0
        %1861 = vmatpush2.msra.mxu0 0.0
        %1862 = vmatprep.subr.mxu0 0.0
        %1863 = vmatpush2.msra.mxu0 0.0
        %1864 = vmatprep.subr.mxu0 0.0
        %1865 = vmatpush2.msra.mxu0 0.0
        %1866 = vmatprep.subr.mxu0 0.0
        %1867 = vmatpush2.msra.mxu0 0.0
        %1868 = vmatprep.subr.mxu0 0.0
        %1869 = vmatpush2.msra.mxu0 0.0
        %1870 = vmatprep.subr.mxu0 0.0
        %1871 = vmatpush2.msra.mxu0 0.0
        %1872 = vmatprep.subr.mxu0 0.0
        %1873 = vmatpush2.msra.mxu0 0.0
        %1874 = vmatprep.subr.mxu0 0.0
        %1875 = vmatpush2.msra.mxu0 0.0
        %1876 = vmatprep.mubr.f32.mxu0 0.0
        %1877 = vmatmul.mubr.f32.gmra.mxu0 %v1807
        %v1878 = vpop.f32.mrf.mxu0
        %v1879 = vadd.f32 0.0, %v1878
        %v1880 = vpop.f32.mrf.mxu0
        %1881 = vmatprep.mubr.f32.mxu0 0.0
        %1882 = vmatmul.mubr.f32.gmra.mxu0 %v1810
        %v1883 = vpop.f32.mrf.mxu0
        %v1884 = vadd.f32 0.0, %v1883
        %v1885 = vpop.f32.mrf.mxu0
        %1886 = vdwg.mxu0
        %v1887 = vadd.f32 %v1458, %v1879
        %v1888 = vadd.f32 %v1463, %v1884
        %1889 = vrot.lane.b32.xlu0 %v504, 48
        %v1890 = vpop.permute.xlu0 %1889
        %1891 = vrot.lane.b32.xlu0 %v505, 48
        %v1892 = vpop.permute.xlu0 %1891
        %v1895 = vmul.f32 %v624, %v1890
        %v1896 = vmul.f32 %v630, %v1892
        %1897 = vrot.lane.b32.xlu0 %v506, 56
        %v1898 = vpop.permute.xlu0 %1897
        %1899 = vrot.lane.b32.xlu0 %v507, 56
        %v1900 = vpop.permute.xlu0 %1899
        %v1903 = vmul.f32 %v624, %v1898
        %v1904 = vmul.f32 %v630, %v1900
        %1907 = vrot.lane.b32.xlu0 %v1903, 120
        %v1908 = vpop.permute.xlu0 %1907
        %1909 = vrot.lane.b32.xlu0 %v1904, 120
        %v1910 = vpop.permute.xlu0 %1909
        %v1913 = vsub.f32 %v1895, %v1908
        %v1914 = vsub.f32 %v1896, %v1910
        %1915 = vrot.lane.b32.xlu0 %v506, 48
        %v1916 = vpop.permute.xlu0 %1915
        %1917 = vrot.lane.b32.xlu0 %v507, 48
        %v1918 = vpop.permute.xlu0 %1917
        %v1921 = vmul.f32 %v624, %v1916
        %v1922 = vmul.f32 %v630, %v1918
        %1923 = vrot.lane.b32.xlu0 %v504, 56
        %v1924 = vpop.permute.xlu0 %1923
        %1925 = vrot.lane.b32.xlu0 %v505, 56
        %v1926 = vpop.permute.xlu0 %1925
        %v1929 = vmul.f32 %v624, %v1924
        %v1930 = vmul.f32 %v630, %v1926
        %1933 = vrot.lane.b32.xlu0 %v1929, 120
        %v1934 = vpop.permute.xlu0 %1933
        %1935 = vrot.lane.b32.xlu0 %v1930, 120
        %v1936 = vpop.permute.xlu0 %1935
        %v1939 = vadd.f32 %v1921, %v1934
        %v1940 = vadd.f32 %v1922, %v1936
        %1943 = vrot.lane.b32.xlu0 %v1913, 80
        %v1944 = vpop.permute.xlu0 %1943
        %1945 = vrot.lane.b32.xlu0 %v1914, 80
        %v1946 = vpop.permute.xlu0 %1945
        %1951 = vrot.lane.b32.xlu0 %v1939, 88
        %v1952 = vpop.permute.xlu0 %1951
        %1953 = vrot.lane.b32.xlu0 %v1940, 88
        %v1954 = vpop.permute.xlu0 %1953
        %v1957 = vsel %vm694, %v1944, %v1952
        %v1958 = vsel %vm694, %v1946, %v1954
        %1959 = vrot.lane.b32.xlu0 %v504, 112
        %v1960 = vpop.permute.xlu0 %1959
        %1961 = vrot.lane.b32.xlu0 %v505, 112
        %v1962 = vpop.permute.xlu0 %1961
        %v1965 = vmul.f32 %v624, %v1960
        %v1966 = vmul.f32 %v630, %v1962
        %1967 = vrot.lane.b32.xlu0 %v506, 120
        %v1968 = vpop.permute.xlu0 %1967
        %1969 = vrot.lane.b32.xlu0 %v507, 120
        %v1970 = vpop.permute.xlu0 %1969
        %v1973 = vmul.f32 %v624, %v1968
        %v1974 = vmul.f32 %v630, %v1970
        %1977 = vrot.lane.b32.xlu0 %v1973, 120
        %v1978 = vpop.permute.xlu0 %1977
        %1979 = vrot.lane.b32.xlu0 %v1974, 120
        %v1980 = vpop.permute.xlu0 %1979
        %v1983 = vsub.f32 %v1965, %v1978
        %v1984 = vsub.f32 %v1966, %v1980
        %1985 = vrot.lane.b32.xlu0 %v506, 112
        %v1986 = vpop.permute.xlu0 %1985
        %1987 = vrot.lane.b32.xlu0 %v507, 112
        %v1988 = vpop.permute.xlu0 %1987
        %v1991 = vmul.f32 %v624, %v1986
        %v1992 = vmul.f32 %v630, %v1988
        %1993 = vrot.lane.b32.xlu0 %v504, 120
        %v1994 = vpop.permute.xlu0 %1993
        %1995 = vrot.lane.b32.xlu0 %v505, 120
        %v1996 = vpop.permute.xlu0 %1995
        %v1999 = vmul.f32 %v624, %v1994
        %v2000 = vmul.f32 %v630, %v1996
        %2003 = vrot.lane.b32.xlu0 %v1999, 120
        %v2004 = vpop.permute.xlu0 %2003
        %2005 = vrot.lane.b32.xlu0 %v2000, 120
        %v2006 = vpop.permute.xlu0 %2005
        %v2009 = vadd.f32 %v1991, %v2004
        %v2010 = vadd.f32 %v1992, %v2006
        %2013 = vrot.lane.b32.xlu0 %v1983, 16
        %v2014 = vpop.permute.xlu0 %2013
        %2015 = vrot.lane.b32.xlu0 %v1984, 16
        %v2016 = vpop.permute.xlu0 %2015
        %2021 = vrot.lane.b32.xlu0 %v2009, 24
        %v2022 = vpop.permute.xlu0 %2021
        %2023 = vrot.lane.b32.xlu0 %v2010, 24
        %v2024 = vpop.permute.xlu0 %2023
        %v2027 = vsel %vm694, %v2014, %v2022
        %v2028 = vsel %vm694, %v2016, %v2024
        %v2030 = vsel %vm767, %v1957, 0
        %v2033 = vsel %vm767, %v1958, 0
        %v2036 = vsel %vm767, %v2027, 0
        %v2039 = vsel %vm767, %v2028, 0
        %2041 = vmatprep.subr.mxu0 0.0
        %2042 = vmatpush1.xpose.msra.mxu0 0.0
        %2043 = vmatprep.subr.mxu0 0.0
        %2044 = vmatpush1.xpose.msra.mxu0 0.0
        %2045 = vmatprep.subr.mxu0 0.0
        %2046 = vmatpush1.xpose.msra.mxu0 0.0
        %2047 = vmatprep.subr.mxu0 0.0
        %2048 = vmatpush1.xpose.msra.mxu0 0.0
        %2049 = vmatprep.subr.mxu0 0.0
        %2050 = vmatpush1.xpose.msra.mxu0 0.0
        %2051 = vmatprep.subr.mxu0 0.0
        %2052 = vmatpush1.xpose.msra.mxu0 0.0
        %2053 = vmatprep.subr.mxu0 0.0
        %2054 = vmatpush1.xpose.msra.mxu0 0.0
        %2055 = vmatprep.subr.mxu0 0.0
        %2056 = vmatpush1.xpose.msra.mxu0 0.0
        %2057 = vmatprep.subr.mxu0 0.0
        %2058 = vmatpush1.xpose.msra.mxu0 0.0
        %2059 = vmatprep.subr.mxu0 0.0
        %2060 = vmatpush1.xpose.msra.mxu0 0.0
        %2061 = vmatprep.subr.mxu0 0.0
        %2062 = vmatpush1.xpose.msra.mxu0 0.0
        %2063 = vmatprep.subr.mxu0 0.0
        %2064 = vmatpush1.xpose.msra.mxu0 0.0
        %2065 = vmatprep.subr.mxu0 0.0
        %2066 = vmatpush1.xpose.msra.mxu0 0.0
        %2067 = vmatprep.subr.mxu0 0.0
        %2068 = vmatpush1.xpose.msra.mxu0 0.0
        %2069 = vmatprep.subr.mxu0 0.0
        %2070 = vmatpush1.xpose.msra.mxu0 %v2039
        %2071 = vmatprep.subr.mxu0 0.0
        %2072 = vmatpush1.xpose.msra.mxu0 %v2036
        %2073 = vmatprep.subr.mxu0 0.0
        %2074 = vmatpush2.xpose.msra.mxu0 0.0
        %2075 = vmatprep.subr.mxu0 0.0
        %2076 = vmatpush2.xpose.msra.mxu0 0.0
        %2077 = vmatprep.subr.mxu0 0.0
        %2078 = vmatpush2.xpose.msra.mxu0 0.0
        %2079 = vmatprep.subr.mxu0 0.0
        %2080 = vmatpush2.xpose.msra.mxu0 0.0
        %2081 = vmatprep.subr.mxu0 0.0
        %2082 = vmatpush2.xpose.msra.mxu0 0.0
        %2083 = vmatprep.subr.mxu0 0.0
        %2084 = vmatpush2.xpose.msra.mxu0 0.0
        %2085 = vmatprep.subr.mxu0 0.0
        %2086 = vmatpush2.xpose.msra.mxu0 0.0
        %2087 = vmatprep.subr.mxu0 0.0
        %2088 = vmatpush2.xpose.msra.mxu0 0.0
        %2089 = vmatprep.subr.mxu0 0.0
        %2090 = vmatpush2.xpose.msra.mxu0 0.0
        %2091 = vmatprep.subr.mxu0 0.0
        %2092 = vmatpush2.xpose.msra.mxu0 0.0
        %2093 = vmatprep.subr.mxu0 0.0
        %2094 = vmatpush2.xpose.msra.mxu0 0.0
        %2095 = vmatprep.subr.mxu0 0.0
        %2096 = vmatpush2.xpose.msra.mxu0 0.0
        %2097 = vmatprep.subr.mxu0 0.0
        %2098 = vmatpush2.xpose.msra.mxu0 0.0
        %2099 = vmatprep.subr.mxu0 0.0
        %2100 = vmatpush2.xpose.msra.mxu0 0.0
        %2101 = vmatprep.subr.mxu0 0.0
        %2102 = vmatpush2.xpose.msra.mxu0 0.0
        %2103 = vmatprep.subr.mxu0 0.0
        %2104 = vmatpush2.xpose.msra.mxu0 0.0
        %2105 = vmatprep.mubr.f32.mxu0 0.0
        %2106 = vmatmul.mubr.f32.gmra.mxu0 %v2030
        %v2107 = vpop.f32.mrf.mxu0
        %v2108 = vadd.f32 0.0, %v2107
        %v2109 = vpop.f32.mrf.mxu0
        %2110 = vmatprep.mubr.f32.mxu0 0.0
        %2111 = vmatmul.mubr.f32.gmra.mxu0 %v2033
        %v2112 = vpop.f32.mrf.mxu0
        %v2113 = vadd.f32 0.0, %v2112
        %v2114 = vpop.f32.mrf.mxu0
        %2115 = vdwg.mxu0
        %v2116 = vmul.f32 %v2108, 0.25
        %v2117 = vmul.f32 %v2113, 0.25
        %v2118 = vadd.f32 %v2116, %v502
        %v2119 = vadd.f32 %v2117, %v503
        %v2120 = vsel %vm767, %v2118, -inf
        %2121 = vmax.xlane.f32.xlu0 %v2120
        %v2122 = vpop.xlane.xlu0 %2121
        %v2123 = vsel %vm767, %v2119, -inf
        %2124 = vmax.xlane.f32.xlu0 %v2123
        %v2125 = vpop.xlane.xlu0 %2124
        %v2126 = vsub.f32 %v2118, %v2122
        %v2127 = vsub.f32 %v2119, %v2125
        %v2128 = vmul.f32 %v2126, 1.442695
        %v2129 = vpow.pop %v2128
        %v2130 = vmul.f32 %v2127, 1.442695
        %v2131 = vpow.pop %v2130
        %v2132 = vsel %vm767, %v2129, 0.0
        %2133 = vadd.xlane.f32.xlu0 %v2132
        %v2134 = vpop.xlane.xlu0 %2133
        %v2135 = vsel %vm767, %v2131, 0.0
        %2136 = vadd.xlane.f32.xlu0 %v2135
        %v2137 = vpop.xlane.xlu0 %2136
        %v2138 = vrcp.pop %v2134
        %v2139 = vrcp.pop %v2137
        %v2140 = vmul.f32 %v2129, %v2138
        %v2141 = vmul.f32 %v2131, %v2139
        %2142 = vrot.lane.b32.xlu0 %v626, 80
        %v2143 = vpop.permute.xlu0 %2142
        %2144 = vrot.lane.b32.xlu0 %v632, 80
        %v2145 = vpop.permute.xlu0 %2144
        %v2149 = vsel %vm767, %v2140, 0
        %v2152 = vsel %vm767, %v2141, 0
        %2154 = vmatprep.subr.mxu0 0.0
        %2155 = vmatpush1.msra.mxu0 0.0
        %2156 = vmatprep.subr.mxu0 0.0
        %2157 = vmatpush1.msra.mxu0 0.0
        %2158 = vmatprep.subr.mxu0 0.0
        %2159 = vmatpush1.msra.mxu0 0.0
        %2160 = vmatprep.subr.mxu0 0.0
        %2161 = vmatpush1.msra.mxu0 0.0
        %2162 = vmatprep.subr.mxu0 0.0
        %2163 = vmatpush1.msra.mxu0 0.0
        %2164 = vmatprep.subr.mxu0 0.0
        %2165 = vmatpush1.msra.mxu0 0.0
        %2166 = vmatprep.subr.mxu0 0.0
        %2167 = vmatpush1.msra.mxu0 0.0
        %2168 = vmatprep.subr.mxu0 0.0
        %2169 = vmatpush1.msra.mxu0 0.0
        %2170 = vmatprep.subr.mxu0 0.0
        %2171 = vmatpush1.msra.mxu0 0.0
        %2172 = vmatprep.subr.mxu0 0.0
        %2173 = vmatpush1.msra.mxu0 0.0
        %2174 = vmatprep.subr.mxu0 0.0
        %2175 = vmatpush1.msra.mxu0 0.0
        %2176 = vmatprep.subr.mxu0 0.0
        %2177 = vmatpush1.msra.mxu0 0.0
        %2178 = vmatprep.subr.mxu0 0.0
        %2179 = vmatpush1.msra.mxu0 0.0
        %2180 = vmatprep.subr.mxu0 0.0
        %2181 = vmatpush1.msra.mxu0 0.0
        %2182 = vmatprep.subr.mxu0 0.0
        %2183 = vmatpush1.msra.mxu0 %v2145
        %2184 = vmatprep.subr.mxu0 0.0
        %2185 = vmatpush1.msra.mxu0 %v2143
        %2186 = vmatprep.subr.mxu0 0.0
        %2187 = vmatpush2.msra.mxu0 0.0
        %2188 = vmatprep.subr.mxu0 0.0
        %2189 = vmatpush2.msra.mxu0 0.0
        %2190 = vmatprep.subr.mxu0 0.0
        %2191 = vmatpush2.msra.mxu0 0.0
        %2192 = vmatprep.subr.mxu0 0.0
        %2193 = vmatpush2.msra.mxu0 0.0
        %2194 = vmatprep.subr.mxu0 0.0
        %2195 = vmatpush2.msra.mxu0 0.0
        %2196 = vmatprep.subr.mxu0 0.0
        %2197 = vmatpush2.msra.mxu0 0.0
        %2198 = vmatprep.subr.mxu0 0.0
        %2199 = vmatpush2.msra.mxu0 0.0
        %2200 = vmatprep.subr.mxu0 0.0
        %2201 = vmatpush2.msra.mxu0 0.0
        %2202 = vmatprep.subr.mxu0 0.0
        %2203 = vmatpush2.msra.mxu0 0.0
        %2204 = vmatprep.subr.mxu0 0.0
        %2205 = vmatpush2.msra.mxu0 0.0
        %2206 = vmatprep.subr.mxu0 0.0
        %2207 = vmatpush2.msra.mxu0 0.0
        %2208 = vmatprep.subr.mxu0 0.0
        %2209 = vmatpush2.msra.mxu0 0.0
        %2210 = vmatprep.subr.mxu0 0.0
        %2211 = vmatpush2.msra.mxu0 0.0
        %2212 = vmatprep.subr.mxu0 0.0
        %2213 = vmatpush2.msra.mxu0 0.0
        %2214 = vmatprep.subr.mxu0 0.0
        %2215 = vmatpush2.msra.mxu0 0.0
        %2216 = vmatprep.subr.mxu0 0.0
        %2217 = vmatpush2.msra.mxu0 0.0
        %2218 = vmatprep.mubr.f32.mxu0 0.0
        %2219 = vmatmul.mubr.f32.gmra.mxu0 %v2149
        %v2220 = vpop.f32.mrf.mxu0
        %v2221 = vadd.f32 0.0, %v2220
        %v2222 = vpop.f32.mrf.mxu0
        %2223 = vmatprep.mubr.f32.mxu0 0.0
        %2224 = vmatmul.mubr.f32.gmra.mxu0 %v2152
        %v2225 = vpop.f32.mrf.mxu0
        %v2226 = vadd.f32 0.0, %v2225
        %v2227 = vpop.f32.mrf.mxu0
        %2228 = vdwg.mxu0
        %v2230 = vsel %vm767, %v2221, 0
        %v2233 = vsel %vm767, %v2226, 0
        %2235 = vmatprep.subr.mxu0 0.0
        %2236 = vmatpush1.msra.mxu0 0.0
        %2237 = vmatprep.subr.mxu0 0.0
        %2238 = vmatpush1.msra.mxu0 0.0
        %2239 = vmatprep.subr.mxu0 0.0
        %2240 = vmatpush1.msra.mxu0 0.0
        %2241 = vmatprep.subr.mxu0 0.0
        %2242 = vmatpush1.msra.mxu0 0.0
        %2243 = vmatprep.subr.mxu0 0.0
        %2244 = vmatpush1.msra.mxu0 0.0
        %2245 = vmatprep.subr.mxu0 0.0
        %2246 = vmatpush1.msra.mxu0 0.0
        %2247 = vmatprep.subr.mxu0 0.0
        %2248 = vmatpush1.msra.mxu0 0.0
        %2249 = vmatprep.subr.mxu0 0.0
        %2250 = vmatpush1.msra.mxu0 0.0
        %2251 = vmatprep.subr.mxu0 0.0
        %2252 = vmatpush1.msra.mxu0 0.0
        %2253 = vmatprep.subr.mxu0 0.0
        %2254 = vmatpush1.msra.mxu0 0.0
        %2255 = vmatprep.subr.mxu0 0.0
        %2256 = vmatpush1.msra.mxu0 0.0
        %2257 = vmatprep.subr.mxu0 0.0
        %2258 = vmatpush1.msra.mxu0 0.0
        %2259 = vmatprep.subr.mxu0 0.0
        %2260 = vmatpush1.msra.mxu0 0.0
        %2261 = vmatprep.subr.mxu0 0.0
        %2262 = vmatpush1.msra.mxu0 0.0
        %2263 = vmatprep.subr.mxu0 0.0
        %2264 = vmatpush1.msra.mxu0 %v641
        %2265 = vmatprep.subr.mxu0 0.0
        %2266 = vmatpush1.msra.mxu0 %v640
        %2267 = vmatprep.subr.mxu0 0.0
        %2268 = vmatpush2.msra.mxu0 0.0
        %2269 = vmatprep.subr.mxu0 0.0
        %2270 = vmatpush2.msra.mxu0 0.0
        %2271 = vmatprep.subr.mxu0 0.0
        %2272 = vmatpush2.msra.mxu0 0.0
        %2273 = vmatprep.subr.mxu0 0.0
        %2274 = vmatpush2.msra.mxu0 0.0
        %2275 = vmatprep.subr.mxu0 0.0
        %2276 = vmatpush2.msra.mxu0 0.0
        %2277 = vmatprep.subr.mxu0 0.0
        %2278 = vmatpush2.msra.mxu0 0.0
        %2279 = vmatprep.subr.mxu0 0.0
        %2280 = vmatpush2.msra.mxu0 0.0
        %2281 = vmatprep.subr.mxu0 0.0
        %2282 = vmatpush2.msra.mxu0 0.0
        %2283 = vmatprep.subr.mxu0 0.0
        %2284 = vmatpush2.msra.mxu0 0.0
        %2285 = vmatprep.subr.mxu0 0.0
        %2286 = vmatpush2.msra.mxu0 0.0
        %2287 = vmatprep.subr.mxu0 0.0
        %2288 = vmatpush2.msra.mxu0 0.0
        %2289 = vmatprep.subr.mxu0 0.0
        %2290 = vmatpush2.msra.mxu0 0.0
        %2291 = vmatprep.subr.mxu0 0.0
        %2292 = vmatpush2.msra.mxu0 0.0
        %2293 = vmatprep.subr.mxu0 0.0
        %2294 = vmatpush2.msra.mxu0 0.0
        %2295 = vmatprep.subr.mxu0 0.0
        %2296 = vmatpush2.msra.mxu0 0.0
        %2297 = vmatprep.subr.mxu0 0.0
        %2298 = vmatpush2.msra.mxu0 0.0
        %2299 = vmatprep.mubr.f32.mxu0 0.0
        %2300 = vmatmul.mubr.f32.gmra.mxu0 %v2230
        %v2301 = vpop.f32.mrf.mxu0
        %v2302 = vadd.f32 0.0, %v2301
        %v2303 = vpop.f32.mrf.mxu0
        %2304 = vmatprep.mubr.f32.mxu0 0.0
        %2305 = vmatmul.mubr.f32.gmra.mxu0 %v2233
        %v2306 = vpop.f32.mrf.mxu0
        %v2307 = vadd.f32 0.0, %v2306
        %v2308 = vpop.f32.mrf.mxu0
        %2309 = vdwg.mxu0
        %v2310 = vadd.f32 %v1887, %v2302
        %v2311 = vadd.f32 %v1888, %v2307
        %v2312 = vadd.f32 %v500, %v2310
        %v2313 = vadd.f32 %v501, %v2311
        %v2314 = vld [vmem:[%s5] sm:$0x1]
        %v2315 = vmul.f32 %v2312, %v2312
        %v2316 = vmul.f32 %v2313, %v2313
        %v2317 = vsel %vm511, %v2315, 0.0
        %2318 = vadd.xlane.f32.xlu0 %v2317
        %v2319 = vpop.xlane.xlu0 %2318
        %v2320 = vsel %vm511, %v2316, 0.0
        %2321 = vadd.xlane.f32.xlu0 %v2320
        %v2322 = vpop.xlane.xlu0 %2321
        %v2323 = vmul.f32 %v2319, %v518
        %v2324 = vmul.f32 %v2322, %v518
        %v2325 = vadd.f32 %v2323, 1e-05
        %v2326 = vadd.f32 %v2324, 1e-05
        %v2327 = vrsqrt.pop %v2325
        %v2328 = vrsqrt.pop %v2326
        %v2329 = vmul.f32 %v2312, %v2327
        %v2330 = vmul.f32 %v2313, %v2328
        %v2332 = vlaneseq
        %v2333 = vshrl.u32 %v2332, 7
        %v2334 = vsub.s32 0, %v2333
        %v2335 = vrot.slane %v2314, %v2334
        %v2337 = vmul.f32 %v2329, %v2335
        %v2338 = vmul.f32 %v2330, %v2335
        %v2339 = vld [vmem:[#allocation11] sm:$0xff]
        %v2340 = vld [vmem:[#allocation11 + $0x8] sm:$0xff]
        %v2341 = vld [vmem:[#allocation11 + $0x10] sm:$0xff]
        %v2342 = vld [vmem:[#allocation11 + $0x18] sm:$0xff]
        %v2343 = vld [vmem:[#allocation11 + $0x20] sm:$0xff]
        %v2344 = vld [vmem:[#allocation11 + $0x28] sm:$0xff]
        %v2345 = vld [vmem:[#allocation11 + $0x30] sm:$0xff]
        %v2346 = vld [vmem:[#allocation11 + $0x38] sm:$0xff]
        %v2347 = vld [vmem:[#allocation11 + $0x40] sm:$0xff]
        %v2348 = vld [vmem:[#allocation11 + $0x48] sm:$0xff]
        %v2349 = vld [vmem:[#allocation11 + $0x50] sm:$0xff]
        %v2350 = vld [vmem:[#allocation11 + $0x58] sm:$0xff]
        %v2351 = vld [vmem:[#allocation11 + $0x60] sm:$0xff]
        %v2352 = vld [vmem:[#allocation11 + $0x68] sm:$0xff]
        %v2353 = vld [vmem:[#allocation11 + $0x70] sm:$0xff]
        %v2354 = vld [vmem:[#allocation11 + $0x78] sm:$0xff]
        %v2356 = vsel %vm511, %v2337, 0
        %v2359 = vsel %vm511, %v2338, 0
        %2361 = vmatprep.subr.mxu0 0.0
        %2362 = vmatpush1.msra.mxu0 0.0
        %2363 = vmatprep.subr.mxu0 0.0
        %2364 = vmatpush1.msra.mxu0 0.0
        %2365 = vmatprep.subr.mxu0 0.0
        %2366 = vmatpush1.msra.mxu0 0.0
        %2367 = vmatprep.subr.mxu0 0.0
        %2368 = vmatpush1.msra.mxu0 0.0
        %2369 = vmatprep.subr.mxu0 0.0
        %2370 = vmatpush1.msra.mxu0 0.0
        %2371 = vmatprep.subr.mxu0 0.0
        %2372 = vmatpush1.msra.mxu0 0.0
        %2373 = vmatprep.subr.mxu0 0.0
        %2374 = vmatpush1.msra.mxu0 0.0
        %2375 = vmatprep.subr.mxu0 0.0
        %2376 = vmatpush1.msra.mxu0 0.0
        %2377 = vmatprep.subr.mxu0 %v2354
        %2378 = vmatpush1.msra.mxu0 %v2353
        %2379 = vmatprep.subr.mxu0 %v2352
        %2380 = vmatpush1.msra.mxu0 %v2351
        %2381 = vmatprep.subr.mxu0 %v2350
        %2382 = vmatpush1.msra.mxu0 %v2349
        %2383 = vmatprep.subr.mxu0 %v2348
        %2384 = vmatpush1.msra.mxu0 %v2347
        %2385 = vmatprep.subr.mxu0 %v2346
        %2386 = vmatpush1.msra.mxu0 %v2345
        %2387 = vmatprep.subr.mxu0 %v2344
        %2388 = vmatpush1.msra.mxu0 %v2343
        %2389 = vmatprep.subr.mxu0 %v2342
        %2390 = vmatpush1.msra.mxu0 %v2341
        %2391 = vmatprep.subr.mxu0 %v2340
        %2392 = vmatpush1.msra.mxu0 %v2339
        %2393 = vmatprep.subr.mxu0 0.0
        %2394 = vmatpush2.msra.mxu0 0.0
        %2395 = vmatprep.subr.mxu0 0.0
        %2396 = vmatpush2.msra.mxu0 0.0
        %2397 = vmatprep.subr.mxu0 0.0
        %2398 = vmatpush2.msra.mxu0 0.0
        %2399 = vmatprep.subr.mxu0 0.0
        %2400 = vmatpush2.msra.mxu0 0.0
        %2401 = vmatprep.subr.mxu0 0.0
        %2402 = vmatpush2.msra.mxu0 0.0
        %2403 = vmatprep.subr.mxu0 0.0
        %2404 = vmatpush2.msra.mxu0 0.0
        %2405 = vmatprep.subr.mxu0 0.0
        %2406 = vmatpush2.msra.mxu0 0.0
        %2407 = vmatprep.subr.mxu0 0.0
        %2408 = vmatpush2.msra.mxu0 0.0
        %2409 = vmatprep.subr.mxu0 0.0
        %2410 = vmatpush2.msra.mxu0 0.0
        %2411 = vmatprep.subr.mxu0 0.0
        %2412 = vmatpush2.msra.mxu0 0.0
        %2413 = vmatprep.subr.mxu0 0.0
        %2414 = vmatpush2.msra.mxu0 0.0
        %2415 = vmatprep.subr.mxu0 0.0
        %2416 = vmatpush2.msra.mxu0 0.0
        %2417 = vmatprep.subr.mxu0 0.0
        %2418 = vmatpush2.msra.mxu0 0.0
        %2419 = vmatprep.subr.mxu0 0.0
        %2420 = vmatpush2.msra.mxu0 0.0
        %2421 = vmatprep.subr.mxu0 0.0
        %2422 = vmatpush2.msra.mxu0 0.0
        %2423 = vmatprep.subr.mxu0 0.0
        %2424 = vmatpush2.msra.mxu0 0.0
        %2425 = vmatprep.mubr.f32.mxu0 0.0
        %2426 = vmatmul.mubr.f32.gmra.mxu0 %v2356
        %v2427 = vpop.f32.mrf.mxu0
        %v2428 = vadd.f32 0.0, %v2427
        %v2429 = vpop.f32.mrf.mxu0
        %v2430 = vadd.f32 0.0, %v2429
        %2431 = vmatprep.mubr.f32.mxu0 0.0
        %2432 = vmatmul.mubr.f32.gmra.mxu0 %v2359
        %v2433 = vpop.f32.mrf.mxu0
        %v2434 = vadd.f32 0.0, %v2433
        %v2435 = vpop.f32.mrf.mxu0
        %v2436 = vadd.f32 0.0, %v2435
        %2437 = vdwg.mxu0
        %v2438 = vsub.f32 0.0, %v2428
        %v2439 = vsub.f32 0.0, %v2434
        %v2440 = vmul.f32 %v2438, 1.442695
        %v2441 = vpow.pop %v2440
        %v2442 = vmul.f32 %v2439, 1.442695
        %v2443 = vpow.pop %v2442
        %v2444 = vadd.f32 %v2441, 1.0
        %v2445 = vadd.f32 %v2443, 1.0
        %v2446 = vrcp.pop %v2444
        %v2447 = vrcp.pop %v2445
        %v2448 = vmul.f32 %v2428, %v2446
        %v2449 = vmul.f32 %v2434, %v2447
        %v2450 = vmul.f32 %v2448, %v2430
        %v2451 = vmul.f32 %v2449, %v2436
        %v2452 = vld [vmem:[%s9] sm:$0xff]
        %v2453 = vld [vmem:[%s9 + $0x8] sm:$0xff]
        %v2454 = vld [vmem:[%s9 + $0x10] sm:$0xff]
        %v2455 = vld [vmem:[%s9 + $0x18] sm:$0xff]
        %v2456 = vld [vmem:[%s9 + $0x20] sm:$0xff]
        %v2457 = vld [vmem:[%s9 + $0x28] sm:$0xff]
        %v2458 = vld [vmem:[%s9 + $0x30] sm:$0xff]
        %v2459 = vld [vmem:[%s9 + $0x38] sm:$0xff]
        %v2460 = vld [vmem:[%s9 + $0x40] sm:$0xff]
        %v2461 = vld [vmem:[%s9 + $0x48] sm:$0xff]
        %v2462 = vld [vmem:[%s9 + $0x50] sm:$0xff]
        %v2463 = vld [vmem:[%s9 + $0x58] sm:$0xff]
        %v2464 = vld [vmem:[%s9 + $0x60] sm:$0xff]
        %v2465 = vld [vmem:[%s9 + $0x68] sm:$0xff]
        %v2466 = vld [vmem:[%s9 + $0x70] sm:$0xff]
        %v2467 = vld [vmem:[%s9 + $0x78] sm:$0xff]
        %2468 = vmatprep.subr.mxu0 0.0
        %2469 = vmatpush1.msra.mxu0 %v2467
        %2470 = vmatprep.subr.mxu0 0.0
        %2471 = vmatpush1.msra.mxu0 %v2466
        %2472 = vmatprep.subr.mxu0 0.0
        %2473 = vmatpush1.msra.mxu0 %v2465
        %2474 = vmatprep.subr.mxu0 0.0
        %2475 = vmatpush1.msra.mxu0 %v2464
        %2476 = vmatprep.subr.mxu0 0.0
        %2477 = vmatpush1.msra.mxu0 %v2463
        %2478 = vmatprep.subr.mxu0 0.0
        %2479 = vmatpush1.msra.mxu0 %v2462
        %2480 = vmatprep.subr.mxu0 0.0
        %2481 = vmatpush1.msra.mxu0 %v2461
        %2482 = vmatprep.subr.mxu0 0.0
        %2483 = vmatpush1.msra.mxu0 %v2460
        %2484 = vmatprep.subr.mxu0 0.0
        %2485 = vmatpush1.msra.mxu0 %v2459
        %2486 = vmatprep.subr.mxu0 0.0
        %2487 = vmatpush1.msra.mxu0 %v2458
        %2488 = vmatprep.subr.mxu0 0.0
        %2489 = vmatpush1.msra.mxu0 %v2457
        %2490 = vmatprep.subr.mxu0 0.0
        %2491 = vmatpush1.msra.mxu0 %v2456
        %2492 = vmatprep.subr.mxu0 0.0
        %2493 = vmatpush1.msra.mxu0 %v2455
        %2494 = vmatprep.subr.mxu0 0.0
        %2495 = vmatpush1.msra.mxu0 %v2454
        %2496 = vmatprep.subr.mxu0 0.0
        %2497 = vmatpush1.msra.mxu0 %v2453
        %2498 = vmatprep.subr.mxu0 0.0
        %2499 = vmatpush1.msra.mxu0 %v2452
        %2500 = vmatprep.subr.mxu0 0.0
        %2501 = vmatpush2.msra.mxu0 0.0
        %2502 = vmatprep.subr.mxu0 0.0
        %2503 = vmatpush2.msra.mxu0 0.0
        %2504 = vmatprep.subr.mxu0 0.0
        %2505 = vmatpush2.msra.mxu0 0.0
        %2506 = vmatprep.subr.mxu0 0.0
        %2507 = vmatpush2.msra.mxu0 0.0
        %2508 = vmatprep.subr.mxu0 0.0
        %2509 = vmatpush2.msra.mxu0 0.0
        %2510 = vmatprep.subr.mxu0 0.0
        %2511 = vmatpush2.msra.mxu0 0.0
        %2512 = vmatprep.subr.mxu0 0.0
        %2513 = vmatpush2.msra.mxu0 0.0
        %2514 = vmatprep.subr.mxu0 0.0
        %2515 = vmatpush2.msra.mxu0 0.0
        %2516 = vmatprep.subr.mxu0 0.0
        %2517 = vmatpush2.msra.mxu0 0.0
        %2518 = vmatprep.subr.mxu0 0.0
        %2519 = vmatpush2.msra.mxu0 0.0
        %2520 = vmatprep.subr.mxu0 0.0
        %2521 = vmatpush2.msra.mxu0 0.0
        %2522 = vmatprep.subr.mxu0 0.0
        %2523 = vmatpush2.msra.mxu0 0.0
        %2524 = vmatprep.subr.mxu0 0.0
        %2525 = vmatpush2.msra.mxu0 0.0
        %2526 = vmatprep.subr.mxu0 0.0
        %2527 = vmatpush2.msra.mxu0 0.0
        %2528 = vmatprep.subr.mxu0 0.0
        %2529 = vmatpush2.msra.mxu0 0.0
        %2530 = vmatprep.subr.mxu0 0.0
        %2531 = vmatpush2.msra.mxu0 0.0
        %2532 = vmatprep.mubr.f32.mxu0 0.0
        %2533 = vmatmul.mubr.f32.gmra.mxu0 %v2450
        %v2534 = vpop.f32.mrf.mxu0
        %v2535 = vadd.f32 0.0, %v2534
        %v2536 = vpop.f32.mrf.mxu0
        %2537 = vmatprep.mubr.f32.mxu0 0.0
        %2538 = vmatmul.mubr.f32.gmra.mxu0 %v2451
        %v2539 = vpop.f32.mrf.mxu0
        %v2540 = vadd.f32 0.0, %v2539
        %v2541 = vpop.f32.mrf.mxu0
        %2542 = vdwg.mxu0
        %v2543 = vadd.f32 %v2312, %v2535
        %v2544 = vadd.f32 %v2313, %v2540
        %s2545 = scalar_lea.vmem %s4, 1
        %v2546 = vld [vmem:[%s2545] sm:$0x1]
        %v2547 = vmul.f32 %v2543, %v2543
        %v2548 = vmul.f32 %v2544, %v2544
        %v2549 = vsel %vm511, %v2547, 0.0
        %2550 = vadd.xlane.f32.xlu0 %v2549
        %v2551 = vpop.xlane.xlu0 %2550
        %v2552 = vsel %vm511, %v2548, 0.0
        %2553 = vadd.xlane.f32.xlu0 %v2552
        %v2554 = vpop.xlane.xlu0 %2553
        %v2555 = vmul.f32 %v2551, %v518
        %v2556 = vmul.f32 %v2554, %v518
        %v2557 = vadd.f32 %v2555, 1e-05
        %v2558 = vadd.f32 %v2556, 1e-05
        %v2559 = vrsqrt.pop %v2557
        %v2560 = vrsqrt.pop %v2558
        %v2561 = vmul.f32 %v2543, %v2559
        %v2562 = vmul.f32 %v2544, %v2560
        %v2564 = vlaneseq
        %v2565 = vshrl.u32 %v2564, 7
        %v2566 = vsub.s32 0, %v2565
        %v2567 = vrot.slane %v2546, %v2566
        %v2569 = vmul.f32 %v2561, %v2567
        %v2570 = vmul.f32 %v2562, %v2567
        %s2571 = scalar_lea.vmem [#allocation8], 128
        %v2572 = vld [vmem:[%s2571] sm:$0xff]
        %v2573 = vld [vmem:[%s2571 + $0x8] sm:$0xff]
        %v2574 = vld [vmem:[%s2571 + $0x10] sm:$0xff]
        %v2575 = vld [vmem:[%s2571 + $0x18] sm:$0xff]
        %v2576 = vld [vmem:[%s2571 + $0x20] sm:$0xff]
        %v2577 = vld [vmem:[%s2571 + $0x28] sm:$0xff]
        %v2578 = vld [vmem:[%s2571 + $0x30] sm:$0xff]
        %v2579 = vld [vmem:[%s2571 + $0x38] sm:$0xff]
        %v2580 = vld [vmem:[%s2571 + $0x40] sm:$0xff]
        %v2581 = vld [vmem:[%s2571 + $0x48] sm:$0xff]
        %v2582 = vld [vmem:[%s2571 + $0x50] sm:$0xff]
        %v2583 = vld [vmem:[%s2571 + $0x58] sm:$0xff]
        %v2584 = vld [vmem:[%s2571 + $0x60] sm:$0xff]
        %v2585 = vld [vmem:[%s2571 + $0x68] sm:$0xff]
        %v2586 = vld [vmem:[%s2571 + $0x70] sm:$0xff]
        %v2587 = vld [vmem:[%s2571 + $0x78] sm:$0xff]
        %v2589 = vsel %vm511, %v2569, 0
        %v2592 = vsel %vm511, %v2570, 0
        %2594 = vmatprep.subr.mxu0 0.0
        %2595 = vmatpush1.msra.mxu0 0.0
        %2596 = vmatprep.subr.mxu0 0.0
        %2597 = vmatpush1.msra.mxu0 0.0
        %2598 = vmatprep.subr.mxu0 0.0
        %2599 = vmatpush1.msra.mxu0 0.0
        %2600 = vmatprep.subr.mxu0 0.0
        %2601 = vmatpush1.msra.mxu0 0.0
        %2602 = vmatprep.subr.mxu0 0.0
        %2603 = vmatpush1.msra.mxu0 0.0
        %2604 = vmatprep.subr.mxu0 0.0
        %2605 = vmatpush1.msra.mxu0 0.0
        %2606 = vmatprep.subr.mxu0 0.0
        %2607 = vmatpush1.msra.mxu0 0.0
        %2608 = vmatprep.subr.mxu0 0.0
        %2609 = vmatpush1.msra.mxu0 0.0
        %2610 = vmatprep.subr.mxu0 %v2587
        %2611 = vmatpush1.msra.mxu0 %v2586
        %2612 = vmatprep.subr.mxu0 %v2585
        %2613 = vmatpush1.msra.mxu0 %v2584
        %2614 = vmatprep.subr.mxu0 %v2583
        %2615 = vmatpush1.msra.mxu0 %v2582
        %2616 = vmatprep.subr.mxu0 %v2581
        %2617 = vmatpush1.msra.mxu0 %v2580
        %2618 = vmatprep.subr.mxu0 %v2579
        %2619 = vmatpush1.msra.mxu0 %v2578
        %2620 = vmatprep.subr.mxu0 %v2577
        %2621 = vmatpush1.msra.mxu0 %v2576
        %2622 = vmatprep.subr.mxu0 %v2575
        %2623 = vmatpush1.msra.mxu0 %v2574
        %2624 = vmatprep.subr.mxu0 %v2573
        %2625 = vmatpush1.msra.mxu0 %v2572
        %2626 = vmatprep.subr.mxu0 0.0
        %2627 = vmatpush2.msra.mxu0 0.0
        %2628 = vmatprep.subr.mxu0 0.0
        %2629 = vmatpush2.msra.mxu0 0.0
        %2630 = vmatprep.subr.mxu0 0.0
        %2631 = vmatpush2.msra.mxu0 0.0
        %2632 = vmatprep.subr.mxu0 0.0
        %2633 = vmatpush2.msra.mxu0 0.0
        %2634 = vmatprep.subr.mxu0 0.0
        %2635 = vmatpush2.msra.mxu0 0.0
        %2636 = vmatprep.subr.mxu0 0.0
        %2637 = vmatpush2.msra.mxu0 0.0
        %2638 = vmatprep.subr.mxu0 0.0
        %2639 = vmatpush2.msra.mxu0 0.0
        %2640 = vmatprep.subr.mxu0 0.0
        %2641 = vmatpush2.msra.mxu0 0.0
        %2642 = vmatprep.subr.mxu0 0.0
        %2643 = vmatpush2.msra.mxu0 0.0
        %2644 = vmatprep.subr.mxu0 0.0
        %2645 = vmatpush2.msra.mxu0 0.0
        %2646 = vmatprep.subr.mxu0 0.0
        %2647 = vmatpush2.msra.mxu0 0.0
        %2648 = vmatprep.subr.mxu0 0.0
        %2649 = vmatpush2.msra.mxu0 0.0
        %2650 = vmatprep.subr.mxu0 0.0
        %2651 = vmatpush2.msra.mxu0 0.0
        %2652 = vmatprep.subr.mxu0 0.0
        %2653 = vmatpush2.msra.mxu0 0.0
        %2654 = vmatprep.subr.mxu0 0.0
        %2655 = vmatpush2.msra.mxu0 0.0
        %2656 = vmatprep.subr.mxu0 0.0
        %2657 = vmatpush2.msra.mxu0 0.0
        %2658 = vmatprep.mubr.f32.mxu0 0.0
        %2659 = vmatmul.mubr.f32.gmra.mxu0 %v2589
        %v2660 = vpop.f32.mrf.mxu0
        %v2661 = vadd.f32 0.0, %v2660
        %v2662 = vpop.f32.mrf.mxu0
        %v2663 = vadd.f32 0.0, %v2662
        %2664 = vmatprep.mubr.f32.mxu0 0.0
        %2665 = vmatmul.mubr.f32.gmra.mxu0 %v2592
        %v2666 = vpop.f32.mrf.mxu0
        %v2667 = vadd.f32 0.0, %v2666
        %v2668 = vpop.f32.mrf.mxu0
        %v2669 = vadd.f32 0.0, %v2668
        %2670 = vdwg.mxu0
        %s2671 = scalar_lea.vmem [#allocation10], 64
        %v2672 = vld [vmem:[%s2671] sm:$0xff]
        %v2673 = vld [vmem:[%s2671 + $0x8] sm:$0xff]
        %v2674 = vld [vmem:[%s2671 + $0x10] sm:$0xff]
        %v2675 = vld [vmem:[%s2671 + $0x18] sm:$0xff]
        %v2676 = vld [vmem:[%s2671 + $0x20] sm:$0xff]
        %v2677 = vld [vmem:[%s2671 + $0x28] sm:$0xff]
        %v2678 = vld [vmem:[%s2671 + $0x30] sm:$0xff]
        %v2679 = vld [vmem:[%s2671 + $0x38] sm:$0xff]
        %v2680 = vmul.f32 %v2661, %v504
        %v2681 = vmul.f32 %v2667, %v505
        %v2682 = vmul.f32 %v2661, %v647
        %v2683 = vmul.f32 %v2667, %v649
        %2686 = vrot.lane.b32.xlu0 %v2682, 120
        %v2687 = vpop.permute.xlu0 %2686
        %2688 = vrot.lane.b32.xlu0 %v2683, 120
        %v2689 = vpop.permute.xlu0 %2688
        %v2692 = vsub.f32 %v2680, %v2687
        %v2693 = vsub.f32 %v2681, %v2689
        %v2694 = vmul.f32 %v2661, %v506
        %v2695 = vmul.f32 %v2667, %v507
        %v2696 = vmul.f32 %v2661, %v669
        %v2697 = vmul.f32 %v2667, %v671
        %2700 = vrot.lane.b32.xlu0 %v2696, 120
        %v2701 = vpop.permute.xlu0 %2700
        %2702 = vrot.lane.b32.xlu0 %v2697, 120
        %v2703 = vpop.permute.xlu0 %2702
        %v2706 = vadd.f32 %v2694, %v2701
        %v2707 = vadd.f32 %v2695, %v2703
        %2710 = vrot.lane.b32.xlu0 %v2706, 8
        %v2711 = vpop.permute.xlu0 %2710
        %2712 = vrot.lane.b32.xlu0 %v2707, 8
        %v2713 = vpop.permute.xlu0 %2712
        %v2716 = vsel %vm694, %v2692, %v2711
        %v2717 = vsel %vm694, %v2693, %v2713
        %v2718 = vmul.f32 %v2661, %v698
        %v2719 = vmul.f32 %v2667, %v700
        %v2720 = vmul.f32 %v2661, %v706
        %v2721 = vmul.f32 %v2667, %v708
        %2724 = vrot.lane.b32.xlu0 %v2720, 120
        %v2725 = vpop.permute.xlu0 %2724
        %2726 = vrot.lane.b32.xlu0 %v2721, 120
        %v2727 = vpop.permute.xlu0 %2726
        %v2730 = vsub.f32 %v2718, %v2725
        %v2731 = vsub.f32 %v2719, %v2727
        %v2732 = vmul.f32 %v2661, %v724
        %v2733 = vmul.f32 %v2667, %v726
        %v2734 = vmul.f32 %v2661, %v732
        %v2735 = vmul.f32 %v2667, %v734
        %2738 = vrot.lane.b32.xlu0 %v2734, 120
        %v2739 = vpop.permute.xlu0 %2738
        %2740 = vrot.lane.b32.xlu0 %v2735, 120
        %v2741 = vpop.permute.xlu0 %2740
        %v2744 = vadd.f32 %v2732, %v2739
        %v2745 = vadd.f32 %v2733, %v2741
        %2748 = vrot.lane.b32.xlu0 %v2730, 64
        %v2749 = vpop.permute.xlu0 %2748
        %2750 = vrot.lane.b32.xlu0 %v2731, 64
        %v2751 = vpop.permute.xlu0 %2750
        %2756 = vrot.lane.b32.xlu0 %v2744, 72
        %v2757 = vpop.permute.xlu0 %2756
        %2758 = vrot.lane.b32.xlu0 %v2745, 72
        %v2759 = vpop.permute.xlu0 %2758
        %v2762 = vsel %vm694, %v2749, %v2757
        %v2763 = vsel %vm694, %v2751, %v2759
        %v2765 = vsel %vm767, %v2716, 0
        %v2768 = vsel %vm767, %v2717, 0
        %v2771 = vsel %vm767, %v2762, 0
        %v2774 = vsel %vm767, %v2763, 0
        %2776 = vmatprep.subr.mxu0 0.0
        %2777 = vmatpush1.xpose.msra.mxu0 0.0
        %2778 = vmatprep.subr.mxu0 0.0
        %2779 = vmatpush1.xpose.msra.mxu0 0.0
        %2780 = vmatprep.subr.mxu0 0.0
        %2781 = vmatpush1.xpose.msra.mxu0 0.0
        %2782 = vmatprep.subr.mxu0 0.0
        %2783 = vmatpush1.xpose.msra.mxu0 0.0
        %2784 = vmatprep.subr.mxu0 0.0
        %2785 = vmatpush1.xpose.msra.mxu0 0.0
        %2786 = vmatprep.subr.mxu0 0.0
        %2787 = vmatpush1.xpose.msra.mxu0 0.0
        %2788 = vmatprep.subr.mxu0 0.0
        %2789 = vmatpush1.xpose.msra.mxu0 0.0
        %2790 = vmatprep.subr.mxu0 0.0
        %2791 = vmatpush1.xpose.msra.mxu0 0.0
        %2792 = vmatprep.subr.mxu0 0.0
        %2793 = vmatpush1.xpose.msra.mxu0 0.0
        %2794 = vmatprep.subr.mxu0 0.0
        %2795 = vmatpush1.xpose.msra.mxu0 0.0
        %2796 = vmatprep.subr.mxu0 0.0
        %2797 = vmatpush1.xpose.msra.mxu0 0.0
        %2798 = vmatprep.subr.mxu0 0.0
        %2799 = vmatpush1.xpose.msra.mxu0 0.0
        %2800 = vmatprep.subr.mxu0 0.0
        %2801 = vmatpush1.xpose.msra.mxu0 0.0
        %2802 = vmatprep.subr.mxu0 0.0
        %2803 = vmatpush1.xpose.msra.mxu0 0.0
        %2804 = vmatprep.subr.mxu0 0.0
        %2805 = vmatpush1.xpose.msra.mxu0 %v2774
        %2806 = vmatprep.subr.mxu0 0.0
        %2807 = vmatpush1.xpose.msra.mxu0 %v2771
        %2808 = vmatprep.subr.mxu0 0.0
        %2809 = vmatpush2.xpose.msra.mxu0 0.0
        %2810 = vmatprep.subr.mxu0 0.0
        %2811 = vmatpush2.xpose.msra.mxu0 0.0
        %2812 = vmatprep.subr.mxu0 0.0
        %2813 = vmatpush2.xpose.msra.mxu0 0.0
        %2814 = vmatprep.subr.mxu0 0.0
        %2815 = vmatpush2.xpose.msra.mxu0 0.0
        %2816 = vmatprep.subr.mxu0 0.0
        %2817 = vmatpush2.xpose.msra.mxu0 0.0
        %2818 = vmatprep.subr.mxu0 0.0
        %2819 = vmatpush2.xpose.msra.mxu0 0.0
        %2820 = vmatprep.subr.mxu0 0.0
        %2821 = vmatpush2.xpose.msra.mxu0 0.0
        %2822 = vmatprep.subr.mxu0 0.0
        %2823 = vmatpush2.xpose.msra.mxu0 0.0
        %2824 = vmatprep.subr.mxu0 0.0
        %2825 = vmatpush2.xpose.msra.mxu0 0.0
        %2826 = vmatprep.subr.mxu0 0.0
        %2827 = vmatpush2.xpose.msra.mxu0 0.0
        %2828 = vmatprep.subr.mxu0 0.0
        %2829 = vmatpush2.xpose.msra.mxu0 0.0
        %2830 = vmatprep.subr.mxu0 0.0
        %2831 = vmatpush2.xpose.msra.mxu0 0.0
        %2832 = vmatprep.subr.mxu0 0.0
        %2833 = vmatpush2.xpose.msra.mxu0 0.0
        %2834 = vmatprep.subr.mxu0 0.0
        %2835 = vmatpush2.xpose.msra.mxu0 0.0
        %2836 = vmatprep.subr.mxu0 0.0
        %2837 = vmatpush2.xpose.msra.mxu0 0.0
        %2838 = vmatprep.subr.mxu0 0.0
        %2839 = vmatpush2.xpose.msra.mxu0 0.0
        %2840 = vmatprep.mubr.f32.mxu0 0.0
        %2841 = vmatmul.mubr.f32.gmra.mxu0 %v2765
        %v2842 = vpop.f32.mrf.mxu0
        %v2843 = vadd.f32 0.0, %v2842
        %v2844 = vpop.f32.mrf.mxu0
        %2845 = vmatprep.mubr.f32.mxu0 0.0
        %2846 = vmatmul.mubr.f32.gmra.mxu0 %v2768
        %v2847 = vpop.f32.mrf.mxu0
        %v2848 = vadd.f32 0.0, %v2847
        %v2849 = vpop.f32.mrf.mxu0
        %2850 = vdwg.mxu0
        %v2851 = vmul.f32 %v2843, 0.25
        %v2852 = vmul.f32 %v2848, 0.25
        %v2853 = vadd.f32 %v2851, %v502
        %v2854 = vadd.f32 %v2852, %v503
        %v2855 = vsel %vm767, %v2853, -inf
        %2856 = vmax.xlane.f32.xlu0 %v2855
        %v2857 = vpop.xlane.xlu0 %2856
        %v2858 = vsel %vm767, %v2854, -inf
        %2859 = vmax.xlane.f32.xlu0 %v2858
        %v2860 = vpop.xlane.xlu0 %2859
        %v2861 = vsub.f32 %v2853, %v2857
        %v2862 = vsub.f32 %v2854, %v2860
        %v2863 = vmul.f32 %v2861, 1.442695
        %v2864 = vpow.pop %v2863
        %v2865 = vmul.f32 %v2862, 1.442695
        %v2866 = vpow.pop %v2865
        %v2867 = vsel %vm767, %v2864, 0.0
        %2868 = vadd.xlane.f32.xlu0 %v2867
        %v2869 = vpop.xlane.xlu0 %2868
        %v2870 = vsel %vm767, %v2866, 0.0
        %2871 = vadd.xlane.f32.xlu0 %v2870
        %v2872 = vpop.xlane.xlu0 %2871
        %v2873 = vrcp.pop %v2869
        %v2874 = vrcp.pop %v2872
        %v2875 = vmul.f32 %v2864, %v2873
        %v2876 = vmul.f32 %v2866, %v2874
        %v2878 = vsel %vm767, %v2875, 0
        %v2881 = vsel %vm767, %v2876, 0
        %2883 = vmatprep.subr.mxu0 0.0
        %2884 = vmatpush1.msra.mxu0 0.0
        %2885 = vmatprep.subr.mxu0 0.0
        %2886 = vmatpush1.msra.mxu0 0.0
        %2887 = vmatprep.subr.mxu0 0.0
        %2888 = vmatpush1.msra.mxu0 0.0
        %2889 = vmatprep.subr.mxu0 0.0
        %2890 = vmatpush1.msra.mxu0 0.0
        %2891 = vmatprep.subr.mxu0 0.0
        %2892 = vmatpush1.msra.mxu0 0.0
        %2893 = vmatprep.subr.mxu0 0.0
        %2894 = vmatpush1.msra.mxu0 0.0
        %2895 = vmatprep.subr.mxu0 0.0
        %2896 = vmatpush1.msra.mxu0 0.0
        %2897 = vmatprep.subr.mxu0 0.0
        %2898 = vmatpush1.msra.mxu0 0.0
        %2899 = vmatprep.subr.mxu0 0.0
        %2900 = vmatpush1.msra.mxu0 0.0
        %2901 = vmatprep.subr.mxu0 0.0
        %2902 = vmatpush1.msra.mxu0 0.0
        %2903 = vmatprep.subr.mxu0 0.0
        %2904 = vmatpush1.msra.mxu0 0.0
        %2905 = vmatprep.subr.mxu0 0.0
        %2906 = vmatpush1.msra.mxu0 0.0
        %2907 = vmatprep.subr.mxu0 0.0
        %2908 = vmatpush1.msra.mxu0 0.0
        %2909 = vmatprep.subr.mxu0 0.0
        %2910 = vmatpush1.msra.mxu0 0.0
        %2911 = vmatprep.subr.mxu0 0.0
        %2912 = vmatpush1.msra.mxu0 %v2669
        %2913 = vmatprep.subr.mxu0 0.0
        %2914 = vmatpush1.msra.mxu0 %v2663
        %2915 = vmatprep.subr.mxu0 0.0
        %2916 = vmatpush2.msra.mxu0 0.0
        %2917 = vmatprep.subr.mxu0 0.0
        %2918 = vmatpush2.msra.mxu0 0.0
        %2919 = vmatprep.subr.mxu0 0.0
        %2920 = vmatpush2.msra.mxu0 0.0
        %2921 = vmatprep.subr.mxu0 0.0
        %2922 = vmatpush2.msra.mxu0 0.0
        %2923 = vmatprep.subr.mxu0 0.0
        %2924 = vmatpush2.msra.mxu0 0.0
        %2925 = vmatprep.subr.mxu0 0.0
        %2926 = vmatpush2.msra.mxu0 0.0
        %2927 = vmatprep.subr.mxu0 0.0
        %2928 = vmatpush2.msra.mxu0 0.0
        %2929 = vmatprep.subr.mxu0 0.0
        %2930 = vmatpush2.msra.mxu0 0.0
        %2931 = vmatprep.subr.mxu0 0.0
        %2932 = vmatpush2.msra.mxu0 0.0
        %2933 = vmatprep.subr.mxu0 0.0
        %2934 = vmatpush2.msra.mxu0 0.0
        %2935 = vmatprep.subr.mxu0 0.0
        %2936 = vmatpush2.msra.mxu0 0.0
        %2937 = vmatprep.subr.mxu0 0.0
        %2938 = vmatpush2.msra.mxu0 0.0
        %2939 = vmatprep.subr.mxu0 0.0
        %2940 = vmatpush2.msra.mxu0 0.0
        %2941 = vmatprep.subr.mxu0 0.0
        %2942 = vmatpush2.msra.mxu0 0.0
        %2943 = vmatprep.subr.mxu0 0.0
        %2944 = vmatpush2.msra.mxu0 0.0
        %2945 = vmatprep.subr.mxu0 0.0
        %2946 = vmatpush2.msra.mxu0 0.0
        %2947 = vmatprep.mubr.f32.mxu0 0.0
        %2948 = vmatmul.mubr.f32.gmra.mxu0 %v2878
        %v2949 = vpop.f32.mrf.mxu0
        %v2950 = vadd.f32 0.0, %v2949
        %v2951 = vpop.f32.mrf.mxu0
        %2952 = vmatprep.mubr.f32.mxu0 0.0
        %2953 = vmatmul.mubr.f32.gmra.mxu0 %v2881
        %v2954 = vpop.f32.mrf.mxu0
        %v2955 = vadd.f32 0.0, %v2954
        %v2956 = vpop.f32.mrf.mxu0
        %2957 = vdwg.mxu0
        %v2958 = vmul.f32 %v2661, %v963
        %v2959 = vmul.f32 %v2667, %v965
        %v2960 = vmul.f32 %v2661, %v971
        %v2961 = vmul.f32 %v2667, %v973
        %2964 = vrot.lane.b32.xlu0 %v2960, 120
        %v2965 = vpop.permute.xlu0 %2964
        %2966 = vrot.lane.b32.xlu0 %v2961, 120
        %v2967 = vpop.permute.xlu0 %2966
        %v2970 = vsub.f32 %v2958, %v2965
        %v2971 = vsub.f32 %v2959, %v2967
        %v2972 = vmul.f32 %v2661, %v989
        %v2973 = vmul.f32 %v2667, %v991
        %v2974 = vmul.f32 %v2661, %v997
        %v2975 = vmul.f32 %v2667, %v999
        %2978 = vrot.lane.b32.xlu0 %v2974, 120
        %v2979 = vpop.permute.xlu0 %2978
        %2980 = vrot.lane.b32.xlu0 %v2975, 120
        %v2981 = vpop.permute.xlu0 %2980
        %v2984 = vadd.f32 %v2972, %v2979
        %v2985 = vadd.f32 %v2973, %v2981
        %2988 = vrot.lane.b32.xlu0 %v2970, 112
        %v2989 = vpop.permute.xlu0 %2988
        %2990 = vrot.lane.b32.xlu0 %v2971, 112
        %v2991 = vpop.permute.xlu0 %2990
        %2996 = vrot.lane.b32.xlu0 %v2984, 120
        %v2997 = vpop.permute.xlu0 %2996
        %2998 = vrot.lane.b32.xlu0 %v2985, 120
        %v2999 = vpop.permute.xlu0 %2998
        %v3002 = vsel %vm694, %v2989, %v2997
        %v3003 = vsel %vm694, %v2991, %v2999
        %v3004 = vmul.f32 %v2661, %v1033
        %v3005 = vmul.f32 %v2667, %v1035
        %v3006 = vmul.f32 %v2661, %v1041
        %v3007 = vmul.f32 %v2667, %v1043
        %3010 = vrot.lane.b32.xlu0 %v3006, 120
        %v3011 = vpop.permute.xlu0 %3010
        %3012 = vrot.lane.b32.xlu0 %v3007, 120
        %v3013 = vpop.permute.xlu0 %3012
        %v3016 = vsub.f32 %v3004, %v3011
        %v3017 = vsub.f32 %v3005, %v3013
        %v3018 = vmul.f32 %v2661, %v1059
        %v3019 = vmul.f32 %v2667, %v1061
        %v3020 = vmul.f32 %v2661, %v1067
        %v3021 = vmul.f32 %v2667, %v1069
        %3024 = vrot.lane.b32.xlu0 %v3020, 120
        %v3025 = vpop.permute.xlu0 %3024
        %3026 = vrot.lane.b32.xlu0 %v3021, 120
        %v3027 = vpop.permute.xlu0 %3026
        %v3030 = vadd.f32 %v3018, %v3025
        %v3031 = vadd.f32 %v3019, %v3027
        %3034 = vrot.lane.b32.xlu0 %v3016, 48
        %v3035 = vpop.permute.xlu0 %3034
        %3036 = vrot.lane.b32.xlu0 %v3017, 48
        %v3037 = vpop.permute.xlu0 %3036
        %3042 = vrot.lane.b32.xlu0 %v3030, 56
        %v3043 = vpop.permute.xlu0 %3042
        %3044 = vrot.lane.b32.xlu0 %v3031, 56
        %v3045 = vpop.permute.xlu0 %3044
        %v3048 = vsel %vm694, %v3035, %v3043
        %v3049 = vsel %vm694, %v3037, %v3045
        %v3051 = vsel %vm767, %v3002, 0
        %v3054 = vsel %vm767, %v3003, 0
        %v3057 = vsel %vm767, %v3048, 0
        %v3060 = vsel %vm767, %v3049, 0
        %3062 = vmatprep.subr.mxu0 0.0
        %3063 = vmatpush1.xpose.msra.mxu0 0.0
        %3064 = vmatprep.subr.mxu0 0.0
        %3065 = vmatpush1.xpose.msra.mxu0 0.0
        %3066 = vmatprep.subr.mxu0 0.0
        %3067 = vmatpush1.xpose.msra.mxu0 0.0
        %3068 = vmatprep.subr.mxu0 0.0
        %3069 = vmatpush1.xpose.msra.mxu0 0.0
        %3070 = vmatprep.subr.mxu0 0.0
        %3071 = vmatpush1.xpose.msra.mxu0 0.0
        %3072 = vmatprep.subr.mxu0 0.0
        %3073 = vmatpush1.xpose.msra.mxu0 0.0
        %3074 = vmatprep.subr.mxu0 0.0
        %3075 = vmatpush1.xpose.msra.mxu0 0.0
        %3076 = vmatprep.subr.mxu0 0.0
        %3077 = vmatpush1.xpose.msra.mxu0 0.0
        %3078 = vmatprep.subr.mxu0 0.0
        %3079 = vmatpush1.xpose.msra.mxu0 0.0
        %3080 = vmatprep.subr.mxu0 0.0
        %3081 = vmatpush1.xpose.msra.mxu0 0.0
        %3082 = vmatprep.subr.mxu0 0.0
        %3083 = vmatpush1.xpose.msra.mxu0 0.0
        %3084 = vmatprep.subr.mxu0 0.0
        %3085 = vmatpush1.xpose.msra.mxu0 0.0
        %3086 = vmatprep.subr.mxu0 0.0
        %3087 = vmatpush1.xpose.msra.mxu0 0.0
        %3088 = vmatprep.subr.mxu0 0.0
        %3089 = vmatpush1.xpose.msra.mxu0 0.0
        %3090 = vmatprep.subr.mxu0 0.0
        %3091 = vmatpush1.xpose.msra.mxu0 %v3060
        %3092 = vmatprep.subr.mxu0 0.0
        %3093 = vmatpush1.xpose.msra.mxu0 %v3057
        %3094 = vmatprep.subr.mxu0 0.0
        %3095 = vmatpush2.xpose.msra.mxu0 0.0
        %3096 = vmatprep.subr.mxu0 0.0
        %3097 = vmatpush2.xpose.msra.mxu0 0.0
        %3098 = vmatprep.subr.mxu0 0.0
        %3099 = vmatpush2.xpose.msra.mxu0 0.0
        %3100 = vmatprep.subr.mxu0 0.0
        %3101 = vmatpush2.xpose.msra.mxu0 0.0
        %3102 = vmatprep.subr.mxu0 0.0
        %3103 = vmatpush2.xpose.msra.mxu0 0.0
        %3104 = vmatprep.subr.mxu0 0.0
        %3105 = vmatpush2.xpose.msra.mxu0 0.0
        %3106 = vmatprep.subr.mxu0 0.0
        %3107 = vmatpush2.xpose.msra.mxu0 0.0
        %3108 = vmatprep.subr.mxu0 0.0
        %3109 = vmatpush2.xpose.msra.mxu0 0.0
        %3110 = vmatprep.subr.mxu0 0.0
        %3111 = vmatpush2.xpose.msra.mxu0 0.0
        %3112 = vmatprep.subr.mxu0 0.0
        %3113 = vmatpush2.xpose.msra.mxu0 0.0
        %3114 = vmatprep.subr.mxu0 0.0
        %3115 = vmatpush2.xpose.msra.mxu0 0.0
        %3116 = vmatprep.subr.mxu0 0.0
        %3117 = vmatpush2.xpose.msra.mxu0 0.0
        %3118 = vmatprep.subr.mxu0 0.0
        %3119 = vmatpush2.xpose.msra.mxu0 0.0
        %3120 = vmatprep.subr.mxu0 0.0
        %3121 = vmatpush2.xpose.msra.mxu0 0.0
        %3122 = vmatprep.subr.mxu0 0.0
        %3123 = vmatpush2.xpose.msra.mxu0 0.0
        %3124 = vmatprep.subr.mxu0 0.0
        %3125 = vmatpush2.xpose.msra.mxu0 0.0
        %3126 = vmatprep.mubr.f32.mxu0 0.0
        %3127 = vmatmul.mubr.f32.gmra.mxu0 %v3051
        %v3128 = vpop.f32.mrf.mxu0
        %v3129 = vadd.f32 0.0, %v3128
        %v3130 = vpop.f32.mrf.mxu0
        %3131 = vmatprep.mubr.f32.mxu0 0.0
        %3132 = vmatmul.mubr.f32.gmra.mxu0 %v3054
        %v3133 = vpop.f32.mrf.mxu0
        %v3134 = vadd.f32 0.0, %v3133
        %v3135 = vpop.f32.mrf.mxu0
        %3136 = vdwg.mxu0
        %v3137 = vmul.f32 %v3129, 0.25
        %v3138 = vmul.f32 %v3134, 0.25
        %v3139 = vadd.f32 %v3137, %v502
        %v3140 = vadd.f32 %v3138, %v503
        %v3141 = vsel %vm767, %v3139, -inf
        %3142 = vmax.xlane.f32.xlu0 %v3141
        %v3143 = vpop.xlane.xlu0 %3142
        %v3144 = vsel %vm767, %v3140, -inf
        %3145 = vmax.xlane.f32.xlu0 %v3144
        %v3146 = vpop.xlane.xlu0 %3145
        %v3147 = vsub.f32 %v3139, %v3143
        %v3148 = vsub.f32 %v3140, %v3146
        %v3149 = vmul.f32 %v3147, 1.442695
        %v3150 = vpow.pop %v3149
        %v3151 = vmul.f32 %v3148, 1.442695
        %v3152 = vpow.pop %v3151
        %v3153 = vsel %vm767, %v3150, 0.0
        %3154 = vadd.xlane.f32.xlu0 %v3153
        %v3155 = vpop.xlane.xlu0 %3154
        %v3156 = vsel %vm767, %v3152, 0.0
        %3157 = vadd.xlane.f32.xlu0 %v3156
        %v3158 = vpop.xlane.xlu0 %3157
        %v3159 = vrcp.pop %v3155
        %v3160 = vrcp.pop %v3158
        %v3161 = vmul.f32 %v3150, %v3159
        %v3162 = vmul.f32 %v3152, %v3160
        %3165 = vrot.lane.b32.xlu0 %v2663, 112
        %v3166 = vpop.permute.xlu0 %3165
        %3167 = vrot.lane.b32.xlu0 %v2669, 112
        %v3168 = vpop.permute.xlu0 %3167
        %v3172 = vsel %vm767, %v3161, 0
        %v3175 = vsel %vm767, %v3162, 0
        %3177 = vmatprep.subr.mxu0 0.0
        %3178 = vmatpush1.msra.mxu0 0.0
        %3179 = vmatprep.subr.mxu0 0.0
        %3180 = vmatpush1.msra.mxu0 0.0
        %3181 = vmatprep.subr.mxu0 0.0
        %3182 = vmatpush1.msra.mxu0 0.0
        %3183 = vmatprep.subr.mxu0 0.0
        %3184 = vmatpush1.msra.mxu0 0.0
        %3185 = vmatprep.subr.mxu0 0.0
        %3186 = vmatpush1.msra.mxu0 0.0
        %3187 = vmatprep.subr.mxu0 0.0
        %3188 = vmatpush1.msra.mxu0 0.0
        %3189 = vmatprep.subr.mxu0 0.0
        %3190 = vmatpush1.msra.mxu0 0.0
        %3191 = vmatprep.subr.mxu0 0.0
        %3192 = vmatpush1.msra.mxu0 0.0
        %3193 = vmatprep.subr.mxu0 0.0
        %3194 = vmatpush1.msra.mxu0 0.0
        %3195 = vmatprep.subr.mxu0 0.0
        %3196 = vmatpush1.msra.mxu0 0.0
        %3197 = vmatprep.subr.mxu0 0.0
        %3198 = vmatpush1.msra.mxu0 0.0
        %3199 = vmatprep.subr.mxu0 0.0
        %3200 = vmatpush1.msra.mxu0 0.0
        %3201 = vmatprep.subr.mxu0 0.0
        %3202 = vmatpush1.msra.mxu0 0.0
        %3203 = vmatprep.subr.mxu0 0.0
        %3204 = vmatpush1.msra.mxu0 0.0
        %3205 = vmatprep.subr.mxu0 0.0
        %3206 = vmatpush1.msra.mxu0 %v3168
        %3207 = vmatprep.subr.mxu0 0.0
        %3208 = vmatpush1.msra.mxu0 %v3166
        %3209 = vmatprep.subr.mxu0 0.0
        %3210 = vmatpush2.msra.mxu0 0.0
        %3211 = vmatprep.subr.mxu0 0.0
        %3212 = vmatpush2.msra.mxu0 0.0
        %3213 = vmatprep.subr.mxu0 0.0
        %3214 = vmatpush2.msra.mxu0 0.0
        %3215 = vmatprep.subr.mxu0 0.0
        %3216 = vmatpush2.msra.mxu0 0.0
        %3217 = vmatprep.subr.mxu0 0.0
        %3218 = vmatpush2.msra.mxu0 0.0
        %3219 = vmatprep.subr.mxu0 0.0
        %3220 = vmatpush2.msra.mxu0 0.0
        %3221 = vmatprep.subr.mxu0 0.0
        %3222 = vmatpush2.msra.mxu0 0.0
        %3223 = vmatprep.subr.mxu0 0.0
        %3224 = vmatpush2.msra.mxu0 0.0
        %3225 = vmatprep.subr.mxu0 0.0
        %3226 = vmatpush2.msra.mxu0 0.0
        %3227 = vmatprep.subr.mxu0 0.0
        %3228 = vmatpush2.msra.mxu0 0.0
        %3229 = vmatprep.subr.mxu0 0.0
        %3230 = vmatpush2.msra.mxu0 0.0
        %3231 = vmatprep.subr.mxu0 0.0
        %3232 = vmatpush2.msra.mxu0 0.0
        %3233 = vmatprep.subr.mxu0 0.0
        %3234 = vmatpush2.msra.mxu0 0.0
        %3235 = vmatprep.subr.mxu0 0.0
        %3236 = vmatpush2.msra.mxu0 0.0
        %3237 = vmatprep.subr.mxu0 0.0
        %3238 = vmatpush2.msra.mxu0 0.0
        %3239 = vmatprep.subr.mxu0 0.0
        %3240 = vmatpush2.msra.mxu0 0.0
        %3241 = vmatprep.mubr.f32.mxu0 0.0
        %3242 = vmatmul.mubr.f32.gmra.mxu0 %v3172
        %v3243 = vpop.f32.mrf.mxu0
        %v3244 = vadd.f32 0.0, %v3243
        %v3245 = vpop.f32.mrf.mxu0
        %3246 = vmatprep.mubr.f32.mxu0 0.0
        %3247 = vmatmul.mubr.f32.gmra.mxu0 %v3175
        %v3248 = vpop.f32.mrf.mxu0
        %v3249 = vadd.f32 0.0, %v3248
        %v3250 = vpop.f32.mrf.mxu0
        %3251 = vdwg.mxu0
        %v3253 = vsel %vm767, %v3244, 0
        %v3256 = vsel %vm767, %v3249, 0
        %3258 = vmatprep.subr.mxu0 0.0
        %3259 = vmatpush1.msra.mxu0 0.0
        %3260 = vmatprep.subr.mxu0 0.0
        %3261 = vmatpush1.msra.mxu0 0.0
        %3262 = vmatprep.subr.mxu0 0.0
        %3263 = vmatpush1.msra.mxu0 0.0
        %3264 = vmatprep.subr.mxu0 0.0
        %3265 = vmatpush1.msra.mxu0 0.0
        %3266 = vmatprep.subr.mxu0 0.0
        %3267 = vmatpush1.msra.mxu0 0.0
        %3268 = vmatprep.subr.mxu0 0.0
        %3269 = vmatpush1.msra.mxu0 0.0
        %3270 = vmatprep.subr.mxu0 0.0
        %3271 = vmatpush1.msra.mxu0 0.0
        %3272 = vmatprep.subr.mxu0 0.0
        %3273 = vmatpush1.msra.mxu0 0.0
        %3274 = vmatprep.subr.mxu0 0.0
        %3275 = vmatpush1.msra.mxu0 0.0
        %3276 = vmatprep.subr.mxu0 0.0
        %3277 = vmatpush1.msra.mxu0 0.0
        %3278 = vmatprep.subr.mxu0 0.0
        %3279 = vmatpush1.msra.mxu0 0.0
        %3280 = vmatprep.subr.mxu0 0.0
        %3281 = vmatpush1.msra.mxu0 0.0
        %3282 = vmatprep.subr.mxu0 0.0
        %3283 = vmatpush1.msra.mxu0 0.0
        %3284 = vmatprep.subr.mxu0 0.0
        %3285 = vmatpush1.msra.mxu0 0.0
        %3286 = vmatprep.subr.mxu0 0.0
        %3287 = vmatpush1.msra.mxu0 %v2675
        %3288 = vmatprep.subr.mxu0 0.0
        %3289 = vmatpush1.msra.mxu0 %v2674
        %3290 = vmatprep.subr.mxu0 0.0
        %3291 = vmatpush2.msra.mxu0 0.0
        %3292 = vmatprep.subr.mxu0 0.0
        %3293 = vmatpush2.msra.mxu0 0.0
        %3294 = vmatprep.subr.mxu0 0.0
        %3295 = vmatpush2.msra.mxu0 0.0
        %3296 = vmatprep.subr.mxu0 0.0
        %3297 = vmatpush2.msra.mxu0 0.0
        %3298 = vmatprep.subr.mxu0 0.0
        %3299 = vmatpush2.msra.mxu0 0.0
        %3300 = vmatprep.subr.mxu0 0.0
        %3301 = vmatpush2.msra.mxu0 0.0
        %3302 = vmatprep.subr.mxu0 0.0
        %3303 = vmatpush2.msra.mxu0 0.0
        %3304 = vmatprep.subr.mxu0 0.0
        %3305 = vmatpush2.msra.mxu0 0.0
        %3306 = vmatprep.subr.mxu0 0.0
        %3307 = vmatpush2.msra.mxu0 0.0
        %3308 = vmatprep.subr.mxu0 0.0
        %3309 = vmatpush2.msra.mxu0 0.0
        %3310 = vmatprep.subr.mxu0 0.0
        %3311 = vmatpush2.msra.mxu0 0.0
        %3312 = vmatprep.subr.mxu0 0.0
        %3313 = vmatpush2.msra.mxu0 0.0
        %3314 = vmatprep.subr.mxu0 0.0
        %3315 = vmatpush2.msra.mxu0 0.0
        %3316 = vmatprep.subr.mxu0 0.0
        %3317 = vmatpush2.msra.mxu0 0.0
        %3318 = vmatprep.subr.mxu0 0.0
        %3319 = vmatpush2.msra.mxu0 0.0
        %3320 = vmatprep.subr.mxu0 0.0
        %3321 = vmatpush2.msra.mxu0 0.0
        %3322 = vmatprep.mubr.f32.mxu0 0.0
        %3323 = vmatmul.mubr.f32.gmra.mxu0 %v3253
        %v3324 = vpop.f32.mrf.mxu0
        %v3325 = vadd.f32 0.0, %v3324
        %v3326 = vpop.f32.mrf.mxu0
        %3327 = vmatprep.mubr.f32.mxu0 0.0
        %3328 = vmatmul.mubr.f32.gmra.mxu0 %v3256
        %v3329 = vpop.f32.mrf.mxu0
        %v3330 = vadd.f32 0.0, %v3329
        %v3331 = vpop.f32.mrf.mxu0
        %3332 = vdwg.mxu0
        %v3334 = vsel %vm767, %v2950, 0
        %v3337 = vsel %vm767, %v2955, 0
        %3339 = vmatprep.subr.mxu0 0.0
        %3340 = vmatpush1.msra.mxu0 0.0
        %3341 = vmatprep.subr.mxu0 0.0
        %3342 = vmatpush1.msra.mxu0 0.0
        %3343 = vmatprep.subr.mxu0 0.0
        %3344 = vmatpush1.msra.mxu0 0.0
        %3345 = vmatprep.subr.mxu0 0.0
        %3346 = vmatpush1.msra.mxu0 0.0
        %3347 = vmatprep.subr.mxu0 0.0
        %3348 = vmatpush1.msra.mxu0 0.0
        %3349 = vmatprep.subr.mxu0 0.0
        %3350 = vmatpush1.msra.mxu0 0.0
        %3351 = vmatprep.subr.mxu0 0.0
        %3352 = vmatpush1.msra.mxu0 0.0
        %3353 = vmatprep.subr.mxu0 0.0
        %3354 = vmatpush1.msra.mxu0 0.0
        %3355 = vmatprep.subr.mxu0 0.0
        %3356 = vmatpush1.msra.mxu0 0.0
        %3357 = vmatprep.subr.mxu0 0.0
        %3358 = vmatpush1.msra.mxu0 0.0
        %3359 = vmatprep.subr.mxu0 0.0
        %3360 = vmatpush1.msra.mxu0 0.0
        %3361 = vmatprep.subr.mxu0 0.0
        %3362 = vmatpush1.msra.mxu0 0.0
        %3363 = vmatprep.subr.mxu0 0.0
        %3364 = vmatpush1.msra.mxu0 0.0
        %3365 = vmatprep.subr.mxu0 0.0
        %3366 = vmatpush1.msra.mxu0 0.0
        %3367 = vmatprep.subr.mxu0 0.0
        %3368 = vmatpush1.msra.mxu0 %v2673
        %3369 = vmatprep.subr.mxu0 0.0
        %3370 = vmatpush1.msra.mxu0 %v2672
        %3371 = vmatprep.subr.mxu0 0.0
        %3372 = vmatpush2.msra.mxu0 0.0
        %3373 = vmatprep.subr.mxu0 0.0
        %3374 = vmatpush2.msra.mxu0 0.0
        %3375 = vmatprep.subr.mxu0 0.0
        %3376 = vmatpush2.msra.mxu0 0.0
        %3377 = vmatprep.subr.mxu0 0.0
        %3378 = vmatpush2.msra.mxu0 0.0
        %3379 = vmatprep.subr.mxu0 0.0
        %3380 = vmatpush2.msra.mxu0 0.0
        %3381 = vmatprep.subr.mxu0 0.0
        %3382 = vmatpush2.msra.mxu0 0.0
        %3383 = vmatprep.subr.mxu0 0.0
        %3384 = vmatpush2.msra.mxu0 0.0
        %3385 = vmatprep.subr.mxu0 0.0
        %3386 = vmatpush2.msra.mxu0 0.0
        %3387 = vmatprep.subr.mxu0 0.0
        %3388 = vmatpush2.msra.mxu0 0.0
        %3389 = vmatprep.subr.mxu0 0.0
        %3390 = vmatpush2.msra.mxu0 0.0
        %3391 = vmatprep.subr.mxu0 0.0
        %3392 = vmatpush2.msra.mxu0 0.0
        %3393 = vmatprep.subr.mxu0 0.0
        %3394 = vmatpush2.msra.mxu0 0.0
        %3395 = vmatprep.subr.mxu0 0.0
        %3396 = vmatpush2.msra.mxu0 0.0
        %3397 = vmatprep.subr.mxu0 0.0
        %3398 = vmatpush2.msra.mxu0 0.0
        %3399 = vmatprep.subr.mxu0 0.0
        %3400 = vmatpush2.msra.mxu0 0.0
        %3401 = vmatprep.subr.mxu0 0.0
        %3402 = vmatpush2.msra.mxu0 0.0
        %3403 = vmatprep.mubr.f32.mxu0 0.0
        %3404 = vmatmul.mubr.f32.gmra.mxu0 %v3334
        %v3405 = vpop.f32.mrf.mxu0
        %v3406 = vadd.f32 %v3325, %v3405
        %v3407 = vpop.f32.mrf.mxu0
        %3408 = vmatprep.mubr.f32.mxu0 0.0
        %3409 = vmatmul.mubr.f32.gmra.mxu0 %v3337
        %v3410 = vpop.f32.mrf.mxu0
        %v3411 = vadd.f32 %v3330, %v3410
        %v3412 = vpop.f32.mrf.mxu0
        %3413 = vdwg.mxu0
        %v3414 = vmul.f32 %v2661, %v1467
        %v3415 = vmul.f32 %v2667, %v1469
        %v3416 = vmul.f32 %v2661, %v1475
        %v3417 = vmul.f32 %v2667, %v1477
        %3420 = vrot.lane.b32.xlu0 %v3416, 120
        %v3421 = vpop.permute.xlu0 %3420
        %3422 = vrot.lane.b32.xlu0 %v3417, 120
        %v3423 = vpop.permute.xlu0 %3422
        %v3426 = vsub.f32 %v3414, %v3421
        %v3427 = vsub.f32 %v3415, %v3423
        %v3428 = vmul.f32 %v2661, %v1493
        %v3429 = vmul.f32 %v2667, %v1495
        %v3430 = vmul.f32 %v2661, %v1501
        %v3431 = vmul.f32 %v2667, %v1503
        %3434 = vrot.lane.b32.xlu0 %v3430, 120
        %v3435 = vpop.permute.xlu0 %3434
        %3436 = vrot.lane.b32.xlu0 %v3431, 120
        %v3437 = vpop.permute.xlu0 %3436
        %v3440 = vadd.f32 %v3428, %v3435
        %v3441 = vadd.f32 %v3429, %v3437
        %3444 = vrot.lane.b32.xlu0 %v3426, 96
        %v3445 = vpop.permute.xlu0 %3444
        %3446 = vrot.lane.b32.xlu0 %v3427, 96
        %v3447 = vpop.permute.xlu0 %3446
        %3452 = vrot.lane.b32.xlu0 %v3440, 104
        %v3453 = vpop.permute.xlu0 %3452
        %3454 = vrot.lane.b32.xlu0 %v3441, 104
        %v3455 = vpop.permute.xlu0 %3454
        %v3458 = vsel %vm694, %v3445, %v3453
        %v3459 = vsel %vm694, %v3447, %v3455
        %v3460 = vmul.f32 %v2661, %v1537
        %v3461 = vmul.f32 %v2667, %v1539
        %v3462 = vmul.f32 %v2661, %v1545
        %v3463 = vmul.f32 %v2667, %v1547
        %3466 = vrot.lane.b32.xlu0 %v3462, 120
        %v3467 = vpop.permute.xlu0 %3466
        %3468 = vrot.lane.b32.xlu0 %v3463, 120
        %v3469 = vpop.permute.xlu0 %3468
        %v3472 = vsub.f32 %v3460, %v3467
        %v3473 = vsub.f32 %v3461, %v3469
        %v3474 = vmul.f32 %v2661, %v1563
        %v3475 = vmul.f32 %v2667, %v1565
        %v3476 = vmul.f32 %v2661, %v1571
        %v3477 = vmul.f32 %v2667, %v1573
        %3480 = vrot.lane.b32.xlu0 %v3476, 120
        %v3481 = vpop.permute.xlu0 %3480
        %3482 = vrot.lane.b32.xlu0 %v3477, 120
        %v3483 = vpop.permute.xlu0 %3482
        %v3486 = vadd.f32 %v3474, %v3481
        %v3487 = vadd.f32 %v3475, %v3483
        %3490 = vrot.lane.b32.xlu0 %v3472, 32
        %v3491 = vpop.permute.xlu0 %3490
        %3492 = vrot.lane.b32.xlu0 %v3473, 32
        %v3493 = vpop.permute.xlu0 %3492
        %3498 = vrot.lane.b32.xlu0 %v3486, 40
        %v3499 = vpop.permute.xlu0 %3498
        %3500 = vrot.lane.b32.xlu0 %v3487, 40
        %v3501 = vpop.permute.xlu0 %3500
        %v3504 = vsel %vm694, %v3491, %v3499
        %v3505 = vsel %vm694, %v3493, %v3501
        %v3507 = vsel %vm767, %v3458, 0
        %v3510 = vsel %vm767, %v3459, 0
        %v3513 = vsel %vm767, %v3504, 0
        %v3516 = vsel %vm767, %v3505, 0
        %3518 = vmatprep.subr.mxu0 0.0
        %3519 = vmatpush1.xpose.msra.mxu0 0.0
        %3520 = vmatprep.subr.mxu0 0.0
        %3521 = vmatpush1.xpose.msra.mxu0 0.0
        %3522 = vmatprep.subr.mxu0 0.0
        %3523 = vmatpush1.xpose.msra.mxu0 0.0
        %3524 = vmatprep.subr.mxu0 0.0
        %3525 = vmatpush1.xpose.msra.mxu0 0.0
        %3526 = vmatprep.subr.mxu0 0.0
        %3527 = vmatpush1.xpose.msra.mxu0 0.0
        %3528 = vmatprep.subr.mxu0 0.0
        %3529 = vmatpush1.xpose.msra.mxu0 0.0
        %3530 = vmatprep.subr.mxu0 0.0
        %3531 = vmatpush1.xpose.msra.mxu0 0.0
        %3532 = vmatprep.subr.mxu0 0.0
        %3533 = vmatpush1.xpose.msra.mxu0 0.0
        %3534 = vmatprep.subr.mxu0 0.0
        %3535 = vmatpush1.xpose.msra.mxu0 0.0
        %3536 = vmatprep.subr.mxu0 0.0
        %3537 = vmatpush1.xpose.msra.mxu0 0.0
        %3538 = vmatprep.subr.mxu0 0.0
        %3539 = vmatpush1.xpose.msra.mxu0 0.0
        %3540 = vmatprep.subr.mxu0 0.0
        %3541 = vmatpush1.xpose.msra.mxu0 0.0
        %3542 = vmatprep.subr.mxu0 0.0
        %3543 = vmatpush1.xpose.msra.mxu0 0.0
        %3544 = vmatprep.subr.mxu0 0.0
        %3545 = vmatpush1.xpose.msra.mxu0 0.0
        %3546 = vmatprep.subr.mxu0 0.0
        %3547 = vmatpush1.xpose.msra.mxu0 %v3516
        %3548 = vmatprep.subr.mxu0 0.0
        %3549 = vmatpush1.xpose.msra.mxu0 %v3513
        %3550 = vmatprep.subr.mxu0 0.0
        %3551 = vmatpush2.xpose.msra.mxu0 0.0
        %3552 = vmatprep.subr.mxu0 0.0
        %3553 = vmatpush2.xpose.msra.mxu0 0.0
        %3554 = vmatprep.subr.mxu0 0.0
        %3555 = vmatpush2.xpose.msra.mxu0 0.0
        %3556 = vmatprep.subr.mxu0 0.0
        %3557 = vmatpush2.xpose.msra.mxu0 0.0
        %3558 = vmatprep.subr.mxu0 0.0
        %3559 = vmatpush2.xpose.msra.mxu0 0.0
        %3560 = vmatprep.subr.mxu0 0.0
        %3561 = vmatpush2.xpose.msra.mxu0 0.0
        %3562 = vmatprep.subr.mxu0 0.0
        %3563 = vmatpush2.xpose.msra.mxu0 0.0
        %3564 = vmatprep.subr.mxu0 0.0
        %3565 = vmatpush2.xpose.msra.mxu0 0.0
        %3566 = vmatprep.subr.mxu0 0.0
        %3567 = vmatpush2.xpose.msra.mxu0 0.0
        %3568 = vmatprep.subr.mxu0 0.0
        %3569 = vmatpush2.xpose.msra.mxu0 0.0
        %3570 = vmatprep.subr.mxu0 0.0
        %3571 = vmatpush2.xpose.msra.mxu0 0.0
        %3572 = vmatprep.subr.mxu0 0.0
        %3573 = vmatpush2.xpose.msra.mxu0 0.0
        %3574 = vmatprep.subr.mxu0 0.0
        %3575 = vmatpush2.xpose.msra.mxu0 0.0
        %3576 = vmatprep.subr.mxu0 0.0
        %3577 = vmatpush2.xpose.msra.mxu0 0.0
        %3578 = vmatprep.subr.mxu0 0.0
        %3579 = vmatpush2.xpose.msra.mxu0 0.0
        %3580 = vmatprep.subr.mxu0 0.0
        %3581 = vmatpush2.xpose.msra.mxu0 0.0
        %3582 = vmatprep.mubr.f32.mxu0 0.0
        %3583 = vmatmul.mubr.f32.gmra.mxu0 %v3507
        %v3584 = vpop.f32.mrf.mxu0
        %v3585 = vadd.f32 0.0, %v3584
        %v3586 = vpop.f32.mrf.mxu0
        %3587 = vmatprep.mubr.f32.mxu0 0.0
        %3588 = vmatmul.mubr.f32.gmra.mxu0 %v3510
        %v3589 = vpop.f32.mrf.mxu0
        %v3590 = vadd.f32 0.0, %v3589
        %v3591 = vpop.f32.mrf.mxu0
        %3592 = vdwg.mxu0
        %v3593 = vmul.f32 %v3585, 0.25
        %v3594 = vmul.f32 %v3590, 0.25
        %v3595 = vadd.f32 %v3593, %v502
        %v3596 = vadd.f32 %v3594, %v503
        %v3597 = vsel %vm767, %v3595, -inf
        %3598 = vmax.xlane.f32.xlu0 %v3597
        %v3599 = vpop.xlane.xlu0 %3598
        %v3600 = vsel %vm767, %v3596, -inf
        %3601 = vmax.xlane.f32.xlu0 %v3600
        %v3602 = vpop.xlane.xlu0 %3601
        %v3603 = vsub.f32 %v3595, %v3599
        %v3604 = vsub.f32 %v3596, %v3602
        %v3605 = vmul.f32 %v3603, 1.442695
        %v3606 = vpow.pop %v3605
        %v3607 = vmul.f32 %v3604, 1.442695
        %v3608 = vpow.pop %v3607
        %v3609 = vsel %vm767, %v3606, 0.0
        %3610 = vadd.xlane.f32.xlu0 %v3609
        %v3611 = vpop.xlane.xlu0 %3610
        %v3612 = vsel %vm767, %v3608, 0.0
        %3613 = vadd.xlane.f32.xlu0 %v3612
        %v3614 = vpop.xlane.xlu0 %3613
        %v3615 = vrcp.pop %v3611
        %v3616 = vrcp.pop %v3614
        %v3617 = vmul.f32 %v3606, %v3615
        %v3618 = vmul.f32 %v3608, %v3616
        %3619 = vrot.lane.b32.xlu0 %v2663, 96
        %v3620 = vpop.permute.xlu0 %3619
        %3621 = vrot.lane.b32.xlu0 %v2669, 96
        %v3622 = vpop.permute.xlu0 %3621
        %v3626 = vsel %vm767, %v3617, 0
        %v3629 = vsel %vm767, %v3618, 0
        %3631 = vmatprep.subr.mxu0 0.0
        %3632 = vmatpush1.msra.mxu0 0.0
        %3633 = vmatprep.subr.mxu0 0.0
        %3634 = vmatpush1.msra.mxu0 0.0
        %3635 = vmatprep.subr.mxu0 0.0
        %3636 = vmatpush1.msra.mxu0 0.0
        %3637 = vmatprep.subr.mxu0 0.0
        %3638 = vmatpush1.msra.mxu0 0.0
        %3639 = vmatprep.subr.mxu0 0.0
        %3640 = vmatpush1.msra.mxu0 0.0
        %3641 = vmatprep.subr.mxu0 0.0
        %3642 = vmatpush1.msra.mxu0 0.0
        %3643 = vmatprep.subr.mxu0 0.0
        %3644 = vmatpush1.msra.mxu0 0.0
        %3645 = vmatprep.subr.mxu0 0.0
        %3646 = vmatpush1.msra.mxu0 0.0
        %3647 = vmatprep.subr.mxu0 0.0
        %3648 = vmatpush1.msra.mxu0 0.0
        %3649 = vmatprep.subr.mxu0 0.0
        %3650 = vmatpush1.msra.mxu0 0.0
        %3651 = vmatprep.subr.mxu0 0.0
        %3652 = vmatpush1.msra.mxu0 0.0
        %3653 = vmatprep.subr.mxu0 0.0
        %3654 = vmatpush1.msra.mxu0 0.0
        %3655 = vmatprep.subr.mxu0 0.0
        %3656 = vmatpush1.msra.mxu0 0.0
        %3657 = vmatprep.subr.mxu0 0.0
        %3658 = vmatpush1.msra.mxu0 0.0
        %3659 = vmatprep.subr.mxu0 0.0
        %3660 = vmatpush1.msra.mxu0 %v3622
        %3661 = vmatprep.subr.mxu0 0.0
        %3662 = vmatpush1.msra.mxu0 %v3620
        %3663 = vmatprep.subr.mxu0 0.0
        %3664 = vmatpush2.msra.mxu0 0.0
        %3665 = vmatprep.subr.mxu0 0.0
        %3666 = vmatpush2.msra.mxu0 0.0
        %3667 = vmatprep.subr.mxu0 0.0
        %3668 = vmatpush2.msra.mxu0 0.0
        %3669 = vmatprep.subr.mxu0 0.0
        %3670 = vmatpush2.msra.mxu0 0.0
        %3671 = vmatprep.subr.mxu0 0.0
        %3672 = vmatpush2.msra.mxu0 0.0
        %3673 = vmatprep.subr.mxu0 0.0
        %3674 = vmatpush2.msra.mxu0 0.0
        %3675 = vmatprep.subr.mxu0 0.0
        %3676 = vmatpush2.msra.mxu0 0.0
        %3677 = vmatprep.subr.mxu0 0.0
        %3678 = vmatpush2.msra.mxu0 0.0
        %3679 = vmatprep.subr.mxu0 0.0
        %3680 = vmatpush2.msra.mxu0 0.0
        %3681 = vmatprep.subr.mxu0 0.0
        %3682 = vmatpush2.msra.mxu0 0.0
        %3683 = vmatprep.subr.mxu0 0.0
        %3684 = vmatpush2.msra.mxu0 0.0
        %3685 = vmatprep.subr.mxu0 0.0
        %3686 = vmatpush2.msra.mxu0 0.0
        %3687 = vmatprep.subr.mxu0 0.0
        %3688 = vmatpush2.msra.mxu0 0.0
        %3689 = vmatprep.subr.mxu0 0.0
        %3690 = vmatpush2.msra.mxu0 0.0
        %3691 = vmatprep.subr.mxu0 0.0
        %3692 = vmatpush2.msra.mxu0 0.0
        %3693 = vmatprep.subr.mxu0 0.0
        %3694 = vmatpush2.msra.mxu0 0.0
        %3695 = vmatprep.mubr.f32.mxu0 0.0
        %3696 = vmatmul.mubr.f32.gmra.mxu0 %v3626
        %v3697 = vpop.f32.mrf.mxu0
        %v3698 = vadd.f32 0.0, %v3697
        %v3699 = vpop.f32.mrf.mxu0
        %3700 = vmatprep.mubr.f32.mxu0 0.0
        %3701 = vmatmul.mubr.f32.gmra.mxu0 %v3629
        %v3702 = vpop.f32.mrf.mxu0
        %v3703 = vadd.f32 0.0, %v3702
        %v3704 = vpop.f32.mrf.mxu0
        %3705 = vdwg.mxu0
        %v3707 = vsel %vm767, %v3698, 0
        %v3710 = vsel %vm767, %v3703, 0
        %3712 = vmatprep.subr.mxu0 0.0
        %3713 = vmatpush1.msra.mxu0 0.0
        %3714 = vmatprep.subr.mxu0 0.0
        %3715 = vmatpush1.msra.mxu0 0.0
        %3716 = vmatprep.subr.mxu0 0.0
        %3717 = vmatpush1.msra.mxu0 0.0
        %3718 = vmatprep.subr.mxu0 0.0
        %3719 = vmatpush1.msra.mxu0 0.0
        %3720 = vmatprep.subr.mxu0 0.0
        %3721 = vmatpush1.msra.mxu0 0.0
        %3722 = vmatprep.subr.mxu0 0.0
        %3723 = vmatpush1.msra.mxu0 0.0
        %3724 = vmatprep.subr.mxu0 0.0
        %3725 = vmatpush1.msra.mxu0 0.0
        %3726 = vmatprep.subr.mxu0 0.0
        %3727 = vmatpush1.msra.mxu0 0.0
        %3728 = vmatprep.subr.mxu0 0.0
        %3729 = vmatpush1.msra.mxu0 0.0
        %3730 = vmatprep.subr.mxu0 0.0
        %3731 = vmatpush1.msra.mxu0 0.0
        %3732 = vmatprep.subr.mxu0 0.0
        %3733 = vmatpush1.msra.mxu0 0.0
        %3734 = vmatprep.subr.mxu0 0.0
        %3735 = vmatpush1.msra.mxu0 0.0
        %3736 = vmatprep.subr.mxu0 0.0
        %3737 = vmatpush1.msra.mxu0 0.0
        %3738 = vmatprep.subr.mxu0 0.0
        %3739 = vmatpush1.msra.mxu0 0.0
        %3740 = vmatprep.subr.mxu0 0.0
        %3741 = vmatpush1.msra.mxu0 %v2677
        %3742 = vmatprep.subr.mxu0 0.0
        %3743 = vmatpush1.msra.mxu0 %v2676
        %3744 = vmatprep.subr.mxu0 0.0
        %3745 = vmatpush2.msra.mxu0 0.0
        %3746 = vmatprep.subr.mxu0 0.0
        %3747 = vmatpush2.msra.mxu0 0.0
        %3748 = vmatprep.subr.mxu0 0.0
        %3749 = vmatpush2.msra.mxu0 0.0
        %3750 = vmatprep.subr.mxu0 0.0
        %3751 = vmatpush2.msra.mxu0 0.0
        %3752 = vmatprep.subr.mxu0 0.0
        %3753 = vmatpush2.msra.mxu0 0.0
        %3754 = vmatprep.subr.mxu0 0.0
        %3755 = vmatpush2.msra.mxu0 0.0
        %3756 = vmatprep.subr.mxu0 0.0
        %3757 = vmatpush2.msra.mxu0 0.0
        %3758 = vmatprep.subr.mxu0 0.0
        %3759 = vmatpush2.msra.mxu0 0.0
        %3760 = vmatprep.subr.mxu0 0.0
        %3761 = vmatpush2.msra.mxu0 0.0
        %3762 = vmatprep.subr.mxu0 0.0
        %3763 = vmatpush2.msra.mxu0 0.0
        %3764 = vmatprep.subr.mxu0 0.0
        %3765 = vmatpush2.msra.mxu0 0.0
        %3766 = vmatprep.subr.mxu0 0.0
        %3767 = vmatpush2.msra.mxu0 0.0
        %3768 = vmatprep.subr.mxu0 0.0
        %3769 = vmatpush2.msra.mxu0 0.0
        %3770 = vmatprep.subr.mxu0 0.0
        %3771 = vmatpush2.msra.mxu0 0.0
        %3772 = vmatprep.subr.mxu0 0.0
        %3773 = vmatpush2.msra.mxu0 0.0
        %3774 = vmatprep.subr.mxu0 0.0
        %3775 = vmatpush2.msra.mxu0 0.0
        %3776 = vmatprep.mubr.f32.mxu0 0.0
        %3777 = vmatmul.mubr.f32.gmra.mxu0 %v3707
        %v3778 = vpop.f32.mrf.mxu0
        %v3779 = vadd.f32 0.0, %v3778
        %v3780 = vpop.f32.mrf.mxu0
        %3781 = vmatprep.mubr.f32.mxu0 0.0
        %3782 = vmatmul.mubr.f32.gmra.mxu0 %v3710
        %v3783 = vpop.f32.mrf.mxu0
        %v3784 = vadd.f32 0.0, %v3783
        %v3785 = vpop.f32.mrf.mxu0
        %3786 = vdwg.mxu0
        %v3787 = vadd.f32 %v3406, %v3779
        %v3788 = vadd.f32 %v3411, %v3784
        %v3789 = vmul.f32 %v2661, %v1890
        %v3790 = vmul.f32 %v2667, %v1892
        %v3791 = vmul.f32 %v2661, %v1898
        %v3792 = vmul.f32 %v2667, %v1900
        %3795 = vrot.lane.b32.xlu0 %v3791, 120
        %v3796 = vpop.permute.xlu0 %3795
        %3797 = vrot.lane.b32.xlu0 %v3792, 120
        %v3798 = vpop.permute.xlu0 %3797
        %v3801 = vsub.f32 %v3789, %v3796
        %v3802 = vsub.f32 %v3790, %v3798
        %v3803 = vmul.f32 %v2661, %v1916
        %v3804 = vmul.f32 %v2667, %v1918
        %v3805 = vmul.f32 %v2661, %v1924
        %v3806 = vmul.f32 %v2667, %v1926
        %3809 = vrot.lane.b32.xlu0 %v3805, 120
        %v3810 = vpop.permute.xlu0 %3809
        %3811 = vrot.lane.b32.xlu0 %v3806, 120
        %v3812 = vpop.permute.xlu0 %3811
        %v3815 = vadd.f32 %v3803, %v3810
        %v3816 = vadd.f32 %v3804, %v3812
        %3819 = vrot.lane.b32.xlu0 %v3801, 80
        %v3820 = vpop.permute.xlu0 %3819
        %3821 = vrot.lane.b32.xlu0 %v3802, 80
        %v3822 = vpop.permute.xlu0 %3821
        %3827 = vrot.lane.b32.xlu0 %v3815, 88
        %v3828 = vpop.permute.xlu0 %3827
        %3829 = vrot.lane.b32.xlu0 %v3816, 88
        %v3830 = vpop.permute.xlu0 %3829
        %v3833 = vsel %vm694, %v3820, %v3828
        %v3834 = vsel %vm694, %v3822, %v3830
        %v3835 = vmul.f32 %v2661, %v1960
        %v3836 = vmul.f32 %v2667, %v1962
        %v3837 = vmul.f32 %v2661, %v1968
        %v3838 = vmul.f32 %v2667, %v1970
        %3841 = vrot.lane.b32.xlu0 %v3837, 120
        %v3842 = vpop.permute.xlu0 %3841
        %3843 = vrot.lane.b32.xlu0 %v3838, 120
        %v3844 = vpop.permute.xlu0 %3843
        %v3847 = vsub.f32 %v3835, %v3842
        %v3848 = vsub.f32 %v3836, %v3844
        %v3849 = vmul.f32 %v2661, %v1986
        %v3850 = vmul.f32 %v2667, %v1988
        %v3851 = vmul.f32 %v2661, %v1994
        %v3852 = vmul.f32 %v2667, %v1996
        %3855 = vrot.lane.b32.xlu0 %v3851, 120
        %v3856 = vpop.permute.xlu0 %3855
        %3857 = vrot.lane.b32.xlu0 %v3852, 120
        %v3858 = vpop.permute.xlu0 %3857
        %v3861 = vadd.f32 %v3849, %v3856
        %v3862 = vadd.f32 %v3850, %v3858
        %3865 = vrot.lane.b32.xlu0 %v3847, 16
        %v3866 = vpop.permute.xlu0 %3865
        %3867 = vrot.lane.b32.xlu0 %v3848, 16
        %v3868 = vpop.permute.xlu0 %3867
        %3873 = vrot.lane.b32.xlu0 %v3861, 24
        %v3874 = vpop.permute.xlu0 %3873
        %3875 = vrot.lane.b32.xlu0 %v3862, 24
        %v3876 = vpop.permute.xlu0 %3875
        %v3879 = vsel %vm694, %v3866, %v3874
        %v3880 = vsel %vm694, %v3868, %v3876
        %v3882 = vsel %vm767, %v3833, 0
        %v3885 = vsel %vm767, %v3834, 0
        %v3888 = vsel %vm767, %v3879, 0
        %v3891 = vsel %vm767, %v3880, 0
        %3893 = vmatprep.subr.mxu0 0.0
        %3894 = vmatpush1.xpose.msra.mxu0 0.0
        %3895 = vmatprep.subr.mxu0 0.0
        %3896 = vmatpush1.xpose.msra.mxu0 0.0
        %3897 = vmatprep.subr.mxu0 0.0
        %3898 = vmatpush1.xpose.msra.mxu0 0.0
        %3899 = vmatprep.subr.mxu0 0.0
        %3900 = vmatpush1.xpose.msra.mxu0 0.0
        %3901 = vmatprep.subr.mxu0 0.0
        %3902 = vmatpush1.xpose.msra.mxu0 0.0
        %3903 = vmatprep.subr.mxu0 0.0
        %3904 = vmatpush1.xpose.msra.mxu0 0.0
        %3905 = vmatprep.subr.mxu0 0.0
        %3906 = vmatpush1.xpose.msra.mxu0 0.0
        %3907 = vmatprep.subr.mxu0 0.0
        %3908 = vmatpush1.xpose.msra.mxu0 0.0
        %3909 = vmatprep.subr.mxu0 0.0
        %3910 = vmatpush1.xpose.msra.mxu0 0.0
        %3911 = vmatprep.subr.mxu0 0.0
        %3912 = vmatpush1.xpose.msra.mxu0 0.0
        %3913 = vmatprep.subr.mxu0 0.0
        %3914 = vmatpush1.xpose.msra.mxu0 0.0
        %3915 = vmatprep.subr.mxu0 0.0
        %3916 = vmatpush1.xpose.msra.mxu0 0.0
        %3917 = vmatprep.subr.mxu0 0.0
        %3918 = vmatpush1.xpose.msra.mxu0 0.0
        %3919 = vmatprep.subr.mxu0 0.0
        %3920 = vmatpush1.xpose.msra.mxu0 0.0
        %3921 = vmatprep.subr.mxu0 0.0
        %3922 = vmatpush1.xpose.msra.mxu0 %v3891
        %3923 = vmatprep.subr.mxu0 0.0
        %3924 = vmatpush1.xpose.msra.mxu0 %v3888
        %3925 = vmatprep.subr.mxu0 0.0
        %3926 = vmatpush2.xpose.msra.mxu0 0.0
        %3927 = vmatprep.subr.mxu0 0.0
        %3928 = vmatpush2.xpose.msra.mxu0 0.0
        %3929 = vmatprep.subr.mxu0 0.0
        %3930 = vmatpush2.xpose.msra.mxu0 0.0
        %3931 = vmatprep.subr.mxu0 0.0
        %3932 = vmatpush2.xpose.msra.mxu0 0.0
        %3933 = vmatprep.subr.mxu0 0.0
        %3934 = vmatpush2.xpose.msra.mxu0 0.0
        %3935 = vmatprep.subr.mxu0 0.0
        %3936 = vmatpush2.xpose.msra.mxu0 0.0
        %3937 = vmatprep.subr.mxu0 0.0
        %3938 = vmatpush2.xpose.msra.mxu0 0.0
        %3939 = vmatprep.subr.mxu0 0.0
        %3940 = vmatpush2.xpose.msra.mxu0 0.0
        %3941 = vmatprep.subr.mxu0 0.0
        %3942 = vmatpush2.xpose.msra.mxu0 0.0
        %3943 = vmatprep.subr.mxu0 0.0
        %3944 = vmatpush2.xpose.msra.mxu0 0.0
        %3945 = vmatprep.subr.mxu0 0.0
        %3946 = vmatpush2.xpose.msra.mxu0 0.0
        %3947 = vmatprep.subr.mxu0 0.0
        %3948 = vmatpush2.xpose.msra.mxu0 0.0
        %3949 = vmatprep.subr.mxu0 0.0
        %3950 = vmatpush2.xpose.msra.mxu0 0.0
        %3951 = vmatprep.subr.mxu0 0.0
        %3952 = vmatpush2.xpose.msra.mxu0 0.0
        %3953 = vmatprep.subr.mxu0 0.0
        %3954 = vmatpush2.xpose.msra.mxu0 0.0
        %3955 = vmatprep.subr.mxu0 0.0
        %3956 = vmatpush2.xpose.msra.mxu0 0.0
        %3957 = vmatprep.mubr.f32.mxu0 0.0
        %3958 = vmatmul.mubr.f32.gmra.mxu0 %v3882
        %v3959 = vpop.f32.mrf.mxu0
        %v3960 = vadd.f32 0.0, %v3959
        %v3961 = vpop.f32.mrf.mxu0
        %3962 = vmatprep.mubr.f32.mxu0 0.0
        %3963 = vmatmul.mubr.f32.gmra.mxu0 %v3885
        %v3964 = vpop.f32.mrf.mxu0
        %v3965 = vadd.f32 0.0, %v3964
        %v3966 = vpop.f32.mrf.mxu0
        %3967 = vdwg.mxu0
        %v3968 = vmul.f32 %v3960, 0.25
        %v3969 = vmul.f32 %v3965, 0.25
        %v3970 = vadd.f32 %v3968, %v502
        %v3971 = vadd.f32 %v3969, %v503
        %v3972 = vsel %vm767, %v3970, -inf
        %3973 = vmax.xlane.f32.xlu0 %v3972
        %v3974 = vpop.xlane.xlu0 %3973
        %v3975 = vsel %vm767, %v3971, -inf
        %3976 = vmax.xlane.f32.xlu0 %v3975
        %v3977 = vpop.xlane.xlu0 %3976
        %v3978 = vsub.f32 %v3970, %v3974
        %v3979 = vsub.f32 %v3971, %v3977
        %v3980 = vmul.f32 %v3978, 1.442695
        %v3981 = vpow.pop %v3980
        %v3982 = vmul.f32 %v3979, 1.442695
        %v3983 = vpow.pop %v3982
        %v3984 = vsel %vm767, %v3981, 0.0
        %3985 = vadd.xlane.f32.xlu0 %v3984
        %v3986 = vpop.xlane.xlu0 %3985
        %v3987 = vsel %vm767, %v3983, 0.0
        %3988 = vadd.xlane.f32.xlu0 %v3987
        %v3989 = vpop.xlane.xlu0 %3988
        %v3990 = vrcp.pop %v3986
        %v3991 = vrcp.pop %v3989
        %v3992 = vmul.f32 %v3981, %v3990
        %v3993 = vmul.f32 %v3983, %v3991
        %3994 = vrot.lane.b32.xlu0 %v2663, 80
        %v3995 = vpop.permute.xlu0 %3994
        %3996 = vrot.lane.b32.xlu0 %v2669, 80
        %v3997 = vpop.permute.xlu0 %3996
        %v4001 = vsel %vm767, %v3992, 0
        %v4004 = vsel %vm767, %v3993, 0
        %4006 = vmatprep.subr.mxu0 0.0
        %4007 = vmatpush1.msra.mxu0 0.0
        %4008 = vmatprep.subr.mxu0 0.0
        %4009 = vmatpush1.msra.mxu0 0.0
        %4010 = vmatprep.subr.mxu0 0.0
        %4011 = vmatpush1.msra.mxu0 0.0
        %4012 = vmatprep.subr.mxu0 0.0
        %4013 = vmatpush1.msra.mxu0 0.0
        %4014 = vmatprep.subr.mxu0 0.0
        %4015 = vmatpush1.msra.mxu0 0.0
        %4016 = vmatprep.subr.mxu0 0.0
        %4017 = vmatpush1.msra.mxu0 0.0
        %4018 = vmatprep.subr.mxu0 0.0
        %4019 = vmatpush1.msra.mxu0 0.0
        %4020 = vmatprep.subr.mxu0 0.0
        %4021 = vmatpush1.msra.mxu0 0.0
        %4022 = vmatprep.subr.mxu0 0.0
        %4023 = vmatpush1.msra.mxu0 0.0
        %4024 = vmatprep.subr.mxu0 0.0
        %4025 = vmatpush1.msra.mxu0 0.0
        %4026 = vmatprep.subr.mxu0 0.0
        %4027 = vmatpush1.msra.mxu0 0.0
        %4028 = vmatprep.subr.mxu0 0.0
        %4029 = vmatpush1.msra.mxu0 0.0
        %4030 = vmatprep.subr.mxu0 0.0
        %4031 = vmatpush1.msra.mxu0 0.0
        %4032 = vmatprep.subr.mxu0 0.0
        %4033 = vmatpush1.msra.mxu0 0.0
        %4034 = vmatprep.subr.mxu0 0.0
        %4035 = vmatpush1.msra.mxu0 %v3997
        %4036 = vmatprep.subr.mxu0 0.0
        %4037 = vmatpush1.msra.mxu0 %v3995
        %4038 = vmatprep.subr.mxu0 0.0
        %4039 = vmatpush2.msra.mxu0 0.0
        %4040 = vmatprep.subr.mxu0 0.0
        %4041 = vmatpush2.msra.mxu0 0.0
        %4042 = vmatprep.subr.mxu0 0.0
        %4043 = vmatpush2.msra.mxu0 0.0
        %4044 = vmatprep.subr.mxu0 0.0
        %4045 = vmatpush2.msra.mxu0 0.0
        %4046 = vmatprep.subr.mxu0 0.0
        %4047 = vmatpush2.msra.mxu0 0.0
        %4048 = vmatprep.subr.mxu0 0.0
        %4049 = vmatpush2.msra.mxu0 0.0
        %4050 = vmatprep.subr.mxu0 0.0
        %4051 = vmatpush2.msra.mxu0 0.0
        %4052 = vmatprep.subr.mxu0 0.0
        %4053 = vmatpush2.msra.mxu0 0.0
        %4054 = vmatprep.subr.mxu0 0.0
        %4055 = vmatpush2.msra.mxu0 0.0
        %4056 = vmatprep.subr.mxu0 0.0
        %4057 = vmatpush2.msra.mxu0 0.0
        %4058 = vmatprep.subr.mxu0 0.0
        %4059 = vmatpush2.msra.mxu0 0.0
        %4060 = vmatprep.subr.mxu0 0.0
        %4061 = vmatpush2.msra.mxu0 0.0
        %4062 = vmatprep.subr.mxu0 0.0
        %4063 = vmatpush2.msra.mxu0 0.0
        %4064 = vmatprep.subr.mxu0 0.0
        %4065 = vmatpush2.msra.mxu0 0.0
        %4066 = vmatprep.subr.mxu0 0.0
        %4067 = vmatpush2.msra.mxu0 0.0
        %4068 = vmatprep.subr.mxu0 0.0
        %4069 = vmatpush2.msra.mxu0 0.0
        %4070 = vmatprep.mubr.f32.mxu0 0.0
        %4071 = vmatmul.mubr.f32.gmra.mxu0 %v4001
        %v4072 = vpop.f32.mrf.mxu0
        %v4073 = vadd.f32 0.0, %v4072
        %v4074 = vpop.f32.mrf.mxu0
        %4075 = vmatprep.mubr.f32.mxu0 0.0
        %4076 = vmatmul.mubr.f32.gmra.mxu0 %v4004
        %v4077 = vpop.f32.mrf.mxu0
        %v4078 = vadd.f32 0.0, %v4077
        %v4079 = vpop.f32.mrf.mxu0
        %4080 = vdwg.mxu0
        %v4082 = vsel %vm767, %v4073, 0
        %v4085 = vsel %vm767, %v4078, 0
        %4087 = vmatprep.subr.mxu0 0.0
        %4088 = vmatpush1.msra.mxu0 0.0
        %4089 = vmatprep.subr.mxu0 0.0
        %4090 = vmatpush1.msra.mxu0 0.0
        %4091 = vmatprep.subr.mxu0 0.0
        %4092 = vmatpush1.msra.mxu0 0.0
        %4093 = vmatprep.subr.mxu0 0.0
        %4094 = vmatpush1.msra.mxu0 0.0
        %4095 = vmatprep.subr.mxu0 0.0
        %4096 = vmatpush1.msra.mxu0 0.0
        %4097 = vmatprep.subr.mxu0 0.0
        %4098 = vmatpush1.msra.mxu0 0.0
        %4099 = vmatprep.subr.mxu0 0.0
        %4100 = vmatpush1.msra.mxu0 0.0
        %4101 = vmatprep.subr.mxu0 0.0
        %4102 = vmatpush1.msra.mxu0 0.0
        %4103 = vmatprep.subr.mxu0 0.0
        %4104 = vmatpush1.msra.mxu0 0.0
        %4105 = vmatprep.subr.mxu0 0.0
        %4106 = vmatpush1.msra.mxu0 0.0
        %4107 = vmatprep.subr.mxu0 0.0
        %4108 = vmatpush1.msra.mxu0 0.0
        %4109 = vmatprep.subr.mxu0 0.0
        %4110 = vmatpush1.msra.mxu0 0.0
        %4111 = vmatprep.subr.mxu0 0.0
        %4112 = vmatpush1.msra.mxu0 0.0
        %4113 = vmatprep.subr.mxu0 0.0
        %4114 = vmatpush1.msra.mxu0 0.0
        %4115 = vmatprep.subr.mxu0 0.0
        %4116 = vmatpush1.msra.mxu0 %v2679
        %4117 = vmatprep.subr.mxu0 0.0
        %4118 = vmatpush1.msra.mxu0 %v2678
        %4119 = vmatprep.subr.mxu0 0.0
        %4120 = vmatpush2.msra.mxu0 0.0
        %4121 = vmatprep.subr.mxu0 0.0
        %4122 = vmatpush2.msra.mxu0 0.0
        %4123 = vmatprep.subr.mxu0 0.0
        %4124 = vmatpush2.msra.mxu0 0.0
        %4125 = vmatprep.subr.mxu0 0.0
        %4126 = vmatpush2.msra.mxu0 0.0
        %4127 = vmatprep.subr.mxu0 0.0
        %4128 = vmatpush2.msra.mxu0 0.0
        %4129 = vmatprep.subr.mxu0 0.0
        %4130 = vmatpush2.msra.mxu0 0.0
        %4131 = vmatprep.subr.mxu0 0.0
        %4132 = vmatpush2.msra.mxu0 0.0
        %4133 = vmatprep.subr.mxu0 0.0
        %4134 = vmatpush2.msra.mxu0 0.0
        %4135 = vmatprep.subr.mxu0 0.0
        %4136 = vmatpush2.msra.mxu0 0.0
        %4137 = vmatprep.subr.mxu0 0.0
        %4138 = vmatpush2.msra.mxu0 0.0
        %4139 = vmatprep.subr.mxu0 0.0
        %4140 = vmatpush2.msra.mxu0 0.0
        %4141 = vmatprep.subr.mxu0 0.0
        %4142 = vmatpush2.msra.mxu0 0.0
        %4143 = vmatprep.subr.mxu0 0.0
        %4144 = vmatpush2.msra.mxu0 0.0
        %4145 = vmatprep.subr.mxu0 0.0
        %4146 = vmatpush2.msra.mxu0 0.0
        %4147 = vmatprep.subr.mxu0 0.0
        %4148 = vmatpush2.msra.mxu0 0.0
        %4149 = vmatprep.subr.mxu0 0.0
        %4150 = vmatpush2.msra.mxu0 0.0
        %4151 = vmatprep.mubr.f32.mxu0 0.0
        %4152 = vmatmul.mubr.f32.gmra.mxu0 %v4082
        %v4153 = vpop.f32.mrf.mxu0
        %v4154 = vadd.f32 0.0, %v4153
        %v4155 = vpop.f32.mrf.mxu0
        %4156 = vmatprep.mubr.f32.mxu0 0.0
        %4157 = vmatmul.mubr.f32.gmra.mxu0 %v4085
        %v4158 = vpop.f32.mrf.mxu0
        %v4159 = vadd.f32 0.0, %v4158
        %v4160 = vpop.f32.mrf.mxu0
        %4161 = vdwg.mxu0
        %v4162 = vadd.f32 %v3787, %v4154
        %v4163 = vadd.f32 %v3788, %v4159
        %v4164 = vadd.f32 %v2543, %v4162
        %v4165 = vadd.f32 %v2544, %v4163
        %s4166 = scalar_lea.vmem %s5, 1
        %v4167 = vld [vmem:[%s4166] sm:$0x1]
        %v4168 = vmul.f32 %v4164, %v4164
        %v4169 = vmul.f32 %v4165, %v4165
        %v4170 = vsel %vm511, %v4168, 0.0
        %4171 = vadd.xlane.f32.xlu0 %v4170
        %v4172 = vpop.xlane.xlu0 %4171
        %v4173 = vsel %vm511, %v4169, 0.0
        %4174 = vadd.xlane.f32.xlu0 %v4173
        %v4175 = vpop.xlane.xlu0 %4174
        %v4176 = vmul.f32 %v4172, %v518
        %v4177 = vmul.f32 %v4175, %v518
        %v4178 = vadd.f32 %v4176, 1e-05
        %v4179 = vadd.f32 %v4177, 1e-05
        %v4180 = vrsqrt.pop %v4178
        %v4181 = vrsqrt.pop %v4179
        %v4182 = vmul.f32 %v4164, %v4180
        %v4183 = vmul.f32 %v4165, %v4181
        %v4185 = vlaneseq
        %v4186 = vshrl.u32 %v4185, 7
        %v4187 = vsub.s32 0, %v4186
        %v4188 = vrot.slane %v4167, %v4187
        %v4190 = vmul.f32 %v4182, %v4188
        %v4191 = vmul.f32 %v4183, %v4188
        %s4192 = scalar_lea.vmem [#allocation11], 128
        %v4193 = vld [vmem:[%s4192] sm:$0xff]
        %v4194 = vld [vmem:[%s4192 + $0x8] sm:$0xff]
        %v4195 = vld [vmem:[%s4192 + $0x10] sm:$0xff]
        %v4196 = vld [vmem:[%s4192 + $0x18] sm:$0xff]
        %v4197 = vld [vmem:[%s4192 + $0x20] sm:$0xff]
        %v4198 = vld [vmem:[%s4192 + $0x28] sm:$0xff]
        %v4199 = vld [vmem:[%s4192 + $0x30] sm:$0xff]
        %v4200 = vld [vmem:[%s4192 + $0x38] sm:$0xff]
        %v4201 = vld [vmem:[%s4192 + $0x40] sm:$0xff]
        %v4202 = vld [vmem:[%s4192 + $0x48] sm:$0xff]
        %v4203 = vld [vmem:[%s4192 + $0x50] sm:$0xff]
        %v4204 = vld [vmem:[%s4192 + $0x58] sm:$0xff]
        %v4205 = vld [vmem:[%s4192 + $0x60] sm:$0xff]
        %v4206 = vld [vmem:[%s4192 + $0x68] sm:$0xff]
        %v4207 = vld [vmem:[%s4192 + $0x70] sm:$0xff]
        %v4208 = vld [vmem:[%s4192 + $0x78] sm:$0xff]
        %v4210 = vsel %vm511, %v4190, 0
        %v4213 = vsel %vm511, %v4191, 0
        %4215 = vmatprep.subr.mxu0 0.0
        %4216 = vmatpush1.msra.mxu0 0.0
        %4217 = vmatprep.subr.mxu0 0.0
        %4218 = vmatpush1.msra.mxu0 0.0
        %4219 = vmatprep.subr.mxu0 0.0
        %4220 = vmatpush1.msra.mxu0 0.0
        %4221 = vmatprep.subr.mxu0 0.0
        %4222 = vmatpush1.msra.mxu0 0.0
        %4223 = vmatprep.subr.mxu0 0.0
        %4224 = vmatpush1.msra.mxu0 0.0
        %4225 = vmatprep.subr.mxu0 0.0
        %4226 = vmatpush1.msra.mxu0 0.0
        %4227 = vmatprep.subr.mxu0 0.0
        %4228 = vmatpush1.msra.mxu0 0.0
        %4229 = vmatprep.subr.mxu0 0.0
        %4230 = vmatpush1.msra.mxu0 0.0
        %4231 = vmatprep.subr.mxu0 %v4208
        %4232 = vmatpush1.msra.mxu0 %v4207
        %4233 = vmatprep.subr.mxu0 %v4206
        %4234 = vmatpush1.msra.mxu0 %v4205
        %4235 = vmatprep.subr.mxu0 %v4204
        %4236 = vmatpush1.msra.mxu0 %v4203
        %4237 = vmatprep.subr.mxu0 %v4202
        %4238 = vmatpush1.msra.mxu0 %v4201
        %4239 = vmatprep.subr.mxu0 %v4200
        %4240 = vmatpush1.msra.mxu0 %v4199
        %4241 = vmatprep.subr.mxu0 %v4198
        %4242 = vmatpush1.msra.mxu0 %v4197
        %4243 = vmatprep.subr.mxu0 %v4196
        %4244 = vmatpush1.msra.mxu0 %v4195
        %4245 = vmatprep.subr.mxu0 %v4194
        %4246 = vmatpush1.msra.mxu0 %v4193
        %4247 = vmatprep.subr.mxu0 0.0
        %4248 = vmatpush2.msra.mxu0 0.0
        %4249 = vmatprep.subr.mxu0 0.0
        %4250 = vmatpush2.msra.mxu0 0.0
        %4251 = vmatprep.subr.mxu0 0.0
        %4252 = vmatpush2.msra.mxu0 0.0
        %4253 = vmatprep.subr.mxu0 0.0
        %4254 = vmatpush2.msra.mxu0 0.0
        %4255 = vmatprep.subr.mxu0 0.0
        %4256 = vmatpush2.msra.mxu0 0.0
        %4257 = vmatprep.subr.mxu0 0.0
        %4258 = vmatpush2.msra.mxu0 0.0
        %4259 = vmatprep.subr.mxu0 0.0
        %4260 = vmatpush2.msra.mxu0 0.0
        %4261 = vmatprep.subr.mxu0 0.0
        %4262 = vmatpush2.msra.mxu0 0.0
        %4263 = vmatprep.subr.mxu0 0.0
        %4264 = vmatpush2.msra.mxu0 0.0
        %4265 = vmatprep.subr.mxu0 0.0
        %4266 = vmatpush2.msra.mxu0 0.0
        %4267 = vmatprep.subr.mxu0 0.0
        %4268 = vmatpush2.msra.mxu0 0.0
        %4269 = vmatprep.subr.mxu0 0.0
        %4270 = vmatpush2.msra.mxu0 0.0
        %4271 = vmatprep.subr.mxu0 0.0
        %4272 = vmatpush2.msra.mxu0 0.0
        %4273 = vmatprep.subr.mxu0 0.0
        %4274 = vmatpush2.msra.mxu0 0.0
        %4275 = vmatprep.subr.mxu0 0.0
        %4276 = vmatpush2.msra.mxu0 0.0
        %4277 = vmatprep.subr.mxu0 0.0
        %4278 = vmatpush2.msra.mxu0 0.0
        %4279 = vmatprep.mubr.f32.mxu0 0.0
        %4280 = vmatmul.mubr.f32.gmra.mxu0 %v4210
        %v4281 = vpop.f32.mrf.mxu0
        %v4282 = vadd.f32 0.0, %v4281
        %v4283 = vpop.f32.mrf.mxu0
        %v4284 = vadd.f32 0.0, %v4283
        %4285 = vmatprep.mubr.f32.mxu0 0.0
        %4286 = vmatmul.mubr.f32.gmra.mxu0 %v4213
        %v4287 = vpop.f32.mrf.mxu0
        %v4288 = vadd.f32 0.0, %v4287
        %v4289 = vpop.f32.mrf.mxu0
        %v4290 = vadd.f32 0.0, %v4289
        %4291 = vdwg.mxu0
        %v4292 = vsub.f32 0.0, %v4282
        %v4293 = vsub.f32 0.0, %v4288
        %v4294 = vmul.f32 %v4292, 1.442695
        %v4295 = vpow.pop %v4294
        %v4296 = vmul.f32 %v4293, 1.442695
        %v4297 = vpow.pop %v4296
        %v4298 = vadd.f32 %v4295, 1.0
        %v4299 = vadd.f32 %v4297, 1.0
        %v4300 = vrcp.pop %v4298
        %v4301 = vrcp.pop %v4299
        %v4302 = vmul.f32 %v4282, %v4300
        %v4303 = vmul.f32 %v4288, %v4301
        %v4304 = vmul.f32 %v4302, %v4284
        %v4305 = vmul.f32 %v4303, %v4290
        %s4306 = scalar_lea.vmem %s9, 128
        %v4307 = vld [vmem:[%s4306] sm:$0xff]
        %v4308 = vld [vmem:[%s4306 + $0x8] sm:$0xff]
        %v4309 = vld [vmem:[%s4306 + $0x10] sm:$0xff]
        %v4310 = vld [vmem:[%s4306 + $0x18] sm:$0xff]
        %v4311 = vld [vmem:[%s4306 + $0x20] sm:$0xff]
        %v4312 = vld [vmem:[%s4306 + $0x28] sm:$0xff]
        %v4313 = vld [vmem:[%s4306 + $0x30] sm:$0xff]
        %v4314 = vld [vmem:[%s4306 + $0x38] sm:$0xff]
        %v4315 = vld [vmem:[%s4306 + $0x40] sm:$0xff]
        %v4316 = vld [vmem:[%s4306 + $0x48] sm:$0xff]
        %v4317 = vld [vmem:[%s4306 + $0x50] sm:$0xff]
        %v4318 = vld [vmem:[%s4306 + $0x58] sm:$0xff]
        %v4319 = vld [vmem:[%s4306 + $0x60] sm:$0xff]
        %v4320 = vld [vmem:[%s4306 + $0x68] sm:$0xff]
        %v4321 = vld [vmem:[%s4306 + $0x70] sm:$0xff]
        %v4322 = vld [vmem:[%s4306 + $0x78] sm:$0xff]
        %4323 = vmatprep.subr.mxu0 0.0
        %4324 = vmatpush1.msra.mxu0 %v4322
        %4325 = vmatprep.subr.mxu0 0.0
        %4326 = vmatpush1.msra.mxu0 %v4321
        %4327 = vmatprep.subr.mxu0 0.0
        %4328 = vmatpush1.msra.mxu0 %v4320
        %4329 = vmatprep.subr.mxu0 0.0
        %4330 = vmatpush1.msra.mxu0 %v4319
        %4331 = vmatprep.subr.mxu0 0.0
        %4332 = vmatpush1.msra.mxu0 %v4318
        %4333 = vmatprep.subr.mxu0 0.0
        %4334 = vmatpush1.msra.mxu0 %v4317
        %4335 = vmatprep.subr.mxu0 0.0
        %4336 = vmatpush1.msra.mxu0 %v4316
        %4337 = vmatprep.subr.mxu0 0.0
        %4338 = vmatpush1.msra.mxu0 %v4315
        %4339 = vmatprep.subr.mxu0 0.0
        %4340 = vmatpush1.msra.mxu0 %v4314
        %4341 = vmatprep.subr.mxu0 0.0
        %4342 = vmatpush1.msra.mxu0 %v4313
        %4343 = vmatprep.subr.mxu0 0.0
        %4344 = vmatpush1.msra.mxu0 %v4312
        %4345 = vmatprep.subr.mxu0 0.0
        %4346 = vmatpush1.msra.mxu0 %v4311
        %4347 = vmatprep.subr.mxu0 0.0
        %4348 = vmatpush1.msra.mxu0 %v4310
        %4349 = vmatprep.subr.mxu0 0.0
        %4350 = vmatpush1.msra.mxu0 %v4309
        %4351 = vmatprep.subr.mxu0 0.0
        %4352 = vmatpush1.msra.mxu0 %v4308
        %4353 = vmatprep.subr.mxu0 0.0
        %4354 = vmatpush1.msra.mxu0 %v4307
        %4355 = vmatprep.subr.mxu0 0.0
        %4356 = vmatpush2.msra.mxu0 0.0
        %4357 = vmatprep.subr.mxu0 0.0
        %4358 = vmatpush2.msra.mxu0 0.0
        %4359 = vmatprep.subr.mxu0 0.0
        %4360 = vmatpush2.msra.mxu0 0.0
        %4361 = vmatprep.subr.mxu0 0.0
        %4362 = vmatpush2.msra.mxu0 0.0
        %4363 = vmatprep.subr.mxu0 0.0
        %4364 = vmatpush2.msra.mxu0 0.0
        %4365 = vmatprep.subr.mxu0 0.0
        %4366 = vmatpush2.msra.mxu0 0.0
        %4367 = vmatprep.subr.mxu0 0.0
        %4368 = vmatpush2.msra.mxu0 0.0
        %4369 = vmatprep.subr.mxu0 0.0
        %4370 = vmatpush2.msra.mxu0 0.0
        %4371 = vmatprep.subr.mxu0 0.0
        %4372 = vmatpush2.msra.mxu0 0.0
        %4373 = vmatprep.subr.mxu0 0.0
        %4374 = vmatpush2.msra.mxu0 0.0
        %4375 = vmatprep.subr.mxu0 0.0
        %4376 = vmatpush2.msra.mxu0 0.0
        %4377 = vmatprep.subr.mxu0 0.0
        %4378 = vmatpush2.msra.mxu0 0.0
        %4379 = vmatprep.subr.mxu0 0.0
        %4380 = vmatpush2.msra.mxu0 0.0
        %4381 = vmatprep.subr.mxu0 0.0
        %4382 = vmatpush2.msra.mxu0 0.0
        %4383 = vmatprep.subr.mxu0 0.0
        %4384 = vmatpush2.msra.mxu0 0.0
        %4385 = vmatprep.subr.mxu0 0.0
        %4386 = vmatpush2.msra.mxu0 0.0
        %4387 = vmatprep.mubr.f32.mxu0 0.0
        %4388 = vmatmul.mubr.f32.gmra.mxu0 %v4304
        %v4389 = vpop.f32.mrf.mxu0
        %v4390 = vadd.f32 0.0, %v4389
        %v4391 = vpop.f32.mrf.mxu0
        %4392 = vmatprep.mubr.f32.mxu0 0.0
        %4393 = vmatmul.mubr.f32.gmra.mxu0 %v4305
        %v4394 = vpop.f32.mrf.mxu0
        %v4395 = vadd.f32 0.0, %v4394
        %v4396 = vpop.f32.mrf.mxu0
        %4397 = vdwg.mxu0
        %v4398 = vadd.f32 %v4164, %v4390
        %v4399 = vadd.f32 %v4165, %v4395
        %v4400 = vld [vmem:[%s10] sm:$0x1]
        %v4401 = vmul.f32 %v4398, %v4398
        %v4402 = vmul.f32 %v4399, %v4399
        %v4403 = vsel %vm511, %v4401, 0.0
        %4404 = vadd.xlane.f32.xlu0 %v4403
        %v4405 = vpop.xlane.xlu0 %4404
        %v4406 = vsel %vm511, %v4402, 0.0
        %4407 = vadd.xlane.f32.xlu0 %v4406
        %v4408 = vpop.xlane.xlu0 %4407
        %v4409 = vmul.f32 %v4405, %v518
        %v4410 = vmul.f32 %v4408, %v518
        %v4411 = vadd.f32 %v4409, 1e-05
        %v4412 = vadd.f32 %v4410, 1e-05
        %v4413 = vrsqrt.pop %v4411
        %v4414 = vrsqrt.pop %v4412
        %v4415 = vmul.f32 %v4398, %v4413
        %v4416 = vmul.f32 %v4399, %v4414
        %v4418 = vlaneseq
        %v4419 = vshrl.u32 %v4418, 7
        %v4420 = vsub.s32 0, %v4419
        %v4421 = vrot.slane %v4400, %v4420
        %v4423 = vmul.f32 %v4415, %v4421
        %v4424 = vmul.f32 %v4416, %v4421
        %v4425 = vld [vmem:[%s11] sm:$0xff]
        %v4426 = vld [vmem:[%s11 + $0x8] sm:$0xff]
        %v4427 = vld [vmem:[%s11 + $0x10] sm:$0xff]
        %v4428 = vld [vmem:[%s11 + $0x18] sm:$0xff]
        %v4429 = vld [vmem:[%s11 + $0x20] sm:$0xff]
        %v4430 = vld [vmem:[%s11 + $0x28] sm:$0xff]
        %v4431 = vld [vmem:[%s11 + $0x30] sm:$0xff]
        %v4432 = vld [vmem:[%s11 + $0x38] sm:$0xff]
        %v4434 = vsel %vm511, %v4423, 0
        %v4437 = vsel %vm511, %v4424, 0
        %4439 = vmatprep.subr.mxu0 0.0
        %4440 = vmatpush1.msra.mxu0 0.0
        %4441 = vmatprep.subr.mxu0 0.0
        %4442 = vmatpush1.msra.mxu0 0.0
        %4443 = vmatprep.subr.mxu0 0.0
        %4444 = vmatpush1.msra.mxu0 0.0
        %4445 = vmatprep.subr.mxu0 0.0
        %4446 = vmatpush1.msra.mxu0 0.0
        %4447 = vmatprep.subr.mxu0 0.0
        %4448 = vmatpush1.msra.mxu0 0.0
        %4449 = vmatprep.subr.mxu0 0.0
        %4450 = vmatpush1.msra.mxu0 0.0
        %4451 = vmatprep.subr.mxu0 0.0
        %4452 = vmatpush1.msra.mxu0 0.0
        %4453 = vmatprep.subr.mxu0 0.0
        %4454 = vmatpush1.msra.mxu0 0.0
        %4455 = vmatprep.subr.mxu0 0.0
        %4456 = vmatpush1.msra.mxu0 %v4432
        %4457 = vmatprep.subr.mxu0 0.0
        %4458 = vmatpush1.msra.mxu0 %v4431
        %4459 = vmatprep.subr.mxu0 0.0
        %4460 = vmatpush1.msra.mxu0 %v4430
        %4461 = vmatprep.subr.mxu0 0.0
        %4462 = vmatpush1.msra.mxu0 %v4429
        %4463 = vmatprep.subr.mxu0 0.0
        %4464 = vmatpush1.msra.mxu0 %v4428
        %4465 = vmatprep.subr.mxu0 0.0
        %4466 = vmatpush1.msra.mxu0 %v4427
        %4467 = vmatprep.subr.mxu0 0.0
        %4468 = vmatpush1.msra.mxu0 %v4426
        %4469 = vmatprep.subr.mxu0 0.0
        %4470 = vmatpush1.msra.mxu0 %v4425
        %4471 = vmatprep.subr.mxu0 0.0
        %4472 = vmatpush2.msra.mxu0 0.0
        %4473 = vmatprep.subr.mxu0 0.0
        %4474 = vmatpush2.msra.mxu0 0.0
        %4475 = vmatprep.subr.mxu0 0.0
        %4476 = vmatpush2.msra.mxu0 0.0
        %4477 = vmatprep.subr.mxu0 0.0
        %4478 = vmatpush2.msra.mxu0 0.0
        %4479 = vmatprep.subr.mxu0 0.0
        %4480 = vmatpush2.msra.mxu0 0.0
        %4481 = vmatprep.subr.mxu0 0.0
        %4482 = vmatpush2.msra.mxu0 0.0
        %4483 = vmatprep.subr.mxu0 0.0
        %4484 = vmatpush2.msra.mxu0 0.0
        %4485 = vmatprep.subr.mxu0 0.0
        %4486 = vmatpush2.msra.mxu0 0.0
        %4487 = vmatprep.subr.mxu0 0.0
        %4488 = vmatpush2.msra.mxu0 0.0
        %4489 = vmatprep.subr.mxu0 0.0
        %4490 = vmatpush2.msra.mxu0 0.0
        %4491 = vmatprep.subr.mxu0 0.0
        %4492 = vmatpush2.msra.mxu0 0.0
        %4493 = vmatprep.subr.mxu0 0.0
        %4494 = vmatpush2.msra.mxu0 0.0
        %4495 = vmatprep.subr.mxu0 0.0
        %4496 = vmatpush2.msra.mxu0 0.0
        %4497 = vmatprep.subr.mxu0 0.0
        %4498 = vmatpush2.msra.mxu0 0.0
        %4499 = vmatprep.subr.mxu0 0.0
        %4500 = vmatpush2.msra.mxu0 0.0
        %4501 = vmatprep.subr.mxu0 0.0
        %4502 = vmatpush2.msra.mxu0 0.0
        %4503 = vmatprep.mubr.f32.mxu0 0.0
        %4504 = vmatmul.mubr.f32.gmra.mxu0 %v4434
        %v4505 = vpop.f32.mrf.mxu0
        %v4506 = vadd.f32 0.0, %v4505
        %v4507 = vpop.f32.mrf.mxu0
        %4508 = vmatprep.mubr.f32.mxu0 0.0
        %4509 = vmatmul.mubr.f32.gmra.mxu0 %v4437
        %v4510 = vpop.f32.mrf.mxu0
        %v4511 = vadd.f32 0.0, %v4510
        %v4512 = vpop.f32.mrf.mxu0
        %4513 = vdwg.mxu0
        %4514 = vst [vmem:[%s494] sm:$0xff] %v4506
        %4515 = vst [vmem:[%s494 + $0x8] sm:$0xff] %v4511
        %s4516 = sand.u32 %s295, 1
        %s4517 = scalar_lea.sflag [#allocation4], %s4516
        %s4518 = sand.u32 %s295, 1
        %s4519 = smul.addr %s4518, 16
        %s4520 = scalar_lea.vmem [#allocation13], %s4519
        // Predicated region
        $region93: #{wrapped_llama_forward.1} parent=67 // pred_check
          %p4521 = pneg %p305
        $region94: #{wrapped_llama_forward.1} parent=67 // pred_check_branch
          %4523 = sbr.rel (%p4521) target = $region96
        $region95: #{wrapped_llama_forward.1} parent=67 // pred_region
          %s4525 = ssub.s32 256, 256
          %4526 = vsyncadd %s4517, %s4525
          %s4527 = smul.addr %s30, 2
          %s4528 = smul.addr %s4527, 128
          %s4529 = scalar_lea.hbm %s12, %s4528
          %s4530 = sshll.u32 %s4520, 4
          %s4531 = int_to_ptr.vmem [resolvable:$true] %s4530
          %4536 = dma.vmem_to_hbm [thread:$0]  %s4531, 256, %s4529, %s4517, 128, 128, 8
        $region96: #{wrapped_llama_forward.1} parent=67 // pred_fallthru
          _
      $region68: #{wrapped_llama_forward.1} parent=5 // pred_fallthru
        _
      %p4537 = scmp.le.s32.totalorder 2, %s25
      // Predicated region
      $region97: #{wrapped_llama_forward.1} parent=5 // pred_check
        %p4538 = pneg %p4537
      $region98: #{wrapped_llama_forward.1} parent=5 // pred_check_branch
        %4540 = sbr.rel (%p4538) target = $region100
      $region99: #{wrapped_llama_forward.1} parent=5 // pred_region
        %s4541 = ssub.s32 %s25, 2
        // Predicated region
        $region101: #{wrapped_llama_forward.1} parent=99 // pred_check
          %p4542 = pneg %p311
        $region102: #{wrapped_llama_forward.1} parent=99 // pred_check_branch
          %4544 = sbr.rel (%p4542) target = $region104
        $region103: #{wrapped_llama_forward.1} parent=99 // pred_region
          %s4545 = sand.u32 %s296, 1
          %s4546 = scalar_lea.sflag [#allocation4], %s4545
          %s4547 = sand.u32 %s296, 1
          %s4548 = smul.addr %s4547, 16
          %s4549 = scalar_lea.vmem [#allocation13], %s4548
          %4550 = dma.done %s4546, 256
        $region104: #{wrapped_llama_forward.1} parent=99 // pred_fallthru
          _
      $region100: #{wrapped_llama_forward.1} parent=5 // pred_fallthru
        _
    $region6: #{wrapped_llama_forward.1} parent=1 // loop_footer
      %s29 = sadd.s32 1, %s25
    $region7: #{wrapped_llama_forward.1} parent=1 // loop_footer_branch
      %24 = sbr.rel target = $region3
    $region8: #{wrapped_llama_forward.1} parent=1 // loop_exit
      _
    %4551 = vsyncpa [#allocation3], 1
    %s4552 = scalar_lea.sflag [#allocation3], 1
    %4553 = vsyncpa %s4552, 1
    %4554 = vsyncpa [#allocation6], 1
    %4555 = vsyncpa [#allocation9], 1
    %4556 = vsyncpa [#allocation12], 1
    %4557 = vsyncpa [#allocation4], 1
    %s4558 = scalar_lea.sflag [#allocation4], 1
    %4559 = vsyncpa %s4558, 1

</llo_original>
